<compile_context>
chip_gen: v7x
topology: tpu7x:2x2x1
jax: 0.10.0
libtpu: 0.0.40
codegen_flags: <defaults>
</compile_context>

<pallas_src>
import functools

import jax
import jax.numpy as jnp
from jax.experimental import pallas as pl
from jax.experimental.pallas import tpu as pltpu


OCP = 128  # lane-dense (padded) output-feature width used throughout


def _round_up(x, m):
    return (x + m - 1) // m * m


def _pad_to(x, shape):
    return jnp.pad(x, [(0, s - d) for d, s in zip(x.shape, shape)])


# ----------------------------------------------------------------------------
# Pallas kernels
# ----------------------------------------------------------------------------
def _conv_relu_pool_kernel(p_ref, w_ref, b_ref, o_ref):
    """Fused conv (as im2col matmul) + bias + ReLU + 2x2 max-pool.

    p_ref: (4, Gt, K)   im2col rows, leading axis = pool offset (dy,dx)
    w_ref: (K, OCP)     conv weights, OC padded to 128
    b_ref: (1, OCP)     bias (zero-padded)
    o_ref: (Gt, OCP)    pooled output rows (one row per pooled pixel)
    """
    w = w_ref[...]
    y = jnp.dot(p_ref[0], w, preferred_element_type=jnp.float32)
    for q in range(1, 4):
        y = jnp.maximum(y, jnp.dot(p_ref[q], w,
                                   preferred_element_type=jnp.float32))
    y = y + b_ref[...]
    o_ref[...] = jnp.maximum(y, 0.0)


def _mlp_kernel(x_ref, w1_ref, b1_ref, w2_ref, b2_ref, w3_ref, b3_ref, o_ref):
    """Fused fc1 -> ReLU -> fc2 -> ReLU -> classifier, all lane-padded to 128."""
    h1 = jnp.dot(x_ref[...], w1_ref[...], preferred_element_type=jnp.float32)
    h1 = jnp.maximum(h1 + b1_ref[...], 0.0)
    h2 = jnp.dot(h1, w2_ref[...], preferred_element_type=jnp.float32)
    h2 = jnp.maximum(h2 + b2_ref[...], 0.0)
    o = jnp.dot(h2, w3_ref[...], preferred_element_type=jnp.float32)
    o_ref[...] = o + b3_ref[...]


# ----------------------------------------------------------------------------
# Pallas wrappers
# ----------------------------------------------------------------------------
def conv_relu_pool(patches, w_mat, b_mat, *, gt_max=512):
    """patches: (4, G, K) f32; w_mat: (K, OCP); b_mat: (1, OCP) -> (G, OCP)."""
    _, g_rows, k = patches.shape
    ocp = w_mat.shape[1]
    gt = min(gt_max, _round_up(g_rows, 8))
    gpad = _round_up(g_rows, gt)
    if gpad != g_rows:
        patches = jnp.pad(patches, ((0, 0), (0, gpad - g_rows), (0, 0)))

    flops = 2 * 4 * gpad * k * ocp
    bytes_acc = 4 * (4 * gpad * k + k * ocp + ocp + gpad * ocp)

    out = pl.pallas_call(
        _conv_relu_pool_kernel,
        out_shape=jax.ShapeDtypeStruct((gpad, ocp), jnp.float32),
        grid=(gpad // gt,),
        in_specs=[
            pl.BlockSpec((4, gt, k), lambda i: (0, i, 0)),
            pl.BlockSpec((k, ocp), lambda i: (0, 0)),
            pl.BlockSpec((1, ocp), lambda i: (0, 0)),
        ],
        out_specs=pl.BlockSpec((gt, ocp), lambda i: (i, 0)),
        compiler_params=pltpu.CompilerParams(
            dimension_semantics=("parallel",)),
        cost_estimate=pl.CostEstimate(
            flops=flops, transcendentals=0, bytes_accessed=bytes_acc),
    )(patches, w_mat, b_mat)
    return out[:g_rows]


def fused_mlp(x, w1, b1, w2, b2, w3, b3, *, mt_max=256):
    """x: (N, K) -> logits (N, OCP); fc1/fc2/classifier fused in one kernel."""
    n_rows, k = x.shape
    h1 = w1.shape[1]
    h2 = w2.shape[1]
    ocp = w3.shape[1]
    mt = min(mt_max, _round_up(n_rows, 8))
    npad = _round_up(n_rows, mt)
    if npad != n_rows:
        x = jnp.pad(x, ((0, npad - n_rows), (0, 0)))

    flops = 2 * npad * (k * h1 + h1 * h2 + h2 * ocp)
    bytes_acc = 4 * (npad * k + k * h1 + h1 * h2 + h2 * ocp
                     + h1 + h2 + ocp + npad * ocp)

    out = pl.pallas_call(
        _mlp_kernel,
        out_shape=jax.ShapeDtypeStruct((npad, ocp), jnp.float32),
        grid=(npad // mt,),
        in_specs=[
            pl.BlockSpec((mt, k), lambda i: (i, 0)),
            pl.BlockSpec(w1.shape, lambda i: (0, 0)),
            pl.BlockSpec(b1.shape, lambda i: (0, 0)),
            pl.BlockSpec(w2.shape, lambda i: (0, 0)),
            pl.BlockSpec(b2.shape, lambda i: (0, 0)),
            pl.BlockSpec(w3.shape, lambda i: (0, 0)),
            pl.BlockSpec(b3.shape, lambda i: (0, 0)),
        ],
        out_specs=pl.BlockSpec((mt, ocp), lambda i: (i, 0)),
        compiler_params=pltpu.CompilerParams(
            dimension_semantics=("parallel",)),
        cost_estimate=pl.CostEstimate(
            flops=flops, transcendentals=0, bytes_accessed=bytes_acc),
    )(x, w1, b1, w2, b2, w3, b3)
    return out[:n_rows]


# ----------------------------------------------------------------------------
# Plain-JAX glue: pool-phase-major im2col
# ----------------------------------------------------------------------------
def _pool_patches_nhwc(x, kh, kw):
    """x: (N, H, W, C) -> patches (4, N*PH*PW, KH*KW*C), pool-offset major.

    patches[dy*2+dx, n*PH*PW + ph*PW + pw, (i*KW+j)*C + c]
        = x[n, 2*ph + dy + i, 2*pw + dx + j, c]
    """
    n, h, w, c = x.shape
    oh, ow = h - kh + 1, w - kw + 1
    ph, pw = oh // 2, ow // 2
    win = jnp.concatenate(
        [x[:, i:i + oh, j:j + ow, :] for i in range(kh) for j in range(kw)],
        axis=-1)                                    # (N, OH, OW, KH*KW*C)
    k = kh * kw * c
    blocks = [
        win[:, dy::2, dx::2, :].reshape(n * ph * pw, k)
        for dy in range(2) for dx in range(2)
    ]
    return jnp.stack(blocks, axis=0), (ph, pw)


# ----------------------------------------------------------------------------
# Parameter init (PyTorch-like uniform fan-in scaling), padded/kernel-ready
# ----------------------------------------------------------------------------
def init_params(key, n_classes=10):
    keys = jax.random.split(key, 10)

    def unif(k, shape, fan_in):
        bound = 1.0 / (float(fan_in) ** 0.5)
        return jax.random.uniform(k, shape, jnp.float32, -bound, bound)

    # Logical (PyTorch-layout) parameters.
    conv1_w = unif(keys[0], (6, 1, 5, 5), 25)      # (OC, C, KH, KW)
    conv1_b = unif(keys[1], (6,), 25)
    conv2_w = unif(keys[2], (16, 6, 5, 5), 150)
    conv2_b = unif(keys[3], (16,), 150)
    fc1_w = unif(keys[4], (120, 256), 256)         # (out, in), in = c*16+h*4+w
    fc1_b = unif(keys[5], (120,), 256)
    fc2_w = unif(keys[6], (84, 120), 120)
    fc2_b = unif(keys[7], (84,), 120)
    cls_w = unif(keys[8], (n_classes, 84), 84)
    cls_b = unif(keys[9], (n_classes,), 84)

    def conv_mat(w):                               # -> (KH*KW*C, OCP)
        oc, c, kh, kw = w.shape
        m = jnp.transpose(w, (2, 3, 1, 0)).reshape(kh * kw * c, oc)
        return _pad_to(m, (kh * kw * c, OCP))

    def vec_mat(b):                                # -> (1, OCP)
        return _pad_to(b.reshape(1, -1), (1, OCP))

    # fc1 rows re-ordered from PyTorch's (c, h, w) flatten to the kernel's
    # (h, w, c_padded_to_128) flatten of the conv2 output, then zero-padded.
    f1 = fc1_w.reshape(120, 16, 4, 4)              # (out, c, h, w)
    f1 = jnp.transpose(f1, (2, 3, 1, 0))           # (h, w, c, out)
    f1 = _pad_to(f1, (4, 4, OCP, 120)).reshape(4 * 4 * OCP, 120)
    f1 = _pad_to(f1, (4 * 4 * OCP, OCP))

    return {
        "conv1_w": conv_mat(conv1_w), "conv1_b": vec_mat(conv1_b),
        "conv2_w": conv_mat(conv2_w), "conv2_b": vec_mat(conv2_b),
        "fc1_w": f1,                  "fc1_b": vec_mat(fc1_b),
        "fc2_w": _pad_to(fc2_w.T, (OCP, OCP)), "fc2_b": vec_mat(fc2_b),
        "cls_w": _pad_to(cls_w.T, (OCP, OCP)), "cls_b": vec_mat(cls_b),
    }


# ----------------------------------------------------------------------------
# Forward pass (mirrors LeNet.forward)
# ----------------------------------------------------------------------------
@functools.partial(jax.jit, static_argnames=("n_classes",))
def lenet_forward(params, x, n_classes=10):
    n = x.shape[0]
    xh = jnp.transpose(x, (0, 2, 3, 1))                       # NCHW -> NHWC
    # conv1 + ReLU + 2x2 max-pool (fused)
    p1, (ph1, pw1) = _pool_patches_nhwc(xh, 5, 5)             # (4, N*144, 25)
    y1 = conv_relu_pool(p1, params["conv1_w"], params["conv1_b"])  # (N*144,128)
    x2 = y1.reshape(n, ph1, pw1, OCP)[..., :6]                # real 6 channels
    # conv2 + ReLU + 2x2 max-pool (fused)
    p2, (ph2, pw2) = _pool_patches_nhwc(x2, 5, 5)             # (4, N*16, 150)
    y2 = conv_relu_pool(p2, params["conv2_w"], params["conv2_b"])  # (N*16,128)
    # flatten (lane-padded) and run the fused 3-layer MLP
    feats = y2.reshape(n, ph2 * pw2 * OCP)                    # (N, 2048)
    logits = fused_mlp(feats,
                       params["fc1_w"], params["fc1_b"],
                       params["fc2_w"], params["fc2_b"],
                       params["cls_w"], params["cls_b"])      # (N, 128)
    return logits[:, :n_classes]


if __name__ == "__main__":
    key = jax.random.PRNGKey(0)
    k_param, k_in = jax.random.split(key)
    params = init_params(k_param, n_classes=10)
    # Input must be 28x28 so the flattened feature size is 16*4*4 = 256.
    x = jax.random.normal(k_in, (2, 1, 28, 28), dtype=jnp.float32)
    logits = lenet_forward(params, x, n_classes=10)
    jax.block_until_ready(logits)
    assert logits.shape == (2, 10)
    print("KERNEL_OK")
</pallas_src>

<mosaic_0001>
module attributes {stable_mosaic.version = 11 : i64} {
  func.func @_conv_relu_pool_kernel(%arg0: i32, %arg1: memref<4x288x25xf32, #tpu.memory_space<vmem>>, %arg2: memref<25x128xf32, #tpu.memory_space<vmem>>, %arg3: memref<1x128xf32, #tpu.memory_space<vmem>>, %arg4: memref<288x128xf32, #tpu.memory_space<vmem>>) attributes {dimension_semantics = [#tpu.dimension_semantics<parallel>], iteration_bounds = array<i64: 1>, scalar_prefetch = 0 : i64, scratch_operands = 0 : i64, tpu.core_type = #tpu.core_type<tc>, window_params = [{transform_indices = @transform_0, window_bounds = array<i64: 4, 288, 25>}, {pipeline_mode = #tpu.pipeline_mode<synchronous>, transform_indices = @transform_1, window_bounds = array<i64: 25, 128>}, {pipeline_mode = #tpu.pipeline_mode<synchronous>, transform_indices = @transform_2, window_bounds = array<i64: 1, 128>}, {transform_indices = @transform_3, window_bounds = array<i64: 288, 128>}]} {
    %c0 = arith.constant 0 : index
    %c0_0 = arith.constant 0 : index
    %0 = vector.load %arg2[%c0, %c0_0] : memref<25x128xf32, #tpu.memory_space<vmem>>, vector<25x128xf32>
    %c0_1 = arith.constant 0 : index
    %c0_2 = arith.constant 0 : index
    %c0_3 = arith.constant 0 : index
    %1 = vector.load %arg1[%c0_1, %c0_2, %c0_3] : memref<4x288x25xf32, #tpu.memory_space<vmem>>, vector<1x288x25xf32>
    %2 = vector.shape_cast %1 : vector<1x288x25xf32> to vector<288x25xf32>
    %cst = arith.constant dense<0.000000e+00> : vector<288x128xf32>
    %3 = tpu.matmul %2, %0, %cst {dimension_numbers = #tpu.dot_dimension_numbers<[1], [0], [0], [1], [0, 0, 1, 1], [], []>} : vector<288x25xf32>, vector<25x128xf32>, vector<288x128xf32> -> vector<288x128xf32>
    %c1 = arith.constant 1 : index
    %c0_4 = arith.constant 0 : index
    %c0_5 = arith.constant 0 : index
    %4 = vector.load %arg1[%c1, %c0_4, %c0_5] : memref<4x288x25xf32, #tpu.memory_space<vmem>>, vector<1x288x25xf32>
    %5 = vector.shape_cast %4 : vector<1x288x25xf32> to vector<288x25xf32>
    %cst_6 = arith.constant dense<0.000000e+00> : vector<288x128xf32>
    %6 = tpu.matmul %5, %0, %cst_6 {dimension_numbers = #tpu.dot_dimension_numbers<[1], [0], [0], [1], [0, 0, 1, 1], [], []>} : vector<288x25xf32>, vector<25x128xf32>, vector<288x128xf32> -> vector<288x128xf32>
    %7 = arith.maximumf %3, %6 : vector<288x128xf32>
    %c2 = arith.constant 2 : index
    %c0_7 = arith.constant 0 : index
    %c0_8 = arith.constant 0 : index
    %8 = vector.load %arg1[%c2, %c0_7, %c0_8] : memref<4x288x25xf32, #tpu.memory_space<vmem>>, vector<1x288x25xf32>
    %9 = vector.shape_cast %8 : vector<1x288x25xf32> to vector<288x25xf32>
    %cst_9 = arith.constant dense<0.000000e+00> : vector<288x128xf32>
    %10 = tpu.matmul %9, %0, %cst_9 {dimension_numbers = #tpu.dot_dimension_numbers<[1], [0], [0], [1], [0, 0, 1, 1], [], []>} : vector<288x25xf32>, vector<25x128xf32>, vector<288x128xf32> -> vector<288x128xf32>
    %11 = arith.maximumf %7, %10 : vector<288x128xf32>
    %c3 = arith.constant 3 : index
    %c0_10 = arith.constant 0 : index
    %c0_11 = arith.constant 0 : index
    %12 = vector.load %arg1[%c3, %c0_10, %c0_11] : memref<4x288x25xf32, #tpu.memory_space<vmem>>, vector<1x288x25xf32>
    %13 = vector.shape_cast %12 : vector<1x288x25xf32> to vector<288x25xf32>
    %cst_12 = arith.constant dense<0.000000e+00> : vector<288x128xf32>
    %14 = tpu.matmul %13, %0, %cst_12 {dimension_numbers = #tpu.dot_dimension_numbers<[1], [0], [0], [1], [0, 0, 1, 1], [], []>} : vector<288x25xf32>, vector<25x128xf32>, vector<288x128xf32> -> vector<288x128xf32>
    %15 = arith.maximumf %11, %14 : vector<288x128xf32>
    %c0_13 = arith.constant 0 : index
    %c0_14 = arith.constant 0 : index
    %16 = vector.load %arg3[%c0_13, %c0_14] : memref<1x128xf32, #tpu.memory_space<vmem>>, vector<1x128xf32>
    %17 = vector.broadcast %16 : vector<1x128xf32> to vector<288x128xf32>
    %18 = arith.addf %15, %17 : vector<288x128xf32>
    %cst_15 = arith.constant 0.000000e+00 : f32
    %19 = vector.broadcast %cst_15 : f32 to vector<288x128xf32>
    %20 = arith.maximumf %18, %19 : vector<288x128xf32>
    %c0_16 = arith.constant 0 : index
    %c0_17 = arith.constant 0 : index
    %21 = vector.load %arg4[%c0_16, %c0_17] : memref<288x128xf32, #tpu.memory_space<vmem>>, vector<288x128xf32>
    tpu.vector_store %arg4[%c0_16, %c0_17], %20 {strides = array<i32>} : memref<288x128xf32, #tpu.memory_space<vmem>>, vector<288x128xf32>,
    return
  }
  func.func @transform_0(%arg0: i32) -> (i32, i32, i32) {
    %c0_i32 = arith.constant 0 : i32
    %c0_i32_0 = arith.constant 0 : i32
    %c0_i32_1 = arith.constant 0 : i32
    return %c0_i32, %arg0, %c0_i32_0 : i32, i32, i32
  }
  func.func @transform_1(%arg0: i32) -> (i32, i32) {
    %c0_i32 = arith.constant 0 : i32
    %c0_i32_0 = arith.constant 0 : i32
    %c0_i32_1 = arith.constant 0 : i32
    return %c0_i32, %c0_i32_0 : i32, i32
  }
  func.func @transform_2(%arg0: i32) -> (i32, i32) {
    %c0_i32 = arith.constant 0 : i32
    %c0_i32_0 = arith.constant 0 : i32
    %c0_i32_1 = arith.constant 0 : i32
    return %c0_i32, %c0_i32_0 : i32, i32
  }
  func.func @transform_3(%arg0: i32) -> (i32, i32) {
    %c0_i32 = arith.constant 0 : i32
    %c0_i32_0 = arith.constant 0 : i32
    return %arg0, %c0_i32 : i32, i32
  }
}

module attributes {stable_mosaic.version = 11 : i64} {
  func.func @_conv_relu_pool_kernel(%arg0: i32, %arg1: memref<4x32x150xf32, #tpu.memory_space<vmem>>, %arg2: memref<150x128xf32, #tpu.memory_space<vmem>>, %arg3: memref<1x128xf32, #tpu.memory_space<vmem>>, %arg4: memref<32x128xf32, #tpu.memory_space<vmem>>) attributes {dimension_semantics = [#tpu.dimension_semantics<parallel>], iteration_bounds = array<i64: 1>, scalar_prefetch = 0 : i64, scratch_operands = 0 : i64, tpu.core_type = #tpu.core_type<tc>, window_params = [{transform_indices = @transform_0, window_bounds = array<i64: 4, 32, 150>}, {pipeline_mode = #tpu.pipeline_mode<synchronous>, transform_indices = @transform_1, window_bounds = array<i64: 150, 128>}, {pipeline_mode = #tpu.pipeline_mode<synchronous>, transform_indices = @transform_2, window_bounds = array<i64: 1, 128>}, {transform_indices = @transform_3, window_bounds = array<i64: 32, 128>}]} {
    %c0 = arith.constant 0 : index
    %c0_0 = arith.constant 0 : index
    %0 = vector.load %arg2[%c0, %c0_0] : memref<150x128xf32, #tpu.memory_space<vmem>>, vector<150x128xf32>
    %c0_1 = arith.constant 0 : index
    %c0_2 = arith.constant 0 : index
    %c0_3 = arith.constant 0 : index
    %1 = vector.load %arg1[%c0_1, %c0_2, %c0_3] : memref<4x32x150xf32, #tpu.memory_space<vmem>>, vector<1x32x150xf32>
    %2 = vector.shape_cast %1 : vector<1x32x150xf32> to vector<32x150xf32>
    %cst = arith.constant dense<0.000000e+00> : vector<32x128xf32>
    %3 = tpu.matmul %2, %0, %cst {dimension_numbers = #tpu.dot_dimension_numbers<[1], [0], [0], [1], [0, 0, 1, 1], [], []>} : vector<32x150xf32>, vector<150x128xf32>, vector<32x128xf32> -> vector<32x128xf32>
    %c1 = arith.constant 1 : index
    %c0_4 = arith.constant 0 : index
    %c0_5 = arith.constant 0 : index
    %4 = vector.load %arg1[%c1, %c0_4, %c0_5] : memref<4x32x150xf32, #tpu.memory_space<vmem>>, vector<1x32x150xf32>
    %5 = vector.shape_cast %4 : vector<1x32x150xf32> to vector<32x150xf32>
    %cst_6 = arith.constant dense<0.000000e+00> : vector<32x128xf32>
    %6 = tpu.matmul %5, %0, %cst_6 {dimension_numbers = #tpu.dot_dimension_numbers<[1], [0], [0], [1], [0, 0, 1, 1], [], []>} : vector<32x150xf32>, vector<150x128xf32>, vector<32x128xf32> -> vector<32x128xf32>
    %7 = arith.maximumf %3, %6 : vector<32x128xf32>
    %c2 = arith.constant 2 : index
    %c0_7 = arith.constant 0 : index
    %c0_8 = arith.constant 0 : index
    %8 = vector.load %arg1[%c2, %c0_7, %c0_8] : memref<4x32x150xf32, #tpu.memory_space<vmem>>, vector<1x32x150xf32>
    %9 = vector.shape_cast %8 : vector<1x32x150xf32> to vector<32x150xf32>
    %cst_9 = arith.constant dense<0.000000e+00> : vector<32x128xf32>
    %10 = tpu.matmul %9, %0, %cst_9 {dimension_numbers = #tpu.dot_dimension_numbers<[1], [0], [0], [1], [0, 0, 1, 1], [], []>} : vector<32x150xf32>, vector<150x128xf32>, vector<32x128xf32> -> vector<32x128xf32>
    %11 = arith.maximumf %7, %10 : vector<32x128xf32>
    %c3 = arith.constant 3 : index
    %c0_10 = arith.constant 0 : index
    %c0_11 = arith.constant 0 : index
    %12 = vector.load %arg1[%c3, %c0_10, %c0_11] : memref<4x32x150xf32, #tpu.memory_space<vmem>>, vector<1x32x150xf32>
    %13 = vector.shape_cast %12 : vector<1x32x150xf32> to vector<32x150xf32>
    %cst_12 = arith.constant dense<0.000000e+00> : vector<32x128xf32>
    %14 = tpu.matmul %13, %0, %cst_12 {dimension_numbers = #tpu.dot_dimension_numbers<[1], [0], [0], [1], [0, 0, 1, 1], [], []>} : vector<32x150xf32>, vector<150x128xf32>, vector<32x128xf32> -> vector<32x128xf32>
    %15 = arith.maximumf %11, %14 : vector<32x128xf32>
    %c0_13 = arith.constant 0 : index
    %c0_14 = arith.constant 0 : index
    %16 = vector.load %arg3[%c0_13, %c0_14] : memref<1x128xf32, #tpu.memory_space<vmem>>, vector<1x128xf32>
    %17 = vector.broadcast %16 : vector<1x128xf32> to vector<32x128xf32>
    %18 = arith.addf %15, %17 : vector<32x128xf32>
    %cst_15 = arith.constant 0.000000e+00 : f32
    %19 = vector.broadcast %cst_15 : f32 to vector<32x128xf32>
    %20 = arith.maximumf %18, %19 : vector<32x128xf32>
    %c0_16 = arith.constant 0 : index
    %c0_17 = arith.constant 0 : index
    %21 = vector.load %arg4[%c0_16, %c0_17] : memref<32x128xf32, #tpu.memory_space<vmem>>, vector<32x128xf32>
    tpu.vector_store %arg4[%c0_16, %c0_17], %20 {strides = array<i32>} : memref<32x128xf32, #tpu.memory_space<vmem>>, vector<32x128xf32>,
    return
  }
  func.func @transform_0(%arg0: i32) -> (i32, i32, i32) {
    %c0_i32 = arith.constant 0 : i32
    %c0_i32_0 = arith.constant 0 : i32
    %c0_i32_1 = arith.constant 0 : i32
    return %c0_i32, %arg0, %c0_i32_0 : i32, i32, i32
  }
  func.func @transform_1(%arg0: i32) -> (i32, i32) {
    %c0_i32 = arith.constant 0 : i32
    %c0_i32_0 = arith.constant 0 : i32
    %c0_i32_1 = arith.constant 0 : i32
    return %c0_i32, %c0_i32_0 : i32, i32
  }
  func.func @transform_2(%arg0: i32) -> (i32, i32) {
    %c0_i32 = arith.constant 0 : i32
    %c0_i32_0 = arith.constant 0 : i32
    %c0_i32_1 = arith.constant 0 : i32
    return %c0_i32, %c0_i32_0 : i32, i32
  }
  func.func @transform_3(%arg0: i32) -> (i32, i32) {
    %c0_i32 = arith.constant 0 : i32
    %c0_i32_0 = arith.constant 0 : i32
    return %arg0, %c0_i32 : i32, i32
  }
}

module attributes {stable_mosaic.version = 11 : i64} {
  func.func @_mlp_kernel(%arg0: i32, %arg1: memref<8x2048xf32, #tpu.memory_space<vmem>>, %arg2: memref<2048x128xf32, #tpu.memory_space<vmem>>, %arg3: memref<1x128xf32, #tpu.memory_space<vmem>>, %arg4: memref<128x128xf32, #tpu.memory_space<vmem>>, %arg5: memref<1x128xf32, #tpu.memory_space<vmem>>, %arg6: memref<128x128xf32, #tpu.memory_space<vmem>>, %arg7: memref<1x128xf32, #tpu.memory_space<vmem>>, %arg8: memref<8x128xf32, #tpu.memory_space<vmem>>) attributes {dimension_semantics = [#tpu.dimension_semantics<parallel>], iteration_bounds = array<i64: 1>, scalar_prefetch = 0 : i64, scratch_operands = 0 : i64, tpu.core_type = #tpu.core_type<tc>, window_params = [{transform_indices = @transform_0, window_bounds = array<i64: 8, 2048>}, {pipeline_mode = #tpu.pipeline_mode<synchronous>, transform_indices = @transform_1, window_bounds = array<i64: 2048, 128>}, {pipeline_mode = #tpu.pipeline_mode<synchronous>, transform_indices = @transform_2, window_bounds = array<i64: 1, 128>}, {pipeline_mode = #tpu.pipeline_mode<synchronous>, transform_indices = @transform_3, window_bounds = array<i64: 128, 128>}, {pipeline_mode = #tpu.pipeline_mode<synchronous>, transform_indices = @transform_4, window_bounds = array<i64: 1, 128>}, {pipeline_mode = #tpu.pipeline_mode<synchronous>, transform_indices = @transform_5, window_bounds = array<i64: 128, 128>}, {pipeline_mode = #tpu.pipeline_mode<synchronous>, transform_indices = @transform_6, window_bounds = array<i64: 1, 128>}, {transform_indices = @transform_7, window_bounds = array<i64: 8, 128>}]} {
    %c0 = arith.constant 0 : index
    %c0_0 = arith.constant 0 : index
    %0 = vector.load %arg1[%c0, %c0_0] : memref<8x2048xf32, #tpu.memory_space<vmem>>, vector<8x2048xf32>
    %c0_1 = arith.constant 0 : index
    %c0_2 = arith.constant 0 : index
    %1 = vector.load %arg2[%c0_1, %c0_2] : memref<2048x128xf32, #tpu.memory_space<vmem>>, vector<2048x128xf32>
    %cst = arith.constant dense<0.000000e+00> : vector<8x128xf32>
    %2 = tpu.matmul %0, %1, %cst {dimension_numbers = #tpu.dot_dimension_numbers<[1], [0], [0], [1], [0, 0, 1, 1], [], []>} : vector<8x2048xf32>, vector<2048x128xf32>, vector<8x128xf32> -> vector<8x128xf32>
    %c0_3 = arith.constant 0 : index
    %c0_4 = arith.constant 0 : index
    %3 = vector.load %arg3[%c0_3, %c0_4] : memref<1x128xf32, #tpu.memory_space<vmem>>, vector<1x128xf32>
    %4 = vector.broadcast %3 : vector<1x128xf32> to vector<8x128xf32>
    %5 = arith.addf %2, %4 : vector<8x128xf32>
    %cst_5 = arith.constant 0.000000e+00 : f32
    %6 = vector.broadcast %cst_5 : f32 to vector<8x128xf32>
    %7 = arith.maximumf %5, %6 : vector<8x128xf32>
    %c0_6 = arith.constant 0 : index
    %c0_7 = arith.constant 0 : index
    %8 = vector.load %arg4[%c0_6, %c0_7] : memref<128x128xf32, #tpu.memory_space<vmem>>, vector<128x128xf32>
    %cst_8 = arith.constant dense<0.000000e+00> : vector<8x128xf32>
    %9 = tpu.matmul %7, %8, %cst_8 {dimension_numbers = #tpu.dot_dimension_numbers<[1], [0], [0], [1], [0, 0, 1, 1], [], []>} : vector<8x128xf32>, vector<128x128xf32>, vector<8x128xf32> -> vector<8x128xf32>
    %c0_9 = arith.constant 0 : index
    %c0_10 = arith.constant 0 : index
    %10 = vector.load %arg5[%c0_9, %c0_10] : memref<1x128xf32, #tpu.memory_space<vmem>>, vector<1x128xf32>
    %11 = vector.broadcast %10 : vector<1x128xf32> to vector<8x128xf32>
    %12 = arith.addf %9, %11 : vector<8x128xf32>
    %cst_11 = arith.constant 0.000000e+00 : f32
    %13 = vector.broadcast %cst_11 : f32 to vector<8x128xf32>
    %14 = arith.maximumf %12, %13 : vector<8x128xf32>
    %c0_12 = arith.constant 0 : index
    %c0_13 = arith.constant 0 : index
    %15 = vector.load %arg6[%c0_12, %c0_13] : memref<128x128xf32, #tpu.memory_space<vmem>>, vector<128x128xf32>
    %cst_14 = arith.constant dense<0.000000e+00> : vector<8x128xf32>
    %16 = tpu.matmul %14, %15, %cst_14 {dimension_numbers = #tpu.dot_dimension_numbers<[1], [0], [0], [1], [0, 0, 1, 1], [], []>} : vector<8x128xf32>, vector<128x128xf32>, vector<8x128xf32> -> vector<8x128xf32>
    %c0_15 = arith.constant 0 : index
    %c0_16 = arith.constant 0 : index
    %17 = vector.load %arg7[%c0_15, %c0_16] : memref<1x128xf32, #tpu.memory_space<vmem>>, vector<1x128xf32>
    %18 = vector.broadcast %17 : vector<1x128xf32> to vector<8x128xf32>
    %19 = arith.addf %16, %18 : vector<8x128xf32>
    %c0_17 = arith.constant 0 : index
    %c0_18 = arith.constant 0 : index
    %20 = vector.load %arg8[%c0_17, %c0_18] : memref<8x128xf32, #tpu.memory_space<vmem>>, vector<8x128xf32>
    tpu.vector_store %arg8[%c0_17, %c0_18], %19 {strides = array<i32>} : memref<8x128xf32, #tpu.memory_space<vmem>>, vector<8x128xf32>,
    return
  }
  func.func @transform_0(%arg0: i32) -> (i32, i32) {
    %c0_i32 = arith.constant 0 : i32
    %c0_i32_0 = arith.constant 0 : i32
    return %arg0, %c0_i32 : i32, i32
  }
  func.func @transform_1(%arg0: i32) -> (i32, i32) {
    %c0_i32 = arith.constant 0 : i32
    %c0_i32_0 = arith.constant 0 : i32
    %c0_i32_1 = arith.constant 0 : i32
    return %c0_i32, %c0_i32_0 : i32, i32
  }
  func.func @transform_2(%arg0: i32) -> (i32, i32) {
    %c0_i32 = arith.constant 0 : i32
    %c0_i32_0 = arith.constant 0 : i32
    %c0_i32_1 = arith.constant 0 : i32
    return %c0_i32, %c0_i32_0 : i32, i32
  }
  func.func @transform_3(%arg0: i32) -> (i32, i32) {
    %c0_i32 = arith.constant 0 : i32
    %c0_i32_0 = arith.constant 0 : i32
    %c0_i32_1 = arith.constant 0 : i32
    return %c0_i32, %c0_i32_0 : i32, i32
  }
  func.func @transform_4(%arg0: i32) -> (i32, i32) {
    %c0_i32 = arith.constant 0 : i32
    %c0_i32_0 = arith.constant 0 : i32
    %c0_i32_1 = arith.constant 0 : i32
    return %c0_i32, %c0_i32_0 : i32, i32
  }
  func.func @transform_5(%arg0: i32) -> (i32, i32) {
    %c0_i32 = arith.constant 0 : i32
    %c0_i32_0 = arith.constant 0 : i32
    %c0_i32_1 = arith.constant 0 : i32
    return %c0_i32, %c0_i32_0 : i32, i32
  }
  func.func @transform_6(%arg0: i32) -> (i32, i32) {
    %c0_i32 = arith.constant 0 : i32
    %c0_i32_0 = arith.constant 0 : i32
    %c0_i32_1 = arith.constant 0 : i32
    return %c0_i32, %c0_i32_0 : i32, i32
  }
  func.func @transform_7(%arg0: i32) -> (i32, i32) {
    %c0_i32 = arith.constant 0 : i32
    %c0_i32_0 = arith.constant 0 : i32
    return %arg0, %c0_i32 : i32, i32
  }
}

</mosaic_0001>

<llo_original>
// kernel: lenet_forward.3
$region0: #{lenet_forward.3}
  #allocation0 [shape = 'u32[]', space=smem, size = 0x4, offset = 0x4, fixed_abs, tag = 'smem constant byte address 0x4 - core index']
  #allocation1 [shape = 'u32[144,128]{1,0:T(1,128)}', space=vmem, size = 0x12000, scoped, tag = 'internal scratch']
  %s0 = inlined_call_operand.vmem [shape: f32[4,288,25], index: 0, kind: input, shape index: {}]
  %s1 = inlined_call_operand.vmem [shape: f32[25,128], index: 1, kind: input, shape index: {}]
  %s2 = inlined_call_operand.vmem [shape: f32[1,128], index: 2, kind: input, shape index: {}]
  %s3 = inlined_call_operand.vmem [shape: f32[288,128], index: 3, kind: output, shape index: {}]
  %s4 = sld [smem:[#allocation0]]
  $region22: #{lenet_forward.3} parent=0
    _
  %s6 = ssub.s32 1, %s4
  %s7 = scalar_select 0, %s6, %s4
  // Predicated region
  $region2: #{lenet_forward.3} parent=0 // pred_check
    _
  $region3: #{lenet_forward.3} parent=0 // pred_check_branch
    %9 = sbr.rel (0) target = $region5
  $region4: #{lenet_forward.3} parent=0 // pred_region
    _
  $region5: #{lenet_forward.3} parent=0 // pred_fallthru
    _
  // Predicated region
  $region6: #{lenet_forward.3} parent=0 // pred_check
    _
  $region7: #{lenet_forward.3} parent=0 // pred_check_branch
    %11 = sbr.rel (0) target = $region9
  $region8: #{lenet_forward.3} parent=0 // pred_region
    _
  $region9: #{lenet_forward.3} parent=0 // pred_fallthru
    _
  // Predicated region
  $region10: #{lenet_forward.3} parent=0 // pred_check
    _
  $region11: #{lenet_forward.3} parent=0 // pred_check_branch
    %13 = sbr.rel (0) target = $region13
  $region12: #{lenet_forward.3} parent=0 // pred_region
    _
  $region13: #{lenet_forward.3} parent=0 // pred_fallthru
    _
  %v14 = vld [vmem:[%s1] sm:$0xff]
  %v15 = vld [vmem:[%s1 + $0x8] sm:$0xff]
  %v16 = vld [vmem:[%s1 + $0x10] sm:$0xff]
  %v17 = vld [vmem:[%s1 + $0x18] sm:$0x1]
  %v18 = vld [vmem:[%s0] sm:$0xff]
  %v19 = vld [vmem:[%s0 + $0x8] sm:$0xff]
  %v20 = vld [vmem:[%s0 + $0x10] sm:$0xff]
  %v21 = vld [vmem:[%s0 + $0x18] sm:$0xff]
  %v22 = vld [vmem:[%s0 + $0x20] sm:$0xff]
  %v23 = vld [vmem:[%s0 + $0x28] sm:$0xff]
  %v24 = vld [vmem:[%s0 + $0x30] sm:$0xff]
  %v25 = vld [vmem:[%s0 + $0x38] sm:$0xff]
  %v26 = vld [vmem:[%s0 + $0x40] sm:$0xff]
  %v27 = vld [vmem:[%s0 + $0x48] sm:$0xff]
  %v28 = vld [vmem:[%s0 + $0x50] sm:$0xff]
  %v29 = vld [vmem:[%s0 + $0x58] sm:$0xff]
  %v30 = vld [vmem:[%s0 + $0x60] sm:$0xff]
  %v31 = vld [vmem:[%s0 + $0x68] sm:$0xff]
  %v32 = vld [vmem:[%s0 + $0x70] sm:$0xff]
  %v33 = vld [vmem:[%s0 + $0x78] sm:$0xff]
  %v34 = vld [vmem:[%s0 + $0x80] sm:$0xff]
  %v35 = vld [vmem:[%s0 + $0x88] sm:$0xff]
  %v36 = vld [vmem:[%s0 + $0x90] sm:$0xff]
  %v37 = vld [vmem:[%s0 + $0x98] sm:$0xff]
  %v38 = vld [vmem:[%s0 + $0xa0] sm:$0xff]
  %v39 = vld [vmem:[%s0 + $0xa8] sm:$0xff]
  %v40 = vld [vmem:[%s0 + $0xb0] sm:$0xff]
  %v41 = vld [vmem:[%s0 + $0xb8] sm:$0xff]
  %v42 = vld [vmem:[%s0 + $0xc0] sm:$0xff]
  %v43 = vld [vmem:[%s0 + $0xc8] sm:$0xff]
  %v44 = vld [vmem:[%s0 + $0xd0] sm:$0xff]
  %v45 = vld [vmem:[%s0 + $0xd8] sm:$0xff]
  %v46 = vld [vmem:[%s0 + $0xe0] sm:$0xff]
  %v47 = vld [vmem:[%s0 + $0xe8] sm:$0xff]
  %v48 = vld [vmem:[%s0 + $0xf0] sm:$0xff]
  %v49 = vld [vmem:[%s0 + $0xf8] sm:$0xff]
  %v50 = vld [vmem:[%s0 + $0x100] sm:$0xff]
  %v51 = vld [vmem:[%s0 + $0x108] sm:$0xff]
  %v52 = vld [vmem:[%s0 + $0x110] sm:$0xff]
  %v53 = vld [vmem:[%s0 + $0x118] sm:$0xff]
  %vm54 = vcmask 203776
  %v56 = vsel %vm54, %v18, 0
  %v59 = vsel %vm54, %v19, 0
  %v62 = vsel %vm54, %v20, 0
  %v65 = vsel %vm54, %v21, 0
  %v68 = vsel %vm54, %v22, 0
  %v71 = vsel %vm54, %v23, 0
  %v74 = vsel %vm54, %v24, 0
  %v77 = vsel %vm54, %v25, 0
  %v80 = vsel %vm54, %v26, 0
  %v83 = vsel %vm54, %v27, 0
  %v86 = vsel %vm54, %v28, 0
  %v89 = vsel %vm54, %v29, 0
  %v92 = vsel %vm54, %v30, 0
  %v95 = vsel %vm54, %v31, 0
  %v98 = vsel %vm54, %v32, 0
  %v101 = vsel %vm54, %v33, 0
  %v104 = vsel %vm54, %v34, 0
  %v107 = vsel %vm54, %v35, 0
  %v110 = vsel %vm54, %v36, 0
  %v113 = vsel %vm54, %v37, 0
  %v116 = vsel %vm54, %v38, 0
  %v119 = vsel %vm54, %v39, 0
  %v122 = vsel %vm54, %v40, 0
  %v125 = vsel %vm54, %v41, 0
  %v128 = vsel %vm54, %v42, 0
  %v131 = vsel %vm54, %v43, 0
  %v134 = vsel %vm54, %v44, 0
  %v137 = vsel %vm54, %v45, 0
  %v140 = vsel %vm54, %v46, 0
  %v143 = vsel %vm54, %v47, 0
  %v146 = vsel %vm54, %v48, 0
  %v149 = vsel %vm54, %v49, 0
  %v152 = vsel %vm54, %v50, 0
  %v155 = vsel %vm54, %v51, 0
  %v158 = vsel %vm54, %v52, 0
  %v161 = vsel %vm54, %v53, 0
  %vm163 = vcmask 1040384
  %v165 = vsel %vm163, %v17, 0
  %167 = vmatprep.subr.mxu0 0.0
  %168 = vmatpush1.msra.mxu0 %v14
  %169 = vmatprep.subr.mxu0 0.0
  %170 = vmatpush1.msra.mxu0 %v15
  %171 = vmatprep.subr.mxu0 0.0
  %172 = vmatpush1.msra.mxu0 %v16
  %173 = vmatprep.subr.mxu0 0.0
  %174 = vmatpush1.msra.mxu0 %v165
  %175 = vmatprep.subr.mxu0 0.0
  %176 = vmatpush1.msra.mxu0 0.0
  %177 = vmatprep.subr.mxu0 0.0
  %178 = vmatpush1.msra.mxu0 0.0
  %179 = vmatprep.subr.mxu0 0.0
  %180 = vmatpush1.msra.mxu0 0.0
  %181 = vmatprep.subr.mxu0 0.0
  %182 = vmatpush1.msra.mxu0 0.0
  %183 = vmatprep.subr.mxu0 0.0
  %184 = vmatpush1.msra.mxu0 0.0
  %185 = vmatprep.subr.mxu0 0.0
  %186 = vmatpush1.msra.mxu0 0.0
  %187 = vmatprep.subr.mxu0 0.0
  %188 = vmatpush1.msra.mxu0 0.0
  %189 = vmatprep.subr.mxu0 0.0
  %190 = vmatpush1.msra.mxu0 0.0
  %191 = vmatprep.subr.mxu0 0.0
  %192 = vmatpush1.msra.mxu0 0.0
  %193 = vmatprep.subr.mxu0 0.0
  %194 = vmatpush1.msra.mxu0 0.0
  %195 = vmatprep.subr.mxu0 0.0
  %196 = vmatpush1.msra.mxu0 0.0
  %197 = vmatprep.subr.mxu0 0.0
  %198 = vmatpush1.msra.mxu0 0.0
  %199 = vmatprep.subr.mxu0 0.0
  %200 = vmatpush1.msra.mxu0 0.0
  %201 = vmatprep.subr.mxu0 0.0
  %202 = vmatpush1.msra.mxu0 0.0
  %203 = vmatprep.subr.mxu0 0.0
  %204 = vmatpush1.msra.mxu0 0.0
  %205 = vmatprep.subr.mxu0 0.0
  %206 = vmatpush1.msra.mxu0 0.0
  %207 = vmatprep.subr.mxu0 0.0
  %208 = vmatpush1.msra.mxu0 0.0
  %209 = vmatprep.subr.mxu0 0.0
  %210 = vmatpush1.msra.mxu0 0.0
  %211 = vmatprep.subr.mxu0 0.0
  %212 = vmatpush1.msra.mxu0 0.0
  %213 = vmatprep.subr.mxu0 0.0
  %214 = vmatpush1.msra.mxu0 0.0
  %215 = vmatprep.subr.mxu0 0.0
  %216 = vmatpush1.msra.mxu0 0.0
  %217 = vmatprep.subr.mxu0 0.0
  %218 = vmatpush1.msra.mxu0 0.0
  %219 = vmatprep.subr.mxu0 0.0
  %220 = vmatpush1.msra.mxu0 0.0
  %221 = vmatprep.subr.mxu0 0.0
  %222 = vmatpush1.msra.mxu0 0.0
  %223 = vmatprep.subr.mxu0 0.0
  %224 = vmatpush1.msra.mxu0 0.0
  %225 = vmatprep.subr.mxu0 0.0
  %226 = vmatpush1.msra.mxu0 0.0
  %227 = vmatprep.subr.mxu0 0.0
  %228 = vmatpush1.msra.mxu0 0.0
  %229 = vmatprep.subr.mxu0 0.0
  %230 = vmatpush1.msra.mxu0 0.0
  %231 = vmatprep.mubr.f32.mxu0 0.0
  %232 = vmatmul.mubr.f32.gmra.mrb[0].mxu0 %v56
  %v233 = vpop.f32.mrb[0].mxu0
  %v234 = vadd.f32 0.0, %v233
  %v235 = vpop.f32.mrb[0].mxu0
  %236 = vmatprep.mubr.f32.mxu0 0.0
  %237 = vmatmul.mubr.f32.gmra.mrb[0].mxu0 %v59
  %v238 = vpop.f32.mrb[0].mxu0
  %v239 = vadd.f32 0.0, %v238
  %v240 = vpop.f32.mrb[0].mxu0
  %241 = vmatprep.mubr.f32.mxu0 0.0
  %242 = vmatmul.mubr.f32.gmra.mrb[0].mxu0 %v62
  %v243 = vpop.f32.mrb[0].mxu0
  %v244 = vadd.f32 0.0, %v243
  %v245 = vpop.f32.mrb[0].mxu0
  %246 = vmatprep.mubr.f32.mxu0 0.0
  %247 = vmatmul.mubr.f32.gmra.mrb[0].mxu0 %v65
  %v248 = vpop.f32.mrb[0].mxu0
  %v249 = vadd.f32 0.0, %v248
  %v250 = vpop.f32.mrb[0].mxu0
  %251 = vmatprep.mubr.f32.mxu0 0.0
  %252 = vmatmul.mubr.f32.gmra.mrb[0].mxu0 %v68
  %v253 = vpop.f32.mrb[0].mxu0
  %v254 = vadd.f32 0.0, %v253
  %v255 = vpop.f32.mrb[0].mxu0
  %256 = vmatprep.mubr.f32.mxu0 0.0
  %257 = vmatmul.mubr.f32.gmra.mrb[0].mxu0 %v71
  %v258 = vpop.f32.mrb[0].mxu0
  %v259 = vadd.f32 0.0, %v258
  %v260 = vpop.f32.mrb[0].mxu0
  %261 = vmatprep.mubr.f32.mxu0 0.0
  %262 = vmatmul.mubr.f32.gmra.mrb[0].mxu0 %v74
  %v263 = vpop.f32.mrb[0].mxu0
  %v264 = vadd.f32 0.0, %v263
  %v265 = vpop.f32.mrb[0].mxu0
  %266 = vmatprep.mubr.f32.mxu0 0.0
  %267 = vmatmul.mubr.f32.gmra.mrb[0].mxu0 %v77
  %v268 = vpop.f32.mrb[0].mxu0
  %v269 = vadd.f32 0.0, %v268
  %v270 = vpop.f32.mrb[0].mxu0
  %271 = vmatprep.mubr.f32.mxu0 0.0
  %272 = vmatmul.mubr.f32.gmra.mrb[0].mxu0 %v80
  %v273 = vpop.f32.mrb[0].mxu0
  %v274 = vadd.f32 0.0, %v273
  %v275 = vpop.f32.mrb[0].mxu0
  %276 = vmatprep.mubr.f32.mxu0 0.0
  %277 = vmatmul.mubr.f32.gmra.mrb[0].mxu0 %v83
  %v278 = vpop.f32.mrb[0].mxu0
  %v279 = vadd.f32 0.0, %v278
  %v280 = vpop.f32.mrb[0].mxu0
  %281 = vmatprep.mubr.f32.mxu0 0.0
  %282 = vmatmul.mubr.f32.gmra.mrb[0].mxu0 %v86
  %v283 = vpop.f32.mrb[0].mxu0
  %v284 = vadd.f32 0.0, %v283
  %v285 = vpop.f32.mrb[0].mxu0
  %286 = vmatprep.mubr.f32.mxu0 0.0
  %287 = vmatmul.mubr.f32.gmra.mrb[0].mxu0 %v89
  %v288 = vpop.f32.mrb[0].mxu0
  %v289 = vadd.f32 0.0, %v288
  %v290 = vpop.f32.mrb[0].mxu0
  %291 = vmatprep.mubr.f32.mxu0 0.0
  %292 = vmatmul.mubr.f32.gmra.mrb[0].mxu0 %v92
  %v293 = vpop.f32.mrb[0].mxu0
  %v294 = vadd.f32 0.0, %v293
  %v295 = vpop.f32.mrb[0].mxu0
  %296 = vmatprep.mubr.f32.mxu0 0.0
  %297 = vmatmul.mubr.f32.gmra.mrb[0].mxu0 %v95
  %v298 = vpop.f32.mrb[0].mxu0
  %v299 = vadd.f32 0.0, %v298
  %v300 = vpop.f32.mrb[0].mxu0
  %301 = vmatprep.mubr.f32.mxu0 0.0
  %302 = vmatmul.mubr.f32.gmra.mrb[0].mxu0 %v98
  %v303 = vpop.f32.mrb[0].mxu0
  %v304 = vadd.f32 0.0, %v303
  %v305 = vpop.f32.mrb[0].mxu0
  %306 = vmatprep.mubr.f32.mxu0 0.0
  %307 = vmatmul.mubr.f32.gmra.mrb[0].mxu0 %v101
  %v308 = vpop.f32.mrb[0].mxu0
  %v309 = vadd.f32 0.0, %v308
  %v310 = vpop.f32.mrb[0].mxu0
  %311 = vmatprep.mubr.f32.mxu0 0.0
  %312 = vmatmul.mubr.f32.gmra.mrb[0].mxu0 %v104
  %v313 = vpop.f32.mrb[0].mxu0
  %v314 = vadd.f32 0.0, %v313
  %v315 = vpop.f32.mrb[0].mxu0
  %316 = vmatprep.mubr.f32.mxu0 0.0
  %317 = vmatmul.mubr.f32.gmra.mrb[0].mxu0 %v107
  %v318 = vpop.f32.mrb[0].mxu0
  %v319 = vadd.f32 0.0, %v318
  %v320 = vpop.f32.mrb[0].mxu0
  %321 = vmatprep.mubr.f32.mxu0 0.0
  %322 = vmatmul.mubr.f32.gmra.mrb[0].mxu0 %v110
  %v323 = vpop.f32.mrb[0].mxu0
  %v324 = vadd.f32 0.0, %v323
  %v325 = vpop.f32.mrb[0].mxu0
  %326 = vmatprep.mubr.f32.mxu0 0.0
  %327 = vmatmul.mubr.f32.gmra.mrb[0].mxu0 %v113
  %v328 = vpop.f32.mrb[0].mxu0
  %v329 = vadd.f32 0.0, %v328
  %v330 = vpop.f32.mrb[0].mxu0
  %331 = vmatprep.mubr.f32.mxu0 0.0
  %332 = vmatmul.mubr.f32.gmra.mrb[0].mxu0 %v116
  %v333 = vpop.f32.mrb[0].mxu0
  %v334 = vadd.f32 0.0, %v333
  %v335 = vpop.f32.mrb[0].mxu0
  %336 = vmatprep.mubr.f32.mxu0 0.0
  %337 = vmatmul.mubr.f32.gmra.mrb[0].mxu0 %v119
  %v338 = vpop.f32.mrb[0].mxu0
  %v339 = vadd.f32 0.0, %v338
  %v340 = vpop.f32.mrb[0].mxu0
  %341 = vmatprep.mubr.f32.mxu0 0.0
  %342 = vmatmul.mubr.f32.gmra.mrb[0].mxu0 %v122
  %v343 = vpop.f32.mrb[0].mxu0
  %v344 = vadd.f32 0.0, %v343
  %v345 = vpop.f32.mrb[0].mxu0
  %346 = vmatprep.mubr.f32.mxu0 0.0
  %347 = vmatmul.mubr.f32.gmra.mrb[0].mxu0 %v125
  %v348 = vpop.f32.mrb[0].mxu0
  %v349 = vadd.f32 0.0, %v348
  %v350 = vpop.f32.mrb[0].mxu0
  %351 = vmatprep.mubr.f32.mxu0 0.0
  %352 = vmatmul.mubr.f32.gmra.mrb[0].mxu0 %v128
  %v353 = vpop.f32.mrb[0].mxu0
  %v354 = vadd.f32 0.0, %v353
  %v355 = vpop.f32.mrb[0].mxu0
  %356 = vmatprep.mubr.f32.mxu0 0.0
  %357 = vmatmul.mubr.f32.gmra.mrb[0].mxu0 %v131
  %v358 = vpop.f32.mrb[0].mxu0
  %v359 = vadd.f32 0.0, %v358
  %v360 = vpop.f32.mrb[0].mxu0
  %361 = vmatprep.mubr.f32.mxu0 0.0
  %362 = vmatmul.mubr.f32.gmra.mrb[0].mxu0 %v134
  %v363 = vpop.f32.mrb[0].mxu0
  %v364 = vadd.f32 0.0, %v363
  %v365 = vpop.f32.mrb[0].mxu0
  %366 = vmatprep.mubr.f32.mxu0 0.0
  %367 = vmatmul.mubr.f32.gmra.mrb[0].mxu0 %v137
  %v368 = vpop.f32.mrb[0].mxu0
  %v369 = vadd.f32 0.0, %v368
  %v370 = vpop.f32.mrb[0].mxu0
  %371 = vmatprep.mubr.f32.mxu0 0.0
  %372 = vmatmul.mubr.f32.gmra.mrb[0].mxu0 %v140
  %v373 = vpop.f32.mrb[0].mxu0
  %v374 = vadd.f32 0.0, %v373
  %v375 = vpop.f32.mrb[0].mxu0
  %376 = vmatprep.mubr.f32.mxu0 0.0
  %377 = vmatmul.mubr.f32.gmra.mrb[0].mxu0 %v143
  %v378 = vpop.f32.mrb[0].mxu0
  %v379 = vadd.f32 0.0, %v378
  %v380 = vpop.f32.mrb[0].mxu0
  %381 = vmatprep.mubr.f32.mxu0 0.0
  %382 = vmatmul.mubr.f32.gmra.mrb[0].mxu0 %v146
  %v383 = vpop.f32.mrb[0].mxu0
  %v384 = vadd.f32 0.0, %v383
  %v385 = vpop.f32.mrb[0].mxu0
  %386 = vmatprep.mubr.f32.mxu0 0.0
  %387 = vmatmul.mubr.f32.gmra.mrb[0].mxu0 %v149
  %v388 = vpop.f32.mrb[0].mxu0
  %v389 = vadd.f32 0.0, %v388
  %v390 = vpop.f32.mrb[0].mxu0
  %391 = vmatprep.mubr.f32.mxu0 0.0
  %392 = vmatmul.mubr.f32.gmra.mrb[0].mxu0 %v152
  %v393 = vpop.f32.mrb[0].mxu0
  %v394 = vadd.f32 0.0, %v393
  %v395 = vpop.f32.mrb[0].mxu0
  %396 = vmatprep.mubr.f32.mxu0 0.0
  %397 = vmatmul.mubr.f32.gmra.mrb[0].mxu0 %v155
  %v398 = vpop.f32.mrb[0].mxu0
  %v399 = vadd.f32 0.0, %v398
  %v400 = vpop.f32.mrb[0].mxu0
  %401 = vmatprep.mubr.f32.mxu0 0.0
  %402 = vmatmul.mubr.f32.gmra.mrb[0].mxu0 %v158
  %v403 = vpop.f32.mrb[0].mxu0
  %v404 = vadd.f32 0.0, %v403
  %v405 = vpop.f32.mrb[0].mxu0
  %406 = vmatprep.mubr.f32.mxu0 0.0
  %407 = vmatmul.mubr.f32.gmra.mrb[0].mxu0 %v161
  %v408 = vpop.f32.mrb[0].mxu0
  %v409 = vadd.f32 0.0, %v408
  %v410 = vpop.f32.mrb[0].mxu0
  %411 = vdwg.mxu0
  %s412 = scalar_lea.vmem %s0, 288
  %v413 = vld [vmem:[%s412] sm:$0xff]
  %v414 = vld [vmem:[%s412 + $0x8] sm:$0xff]
  %v415 = vld [vmem:[%s412 + $0x10] sm:$0xff]
  %v416 = vld [vmem:[%s412 + $0x18] sm:$0xff]
  %v417 = vld [vmem:[%s412 + $0x20] sm:$0xff]
  %v418 = vld [vmem:[%s412 + $0x28] sm:$0xff]
  %v419 = vld [vmem:[%s412 + $0x30] sm:$0xff]
  %v420 = vld [vmem:[%s412 + $0x38] sm:$0xff]
  %v421 = vld [vmem:[%s412 + $0x40] sm:$0xff]
  %v422 = vld [vmem:[%s412 + $0x48] sm:$0xff]
  %v423 = vld [vmem:[%s412 + $0x50] sm:$0xff]
  %v424 = vld [vmem:[%s412 + $0x58] sm:$0xff]
  %v425 = vld [vmem:[%s412 + $0x60] sm:$0xff]
  %v426 = vld [vmem:[%s412 + $0x68] sm:$0xff]
  %v427 = vld [vmem:[%s412 + $0x70] sm:$0xff]
  %v428 = vld [vmem:[%s412 + $0x78] sm:$0xff]
  %v429 = vld [vmem:[%s412 + $0x80] sm:$0xff]
  %v430 = vld [vmem:[%s412 + $0x88] sm:$0xff]
  %v431 = vld [vmem:[%s412 + $0x90] sm:$0xff]
  %v432 = vld [vmem:[%s412 + $0x98] sm:$0xff]
  %v433 = vld [vmem:[%s412 + $0xa0] sm:$0xff]
  %v434 = vld [vmem:[%s412 + $0xa8] sm:$0xff]
  %v435 = vld [vmem:[%s412 + $0xb0] sm:$0xff]
  %v436 = vld [vmem:[%s412 + $0xb8] sm:$0xff]
  %v437 = vld [vmem:[%s412 + $0xc0] sm:$0xff]
  %v438 = vld [vmem:[%s412 + $0xc8] sm:$0xff]
  %v439 = vld [vmem:[%s412 + $0xd0] sm:$0xff]
  %v440 = vld [vmem:[%s412 + $0xd8] sm:$0xff]
  %v441 = vld [vmem:[%s412 + $0xe0] sm:$0xff]
  %v442 = vld [vmem:[%s412 + $0xe8] sm:$0xff]
  %v443 = vld [vmem:[%s412 + $0xf0] sm:$0xff]
  %v444 = vld [vmem:[%s412 + $0xf8] sm:$0xff]
  %v445 = vld [vmem:[%s412 + $0x100] sm:$0xff]
  %v446 = vld [vmem:[%s412 + $0x108] sm:$0xff]
  %v447 = vld [vmem:[%s412 + $0x110] sm:$0xff]
  %v448 = vld [vmem:[%s412 + $0x118] sm:$0xff]
  %v450 = vsel %vm54, %v413, 0
  %v453 = vsel %vm54, %v414, 0
  %v456 = vsel %vm54, %v415, 0
  %v459 = vsel %vm54, %v416, 0
  %v462 = vsel %vm54, %v417, 0
  %v465 = vsel %vm54, %v418, 0
  %v468 = vsel %vm54, %v419, 0
  %v471 = vsel %vm54, %v420, 0
  %v474 = vsel %vm54, %v421, 0
  %v477 = vsel %vm54, %v422, 0
  %v480 = vsel %vm54, %v423, 0
  %v483 = vsel %vm54, %v424, 0
  %v486 = vsel %vm54, %v425, 0
  %v489 = vsel %vm54, %v426, 0
  %v492 = vsel %vm54, %v427, 0
  %v495 = vsel %vm54, %v428, 0
  %v498 = vsel %vm54, %v429, 0
  %v501 = vsel %vm54, %v430, 0
  %v504 = vsel %vm54, %v431, 0
  %v507 = vsel %vm54, %v432, 0
  %v510 = vsel %vm54, %v433, 0
  %v513 = vsel %vm54, %v434, 0
  %v516 = vsel %vm54, %v435, 0
  %v519 = vsel %vm54, %v436, 0
  %v522 = vsel %vm54, %v437, 0
  %v525 = vsel %vm54, %v438, 0
  %v528 = vsel %vm54, %v439, 0
  %v531 = vsel %vm54, %v440, 0
  %v534 = vsel %vm54, %v441, 0
  %v537 = vsel %vm54, %v442, 0
  %v540 = vsel %vm54, %v443, 0
  %v543 = vsel %vm54, %v444, 0
  %v546 = vsel %vm54, %v445, 0
  %v549 = vsel %vm54, %v446, 0
  %v552 = vsel %vm54, %v447, 0
  %v555 = vsel %vm54, %v448, 0
  %557 = vmatprep.subr.mxu0 0.0
  %558 = vmatpush1.msra.mxu0 %v14
  %559 = vmatprep.subr.mxu0 0.0
  %560 = vmatpush1.msra.mxu0 %v15
  %561 = vmatprep.subr.mxu0 0.0
  %562 = vmatpush1.msra.mxu0 %v16
  %563 = vmatprep.subr.mxu0 0.0
  %564 = vmatpush1.msra.mxu0 %v165
  %565 = vmatprep.subr.mxu0 0.0
  %566 = vmatpush1.msra.mxu0 0.0
  %567 = vmatprep.subr.mxu0 0.0
  %568 = vmatpush1.msra.mxu0 0.0
  %569 = vmatprep.subr.mxu0 0.0
  %570 = vmatpush1.msra.mxu0 0.0
  %571 = vmatprep.subr.mxu0 0.0
  %572 = vmatpush1.msra.mxu0 0.0
  %573 = vmatprep.subr.mxu0 0.0
  %574 = vmatpush1.msra.mxu0 0.0
  %575 = vmatprep.subr.mxu0 0.0
  %576 = vmatpush1.msra.mxu0 0.0
  %577 = vmatprep.subr.mxu0 0.0
  %578 = vmatpush1.msra.mxu0 0.0
  %579 = vmatprep.subr.mxu0 0.0
  %580 = vmatpush1.msra.mxu0 0.0
  %581 = vmatprep.subr.mxu0 0.0
  %582 = vmatpush1.msra.mxu0 0.0
  %583 = vmatprep.subr.mxu0 0.0
  %584 = vmatpush1.msra.mxu0 0.0
  %585 = vmatprep.subr.mxu0 0.0
  %586 = vmatpush1.msra.mxu0 0.0
  %587 = vmatprep.subr.mxu0 0.0
  %588 = vmatpush1.msra.mxu0 0.0
  %589 = vmatprep.subr.mxu0 0.0
  %590 = vmatpush1.msra.mxu0 0.0
  %591 = vmatprep.subr.mxu0 0.0
  %592 = vmatpush1.msra.mxu0 0.0
  %593 = vmatprep.subr.mxu0 0.0
  %594 = vmatpush1.msra.mxu0 0.0
  %595 = vmatprep.subr.mxu0 0.0
  %596 = vmatpush1.msra.mxu0 0.0
  %597 = vmatprep.subr.mxu0 0.0
  %598 = vmatpush1.msra.mxu0 0.0
  %599 = vmatprep.subr.mxu0 0.0
  %600 = vmatpush1.msra.mxu0 0.0
  %601 = vmatprep.subr.mxu0 0.0
  %602 = vmatpush1.msra.mxu0 0.0
  %603 = vmatprep.subr.mxu0 0.0
  %604 = vmatpush1.msra.mxu0 0.0
  %605 = vmatprep.subr.mxu0 0.0
  %606 = vmatpush1.msra.mxu0 0.0
  %607 = vmatprep.subr.mxu0 0.0
  %608 = vmatpush1.msra.mxu0 0.0
  %609 = vmatprep.subr.mxu0 0.0
  %610 = vmatpush1.msra.mxu0 0.0
  %611 = vmatprep.subr.mxu0 0.0
  %612 = vmatpush1.msra.mxu0 0.0
  %613 = vmatprep.subr.mxu0 0.0
  %614 = vmatpush1.msra.mxu0 0.0
  %615 = vmatprep.subr.mxu0 0.0
  %616 = vmatpush1.msra.mxu0 0.0
  %617 = vmatprep.subr.mxu0 0.0
  %618 = vmatpush1.msra.mxu0 0.0
  %619 = vmatprep.subr.mxu0 0.0
  %620 = vmatpush1.msra.mxu0 0.0
  %621 = vmatprep.mubr.f32.mxu0 0.0
  %622 = vmatmul.mubr.f32.gmra.mrb[0].mxu0 %v450
  %v623 = vpop.f32.mrb[0].mxu0
  %v624 = vadd.f32 0.0, %v623
  %v625 = vpop.f32.mrb[0].mxu0
  %626 = vmatprep.mubr.f32.mxu0 0.0
  %627 = vmatmul.mubr.f32.gmra.mrb[0].mxu0 %v453
  %v628 = vpop.f32.mrb[0].mxu0
  %v629 = vadd.f32 0.0, %v628
  %v630 = vpop.f32.mrb[0].mxu0
  %631 = vmatprep.mubr.f32.mxu0 0.0
  %632 = vmatmul.mubr.f32.gmra.mrb[0].mxu0 %v456
  %v633 = vpop.f32.mrb[0].mxu0
  %v634 = vadd.f32 0.0, %v633
  %v635 = vpop.f32.mrb[0].mxu0
  %636 = vmatprep.mubr.f32.mxu0 0.0
  %637 = vmatmul.mubr.f32.gmra.mrb[0].mxu0 %v459
  %v638 = vpop.f32.mrb[0].mxu0
  %v639 = vadd.f32 0.0, %v638
  %v640 = vpop.f32.mrb[0].mxu0
  %641 = vmatprep.mubr.f32.mxu0 0.0
  %642 = vmatmul.mubr.f32.gmra.mrb[0].mxu0 %v462
  %v643 = vpop.f32.mrb[0].mxu0
  %v644 = vadd.f32 0.0, %v643
  %v645 = vpop.f32.mrb[0].mxu0
  %646 = vmatprep.mubr.f32.mxu0 0.0
  %647 = vmatmul.mubr.f32.gmra.mrb[0].mxu0 %v465
  %v648 = vpop.f32.mrb[0].mxu0
  %v649 = vadd.f32 0.0, %v648
  %v650 = vpop.f32.mrb[0].mxu0
  %651 = vmatprep.mubr.f32.mxu0 0.0
  %652 = vmatmul.mubr.f32.gmra.mrb[0].mxu0 %v468
  %v653 = vpop.f32.mrb[0].mxu0
  %v654 = vadd.f32 0.0, %v653
  %v655 = vpop.f32.mrb[0].mxu0
  %656 = vmatprep.mubr.f32.mxu0 0.0
  %657 = vmatmul.mubr.f32.gmra.mrb[0].mxu0 %v471
  %v658 = vpop.f32.mrb[0].mxu0
  %v659 = vadd.f32 0.0, %v658
  %v660 = vpop.f32.mrb[0].mxu0
  %661 = vmatprep.mubr.f32.mxu0 0.0
  %662 = vmatmul.mubr.f32.gmra.mrb[0].mxu0 %v474
  %v663 = vpop.f32.mrb[0].mxu0
  %v664 = vadd.f32 0.0, %v663
  %v665 = vpop.f32.mrb[0].mxu0
  %666 = vmatprep.mubr.f32.mxu0 0.0
  %667 = vmatmul.mubr.f32.gmra.mrb[0].mxu0 %v477
  %v668 = vpop.f32.mrb[0].mxu0
  %v669 = vadd.f32 0.0, %v668
  %v670 = vpop.f32.mrb[0].mxu0
  %671 = vmatprep.mubr.f32.mxu0 0.0
  %672 = vmatmul.mubr.f32.gmra.mrb[0].mxu0 %v480
  %v673 = vpop.f32.mrb[0].mxu0
  %v674 = vadd.f32 0.0, %v673
  %v675 = vpop.f32.mrb[0].mxu0
  %676 = vmatprep.mubr.f32.mxu0 0.0
  %677 = vmatmul.mubr.f32.gmra.mrb[0].mxu0 %v483
  %v678 = vpop.f32.mrb[0].mxu0
  %v679 = vadd.f32 0.0, %v678
  %v680 = vpop.f32.mrb[0].mxu0
  %681 = vmatprep.mubr.f32.mxu0 0.0
  %682 = vmatmul.mubr.f32.gmra.mrb[0].mxu0 %v486
  %v683 = vpop.f32.mrb[0].mxu0
  %v684 = vadd.f32 0.0, %v683
  %v685 = vpop.f32.mrb[0].mxu0
  %686 = vmatprep.mubr.f32.mxu0 0.0
  %687 = vmatmul.mubr.f32.gmra.mrb[0].mxu0 %v489
  %v688 = vpop.f32.mrb[0].mxu0
  %v689 = vadd.f32 0.0, %v688
  %v690 = vpop.f32.mrb[0].mxu0
  %691 = vmatprep.mubr.f32.mxu0 0.0
  %692 = vmatmul.mubr.f32.gmra.mrb[0].mxu0 %v492
  %v693 = vpop.f32.mrb[0].mxu0
  %v694 = vadd.f32 0.0, %v693
  %v695 = vpop.f32.mrb[0].mxu0
  %696 = vmatprep.mubr.f32.mxu0 0.0
  %697 = vmatmul.mubr.f32.gmra.mrb[0].mxu0 %v495
  %v698 = vpop.f32.mrb[0].mxu0
  %v699 = vadd.f32 0.0, %v698
  %v700 = vpop.f32.mrb[0].mxu0
  %701 = vmatprep.mubr.f32.mxu0 0.0
  %702 = vmatmul.mubr.f32.gmra.mrb[0].mxu0 %v498
  %v703 = vpop.f32.mrb[0].mxu0
  %v704 = vadd.f32 0.0, %v703
  %v705 = vpop.f32.mrb[0].mxu0
  %706 = vmatprep.mubr.f32.mxu0 0.0
  %707 = vmatmul.mubr.f32.gmra.mrb[0].mxu0 %v501
  %v708 = vpop.f32.mrb[0].mxu0
  %v709 = vadd.f32 0.0, %v708
  %v710 = vpop.f32.mrb[0].mxu0
  %711 = vmatprep.mubr.f32.mxu0 0.0
  %712 = vmatmul.mubr.f32.gmra.mrb[0].mxu0 %v504
  %v713 = vpop.f32.mrb[0].mxu0
  %v714 = vadd.f32 0.0, %v713
  %v715 = vpop.f32.mrb[0].mxu0
  %716 = vmatprep.mubr.f32.mxu0 0.0
  %717 = vmatmul.mubr.f32.gmra.mrb[0].mxu0 %v507
  %v718 = vpop.f32.mrb[0].mxu0
  %v719 = vadd.f32 0.0, %v718
  %v720 = vpop.f32.mrb[0].mxu0
  %721 = vmatprep.mubr.f32.mxu0 0.0
  %722 = vmatmul.mubr.f32.gmra.mrb[0].mxu0 %v510
  %v723 = vpop.f32.mrb[0].mxu0
  %v724 = vadd.f32 0.0, %v723
  %v725 = vpop.f32.mrb[0].mxu0
  %726 = vmatprep.mubr.f32.mxu0 0.0
  %727 = vmatmul.mubr.f32.gmra.mrb[0].mxu0 %v513
  %v728 = vpop.f32.mrb[0].mxu0
  %v729 = vadd.f32 0.0, %v728
  %v730 = vpop.f32.mrb[0].mxu0
  %731 = vmatprep.mubr.f32.mxu0 0.0
  %732 = vmatmul.mubr.f32.gmra.mrb[0].mxu0 %v516
  %v733 = vpop.f32.mrb[0].mxu0
  %v734 = vadd.f32 0.0, %v733
  %v735 = vpop.f32.mrb[0].mxu0
  %736 = vmatprep.mubr.f32.mxu0 0.0
  %737 = vmatmul.mubr.f32.gmra.mrb[0].mxu0 %v519
  %v738 = vpop.f32.mrb[0].mxu0
  %v739 = vadd.f32 0.0, %v738
  %v740 = vpop.f32.mrb[0].mxu0
  %741 = vmatprep.mubr.f32.mxu0 0.0
  %742 = vmatmul.mubr.f32.gmra.mrb[0].mxu0 %v522
  %v743 = vpop.f32.mrb[0].mxu0
  %v744 = vadd.f32 0.0, %v743
  %v745 = vpop.f32.mrb[0].mxu0
  %746 = vmatprep.mubr.f32.mxu0 0.0
  %747 = vmatmul.mubr.f32.gmra.mrb[0].mxu0 %v525
  %v748 = vpop.f32.mrb[0].mxu0
  %v749 = vadd.f32 0.0, %v748
  %v750 = vpop.f32.mrb[0].mxu0
  %751 = vmatprep.mubr.f32.mxu0 0.0
  %752 = vmatmul.mubr.f32.gmra.mrb[0].mxu0 %v528
  %v753 = vpop.f32.mrb[0].mxu0
  %v754 = vadd.f32 0.0, %v753
  %v755 = vpop.f32.mrb[0].mxu0
  %756 = vmatprep.mubr.f32.mxu0 0.0
  %757 = vmatmul.mubr.f32.gmra.mrb[0].mxu0 %v531
  %v758 = vpop.f32.mrb[0].mxu0
  %v759 = vadd.f32 0.0, %v758
  %v760 = vpop.f32.mrb[0].mxu0
  %761 = vmatprep.mubr.f32.mxu0 0.0
  %762 = vmatmul.mubr.f32.gmra.mrb[0].mxu0 %v534
  %v763 = vpop.f32.mrb[0].mxu0
  %v764 = vadd.f32 0.0, %v763
  %v765 = vpop.f32.mrb[0].mxu0
  %766 = vmatprep.mubr.f32.mxu0 0.0
  %767 = vmatmul.mubr.f32.gmra.mrb[0].mxu0 %v537
  %v768 = vpop.f32.mrb[0].mxu0
  %v769 = vadd.f32 0.0, %v768
  %v770 = vpop.f32.mrb[0].mxu0
  %771 = vmatprep.mubr.f32.mxu0 0.0
  %772 = vmatmul.mubr.f32.gmra.mrb[0].mxu0 %v540
  %v773 = vpop.f32.mrb[0].mxu0
  %v774 = vadd.f32 0.0, %v773
  %v775 = vpop.f32.mrb[0].mxu0
  %776 = vmatprep.mubr.f32.mxu0 0.0
  %777 = vmatmul.mubr.f32.gmra.mrb[0].mxu0 %v543
  %v778 = vpop.f32.mrb[0].mxu0
  %v779 = vadd.f32 0.0, %v778
  %v780 = vpop.f32.mrb[0].mxu0
  %781 = vmatprep.mubr.f32.mxu0 0.0
  %782 = vmatmul.mubr.f32.gmra.mrb[0].mxu0 %v546
  %v783 = vpop.f32.mrb[0].mxu0
  %v784 = vadd.f32 0.0, %v783
  %v785 = vpop.f32.mrb[0].mxu0
  %786 = vmatprep.mubr.f32.mxu0 0.0
  %787 = vmatmul.mubr.f32.gmra.mrb[0].mxu0 %v549
  %v788 = vpop.f32.mrb[0].mxu0
  %v789 = vadd.f32 0.0, %v788
  %v790 = vpop.f32.mrb[0].mxu0
  %791 = vmatprep.mubr.f32.mxu0 0.0
  %792 = vmatmul.mubr.f32.gmra.mrb[0].mxu0 %v552
  %v793 = vpop.f32.mrb[0].mxu0
  %v794 = vadd.f32 0.0, %v793
  %v795 = vpop.f32.mrb[0].mxu0
  %796 = vmatprep.mubr.f32.mxu0 0.0
  %797 = vmatmul.mubr.f32.gmra.mrb[0].mxu0 %v555
  %v798 = vpop.f32.mrb[0].mxu0
  %v799 = vadd.f32 0.0, %v798
  %v800 = vpop.f32.mrb[0].mxu0
  %801 = vdwg.mxu0
  %v802 = vmax.f32 %v234, %v624
  %v803 = vmax.f32 %v239, %v629
  %v804 = vmax.f32 %v244, %v634
  %v805 = vmax.f32 %v249, %v639
  %v806 = vmax.f32 %v254, %v644
  %v807 = vmax.f32 %v259, %v649
  %v808 = vmax.f32 %v264, %v654
  %v809 = vmax.f32 %v269, %v659
  %v810 = vmax.f32 %v274, %v664
  %v811 = vmax.f32 %v279, %v669
  %v812 = vmax.f32 %v284, %v674
  %v813 = vmax.f32 %v289, %v679
  %v814 = vmax.f32 %v294, %v684
  %v815 = vmax.f32 %v299, %v689
  %v816 = vmax.f32 %v304, %v694
  %v817 = vmax.f32 %v309, %v699
  %v818 = vmax.f32 %v314, %v704
  %v819 = vmax.f32 %v319, %v709
  %v820 = vmax.f32 %v324, %v714
  %v821 = vmax.f32 %v329, %v719
  %v822 = vmax.f32 %v334, %v724
  %v823 = vmax.f32 %v339, %v729
  %v824 = vmax.f32 %v344, %v734
  %v825 = vmax.f32 %v349, %v739
  %v826 = vmax.f32 %v354, %v744
  %v827 = vmax.f32 %v359, %v749
  %v828 = vmax.f32 %v364, %v754
  %v829 = vmax.f32 %v369, %v759
  %v830 = vmax.f32 %v374, %v764
  %v831 = vmax.f32 %v379, %v769
  %v832 = vmax.f32 %v384, %v774
  %v833 = vmax.f32 %v389, %v779
  %v834 = vmax.f32 %v394, %v784
  %v835 = vmax.f32 %v399, %v789
  %v836 = vmax.f32 %v404, %v794
  %v837 = vmax.f32 %v409, %v799
  %s838 = scalar_lea.vmem %s0, 576
  %v839 = vld [vmem:[%s838] sm:$0xff]
  %v840 = vld [vmem:[%s838 + $0x8] sm:$0xff]
  %v841 = vld [vmem:[%s838 + $0x10] sm:$0xff]
  %v842 = vld [vmem:[%s838 + $0x18] sm:$0xff]
  %v843 = vld [vmem:[%s838 + $0x20] sm:$0xff]
  %v844 = vld [vmem:[%s838 + $0x28] sm:$0xff]
  %v845 = vld [vmem:[%s838 + $0x30] sm:$0xff]
  %v846 = vld [vmem:[%s838 + $0x38] sm:$0xff]
  %v847 = vld [vmem:[%s838 + $0x40] sm:$0xff]
  %v848 = vld [vmem:[%s838 + $0x48] sm:$0xff]
  %v849 = vld [vmem:[%s838 + $0x50] sm:$0xff]
  %v850 = vld [vmem:[%s838 + $0x58] sm:$0xff]
  %v851 = vld [vmem:[%s838 + $0x60] sm:$0xff]
  %v852 = vld [vmem:[%s838 + $0x68] sm:$0xff]
  %v853 = vld [vmem:[%s838 + $0x70] sm:$0xff]
  %v854 = vld [vmem:[%s838 + $0x78] sm:$0xff]
  %v855 = vld [vmem:[%s838 + $0x80] sm:$0xff]
  %v856 = vld [vmem:[%s838 + $0x88] sm:$0xff]
  %v857 = vld [vmem:[%s838 + $0x90] sm:$0xff]
  %v858 = vld [vmem:[%s838 + $0x98] sm:$0xff]
  %v859 = vld [vmem:[%s838 + $0xa0] sm:$0xff]
  %v860 = vld [vmem:[%s838 + $0xa8] sm:$0xff]
  %v861 = vld [vmem:[%s838 + $0xb0] sm:$0xff]
  %v862 = vld [vmem:[%s838 + $0xb8] sm:$0xff]
  %v863 = vld [vmem:[%s838 + $0xc0] sm:$0xff]
  %v864 = vld [vmem:[%s838 + $0xc8] sm:$0xff]
  %v865 = vld [vmem:[%s838 + $0xd0] sm:$0xff]
  %v866 = vld [vmem:[%s838 + $0xd8] sm:$0xff]
  %v867 = vld [vmem:[%s838 + $0xe0] sm:$0xff]
  %v868 = vld [vmem:[%s838 + $0xe8] sm:$0xff]
  %v869 = vld [vmem:[%s838 + $0xf0] sm:$0xff]
  %v870 = vld [vmem:[%s838 + $0xf8] sm:$0xff]
  %v871 = vld [vmem:[%s838 + $0x100] sm:$0xff]
  %v872 = vld [vmem:[%s838 + $0x108] sm:$0xff]
  %v873 = vld [vmem:[%s838 + $0x110] sm:$0xff]
  %v874 = vld [vmem:[%s838 + $0x118] sm:$0xff]
  %v876 = vsel %vm54, %v839, 0
  %v879 = vsel %vm54, %v840, 0
  %v882 = vsel %vm54, %v841, 0
  %v885 = vsel %vm54, %v842, 0
  %v888 = vsel %vm54, %v843, 0
  %v891 = vsel %vm54, %v844, 0
  %v894 = vsel %vm54, %v845, 0
  %v897 = vsel %vm54, %v846, 0
  %v900 = vsel %vm54, %v847, 0
  %v903 = vsel %vm54, %v848, 0
  %v906 = vsel %vm54, %v849, 0
  %v909 = vsel %vm54, %v850, 0
  %v912 = vsel %vm54, %v851, 0
  %v915 = vsel %vm54, %v852, 0
  %v918 = vsel %vm54, %v853, 0
  %v921 = vsel %vm54, %v854, 0
  %v924 = vsel %vm54, %v855, 0
  %v927 = vsel %vm54, %v856, 0
  %v930 = vsel %vm54, %v857, 0
  %v933 = vsel %vm54, %v858, 0
  %v936 = vsel %vm54, %v859, 0
  %v939 = vsel %vm54, %v860, 0
  %v942 = vsel %vm54, %v861, 0
  %v945 = vsel %vm54, %v862, 0
  %v948 = vsel %vm54, %v863, 0
  %v951 = vsel %vm54, %v864, 0
  %v954 = vsel %vm54, %v865, 0
  %v957 = vsel %vm54, %v866, 0
  %v960 = vsel %vm54, %v867, 0
  %v963 = vsel %vm54, %v868, 0
  %v966 = vsel %vm54, %v869, 0
  %v969 = vsel %vm54, %v870, 0
  %v972 = vsel %vm54, %v871, 0
  %v975 = vsel %vm54, %v872, 0
  %v978 = vsel %vm54, %v873, 0
  %v981 = vsel %vm54, %v874, 0
  %983 = vmatprep.subr.mxu0 0.0
  %984 = vmatpush1.msra.mxu0 %v14
  %985 = vmatprep.subr.mxu0 0.0
  %986 = vmatpush1.msra.mxu0 %v15
  %987 = vmatprep.subr.mxu0 0.0
  %988 = vmatpush1.msra.mxu0 %v16
  %989 = vmatprep.subr.mxu0 0.0
  %990 = vmatpush1.msra.mxu0 %v165
  %991 = vmatprep.subr.mxu0 0.0
  %992 = vmatpush1.msra.mxu0 0.0
  %993 = vmatprep.subr.mxu0 0.0
  %994 = vmatpush1.msra.mxu0 0.0
  %995 = vmatprep.subr.mxu0 0.0
  %996 = vmatpush1.msra.mxu0 0.0
  %997 = vmatprep.subr.mxu0 0.0
  %998 = vmatpush1.msra.mxu0 0.0
  %999 = vmatprep.subr.mxu0 0.0
  %1000 = vmatpush1.msra.mxu0 0.0
  %1001 = vmatprep.subr.mxu0 0.0
  %1002 = vmatpush1.msra.mxu0 0.0
  %1003 = vmatprep.subr.mxu0 0.0
  %1004 = vmatpush1.msra.mxu0 0.0
  %1005 = vmatprep.subr.mxu0 0.0
  %1006 = vmatpush1.msra.mxu0 0.0
  %1007 = vmatprep.subr.mxu0 0.0
  %1008 = vmatpush1.msra.mxu0 0.0
  %1009 = vmatprep.subr.mxu0 0.0
  %1010 = vmatpush1.msra.mxu0 0.0
  %1011 = vmatprep.subr.mxu0 0.0
  %1012 = vmatpush1.msra.mxu0 0.0
  %1013 = vmatprep.subr.mxu0 0.0
  %1014 = vmatpush1.msra.mxu0 0.0
  %1015 = vmatprep.subr.mxu0 0.0
  %1016 = vmatpush1.msra.mxu0 0.0
  %1017 = vmatprep.subr.mxu0 0.0
  %1018 = vmatpush1.msra.mxu0 0.0
  %1019 = vmatprep.subr.mxu0 0.0
  %1020 = vmatpush1.msra.mxu0 0.0
  %1021 = vmatprep.subr.mxu0 0.0
  %1022 = vmatpush1.msra.mxu0 0.0
  %1023 = vmatprep.subr.mxu0 0.0
  %1024 = vmatpush1.msra.mxu0 0.0
  %1025 = vmatprep.subr.mxu0 0.0
  %1026 = vmatpush1.msra.mxu0 0.0
  %1027 = vmatprep.subr.mxu0 0.0
  %1028 = vmatpush1.msra.mxu0 0.0
  %1029 = vmatprep.subr.mxu0 0.0
  %1030 = vmatpush1.msra.mxu0 0.0
  %1031 = vmatprep.subr.mxu0 0.0
  %1032 = vmatpush1.msra.mxu0 0.0
  %1033 = vmatprep.subr.mxu0 0.0
  %1034 = vmatpush1.msra.mxu0 0.0
  %1035 = vmatprep.subr.mxu0 0.0
  %1036 = vmatpush1.msra.mxu0 0.0
  %1037 = vmatprep.subr.mxu0 0.0
  %1038 = vmatpush1.msra.mxu0 0.0
  %1039 = vmatprep.subr.mxu0 0.0
  %1040 = vmatpush1.msra.mxu0 0.0
  %1041 = vmatprep.subr.mxu0 0.0
  %1042 = vmatpush1.msra.mxu0 0.0
  %1043 = vmatprep.subr.mxu0 0.0
  %1044 = vmatpush1.msra.mxu0 0.0
  %1045 = vmatprep.subr.mxu0 0.0
  %1046 = vmatpush1.msra.mxu0 0.0
  %1047 = vmatprep.mubr.f32.mxu0 0.0
  %1048 = vmatmul.mubr.f32.gmra.mrb[0].mxu0 %v876
  %v1049 = vpop.f32.mrb[0].mxu0
  %v1050 = vadd.f32 0.0, %v1049
  %v1051 = vpop.f32.mrb[0].mxu0
  %1052 = vmatprep.mubr.f32.mxu0 0.0
  %1053 = vmatmul.mubr.f32.gmra.mrb[0].mxu0 %v879
  %v1054 = vpop.f32.mrb[0].mxu0
  %v1055 = vadd.f32 0.0, %v1054
  %v1056 = vpop.f32.mrb[0].mxu0
  %1057 = vmatprep.mubr.f32.mxu0 0.0
  %1058 = vmatmul.mubr.f32.gmra.mrb[0].mxu0 %v882
  %v1059 = vpop.f32.mrb[0].mxu0
  %v1060 = vadd.f32 0.0, %v1059
  %v1061 = vpop.f32.mrb[0].mxu0
  %1062 = vmatprep.mubr.f32.mxu0 0.0
  %1063 = vmatmul.mubr.f32.gmra.mrb[0].mxu0 %v885
  %v1064 = vpop.f32.mrb[0].mxu0
  %v1065 = vadd.f32 0.0, %v1064
  %v1066 = vpop.f32.mrb[0].mxu0
  %1067 = vmatprep.mubr.f32.mxu0 0.0
  %1068 = vmatmul.mubr.f32.gmra.mrb[0].mxu0 %v888
  %v1069 = vpop.f32.mrb[0].mxu0
  %v1070 = vadd.f32 0.0, %v1069
  %v1071 = vpop.f32.mrb[0].mxu0
  %1072 = vmatprep.mubr.f32.mxu0 0.0
  %1073 = vmatmul.mubr.f32.gmra.mrb[0].mxu0 %v891
  %v1074 = vpop.f32.mrb[0].mxu0
  %v1075 = vadd.f32 0.0, %v1074
  %v1076 = vpop.f32.mrb[0].mxu0
  %1077 = vmatprep.mubr.f32.mxu0 0.0
  %1078 = vmatmul.mubr.f32.gmra.mrb[0].mxu0 %v894
  %v1079 = vpop.f32.mrb[0].mxu0
  %v1080 = vadd.f32 0.0, %v1079
  %v1081 = vpop.f32.mrb[0].mxu0
  %1082 = vmatprep.mubr.f32.mxu0 0.0
  %1083 = vmatmul.mubr.f32.gmra.mrb[0].mxu0 %v897
  %v1084 = vpop.f32.mrb[0].mxu0
  %v1085 = vadd.f32 0.0, %v1084
  %v1086 = vpop.f32.mrb[0].mxu0
  %1087 = vmatprep.mubr.f32.mxu0 0.0
  %1088 = vmatmul.mubr.f32.gmra.mrb[0].mxu0 %v900
  %v1089 = vpop.f32.mrb[0].mxu0
  %v1090 = vadd.f32 0.0, %v1089
  %v1091 = vpop.f32.mrb[0].mxu0
  %1092 = vmatprep.mubr.f32.mxu0 0.0
  %1093 = vmatmul.mubr.f32.gmra.mrb[0].mxu0 %v903
  %v1094 = vpop.f32.mrb[0].mxu0
  %v1095 = vadd.f32 0.0, %v1094
  %v1096 = vpop.f32.mrb[0].mxu0
  %1097 = vmatprep.mubr.f32.mxu0 0.0
  %1098 = vmatmul.mubr.f32.gmra.mrb[0].mxu0 %v906
  %v1099 = vpop.f32.mrb[0].mxu0
  %v1100 = vadd.f32 0.0, %v1099
  %v1101 = vpop.f32.mrb[0].mxu0
  %1102 = vmatprep.mubr.f32.mxu0 0.0
  %1103 = vmatmul.mubr.f32.gmra.mrb[0].mxu0 %v909
  %v1104 = vpop.f32.mrb[0].mxu0
  %v1105 = vadd.f32 0.0, %v1104
  %v1106 = vpop.f32.mrb[0].mxu0
  %1107 = vmatprep.mubr.f32.mxu0 0.0
  %1108 = vmatmul.mubr.f32.gmra.mrb[0].mxu0 %v912
  %v1109 = vpop.f32.mrb[0].mxu0
  %v1110 = vadd.f32 0.0, %v1109
  %v1111 = vpop.f32.mrb[0].mxu0
  %1112 = vmatprep.mubr.f32.mxu0 0.0
  %1113 = vmatmul.mubr.f32.gmra.mrb[0].mxu0 %v915
  %v1114 = vpop.f32.mrb[0].mxu0
  %v1115 = vadd.f32 0.0, %v1114
  %v1116 = vpop.f32.mrb[0].mxu0
  %1117 = vmatprep.mubr.f32.mxu0 0.0
  %1118 = vmatmul.mubr.f32.gmra.mrb[0].mxu0 %v918
  %v1119 = vpop.f32.mrb[0].mxu0
  %v1120 = vadd.f32 0.0, %v1119
  %v1121 = vpop.f32.mrb[0].mxu0
  %1122 = vmatprep.mubr.f32.mxu0 0.0
  %1123 = vmatmul.mubr.f32.gmra.mrb[0].mxu0 %v921
  %v1124 = vpop.f32.mrb[0].mxu0
  %v1125 = vadd.f32 0.0, %v1124
  %v1126 = vpop.f32.mrb[0].mxu0
  %1127 = vmatprep.mubr.f32.mxu0 0.0
  %1128 = vmatmul.mubr.f32.gmra.mrb[0].mxu0 %v924
  %v1129 = vpop.f32.mrb[0].mxu0
  %v1130 = vadd.f32 0.0, %v1129
  %v1131 = vpop.f32.mrb[0].mxu0
  %1132 = vmatprep.mubr.f32.mxu0 0.0
  %1133 = vmatmul.mubr.f32.gmra.mrb[0].mxu0 %v927
  %v1134 = vpop.f32.mrb[0].mxu0
  %v1135 = vadd.f32 0.0, %v1134
  %v1136 = vpop.f32.mrb[0].mxu0
  %1137 = vmatprep.mubr.f32.mxu0 0.0
  %1138 = vmatmul.mubr.f32.gmra.mrb[0].mxu0 %v930
  %v1139 = vpop.f32.mrb[0].mxu0
  %v1140 = vadd.f32 0.0, %v1139
  %v1141 = vpop.f32.mrb[0].mxu0
  %1142 = vmatprep.mubr.f32.mxu0 0.0
  %1143 = vmatmul.mubr.f32.gmra.mrb[0].mxu0 %v933
  %v1144 = vpop.f32.mrb[0].mxu0
  %v1145 = vadd.f32 0.0, %v1144
  %v1146 = vpop.f32.mrb[0].mxu0
  %1147 = vmatprep.mubr.f32.mxu0 0.0
  %1148 = vmatmul.mubr.f32.gmra.mrb[0].mxu0 %v936
  %v1149 = vpop.f32.mrb[0].mxu0
  %v1150 = vadd.f32 0.0, %v1149
  %v1151 = vpop.f32.mrb[0].mxu0
  %1152 = vmatprep.mubr.f32.mxu0 0.0
  %1153 = vmatmul.mubr.f32.gmra.mrb[0].mxu0 %v939
  %v1154 = vpop.f32.mrb[0].mxu0
  %v1155 = vadd.f32 0.0, %v1154
  %v1156 = vpop.f32.mrb[0].mxu0
  %1157 = vmatprep.mubr.f32.mxu0 0.0
  %1158 = vmatmul.mubr.f32.gmra.mrb[0].mxu0 %v942
  %v1159 = vpop.f32.mrb[0].mxu0
  %v1160 = vadd.f32 0.0, %v1159
  %v1161 = vpop.f32.mrb[0].mxu0
  %1162 = vmatprep.mubr.f32.mxu0 0.0
  %1163 = vmatmul.mubr.f32.gmra.mrb[0].mxu0 %v945
  %v1164 = vpop.f32.mrb[0].mxu0
  %v1165 = vadd.f32 0.0, %v1164
  %v1166 = vpop.f32.mrb[0].mxu0
  %1167 = vmatprep.mubr.f32.mxu0 0.0
  %1168 = vmatmul.mubr.f32.gmra.mrb[0].mxu0 %v948
  %v1169 = vpop.f32.mrb[0].mxu0
  %v1170 = vadd.f32 0.0, %v1169
  %v1171 = vpop.f32.mrb[0].mxu0
  %1172 = vmatprep.mubr.f32.mxu0 0.0
  %1173 = vmatmul.mubr.f32.gmra.mrb[0].mxu0 %v951
  %v1174 = vpop.f32.mrb[0].mxu0
  %v1175 = vadd.f32 0.0, %v1174
  %v1176 = vpop.f32.mrb[0].mxu0
  %1177 = vmatprep.mubr.f32.mxu0 0.0
  %1178 = vmatmul.mubr.f32.gmra.mrb[0].mxu0 %v954
  %v1179 = vpop.f32.mrb[0].mxu0
  %v1180 = vadd.f32 0.0, %v1179
  %v1181 = vpop.f32.mrb[0].mxu0
  %1182 = vmatprep.mubr.f32.mxu0 0.0
  %1183 = vmatmul.mubr.f32.gmra.mrb[0].mxu0 %v957
  %v1184 = vpop.f32.mrb[0].mxu0
  %v1185 = vadd.f32 0.0, %v1184
  %v1186 = vpop.f32.mrb[0].mxu0
  %1187 = vmatprep.mubr.f32.mxu0 0.0
  %1188 = vmatmul.mubr.f32.gmra.mrb[0].mxu0 %v960
  %v1189 = vpop.f32.mrb[0].mxu0
  %v1190 = vadd.f32 0.0, %v1189
  %v1191 = vpop.f32.mrb[0].mxu0
  %1192 = vmatprep.mubr.f32.mxu0 0.0
  %1193 = vmatmul.mubr.f32.gmra.mrb[0].mxu0 %v963
  %v1194 = vpop.f32.mrb[0].mxu0
  %v1195 = vadd.f32 0.0, %v1194
  %v1196 = vpop.f32.mrb[0].mxu0
  %1197 = vmatprep.mubr.f32.mxu0 0.0
  %1198 = vmatmul.mubr.f32.gmra.mrb[0].mxu0 %v966
  %v1199 = vpop.f32.mrb[0].mxu0
  %v1200 = vadd.f32 0.0, %v1199
  %v1201 = vpop.f32.mrb[0].mxu0
  %1202 = vmatprep.mubr.f32.mxu0 0.0
  %1203 = vmatmul.mubr.f32.gmra.mrb[0].mxu0 %v969
  %v1204 = vpop.f32.mrb[0].mxu0
  %v1205 = vadd.f32 0.0, %v1204
  %v1206 = vpop.f32.mrb[0].mxu0
  %1207 = vmatprep.mubr.f32.mxu0 0.0
  %1208 = vmatmul.mubr.f32.gmra.mrb[0].mxu0 %v972
  %v1209 = vpop.f32.mrb[0].mxu0
  %v1210 = vadd.f32 0.0, %v1209
  %v1211 = vpop.f32.mrb[0].mxu0
  %1212 = vmatprep.mubr.f32.mxu0 0.0
  %1213 = vmatmul.mubr.f32.gmra.mrb[0].mxu0 %v975
  %v1214 = vpop.f32.mrb[0].mxu0
  %v1215 = vadd.f32 0.0, %v1214
  %v1216 = vpop.f32.mrb[0].mxu0
  %1217 = vmatprep.mubr.f32.mxu0 0.0
  %1218 = vmatmul.mubr.f32.gmra.mrb[0].mxu0 %v978
  %v1219 = vpop.f32.mrb[0].mxu0
  %v1220 = vadd.f32 0.0, %v1219
  %v1221 = vpop.f32.mrb[0].mxu0
  %1222 = vmatprep.mubr.f32.mxu0 0.0
  %1223 = vmatmul.mubr.f32.gmra.mrb[0].mxu0 %v981
  %v1224 = vpop.f32.mrb[0].mxu0
  %v1225 = vadd.f32 0.0, %v1224
  %v1226 = vpop.f32.mrb[0].mxu0
  %1227 = vdwg.mxu0
  %v1228 = vmax.f32 %v802, %v1050
  %v1229 = vmax.f32 %v803, %v1055
  %v1230 = vmax.f32 %v804, %v1060
  %v1231 = vmax.f32 %v805, %v1065
  %v1232 = vmax.f32 %v806, %v1070
  %v1233 = vmax.f32 %v807, %v1075
  %v1234 = vmax.f32 %v808, %v1080
  %v1235 = vmax.f32 %v809, %v1085
  %v1236 = vmax.f32 %v810, %v1090
  %v1237 = vmax.f32 %v811, %v1095
  %v1238 = vmax.f32 %v812, %v1100
  %v1239 = vmax.f32 %v813, %v1105
  %v1240 = vmax.f32 %v814, %v1110
  %v1241 = vmax.f32 %v815, %v1115
  %v1242 = vmax.f32 %v816, %v1120
  %v1243 = vmax.f32 %v817, %v1125
  %v1244 = vmax.f32 %v818, %v1130
  %v1245 = vmax.f32 %v819, %v1135
  %v1246 = vmax.f32 %v820, %v1140
  %v1247 = vmax.f32 %v821, %v1145
  %v1248 = vmax.f32 %v822, %v1150
  %v1249 = vmax.f32 %v823, %v1155
  %v1250 = vmax.f32 %v824, %v1160
  %v1251 = vmax.f32 %v825, %v1165
  %v1252 = vmax.f32 %v826, %v1170
  %v1253 = vmax.f32 %v827, %v1175
  %v1254 = vmax.f32 %v828, %v1180
  %v1255 = vmax.f32 %v829, %v1185
  %v1256 = vmax.f32 %v830, %v1190
  %v1257 = vmax.f32 %v831, %v1195
  %v1258 = vmax.f32 %v832, %v1200
  %v1259 = vmax.f32 %v833, %v1205
  %v1260 = vmax.f32 %v834, %v1210
  %v1261 = vmax.f32 %v835, %v1215
  %v1262 = vmax.f32 %v836, %v1220
  %v1263 = vmax.f32 %v837, %v1225
  %s1264 = scalar_lea.vmem %s0, 864
  %v1265 = vld [vmem:[%s1264] sm:$0xff]
  %v1266 = vld [vmem:[%s1264 + $0x8] sm:$0xff]
  %v1267 = vld [vmem:[%s1264 + $0x10] sm:$0xff]
  %v1268 = vld [vmem:[%s1264 + $0x18] sm:$0xff]
  %v1269 = vld [vmem:[%s1264 + $0x20] sm:$0xff]
  %v1270 = vld [vmem:[%s1264 + $0x28] sm:$0xff]
  %v1271 = vld [vmem:[%s1264 + $0x30] sm:$0xff]
  %v1272 = vld [vmem:[%s1264 + $0x38] sm:$0xff]
  %v1273 = vld [vmem:[%s1264 + $0x40] sm:$0xff]
  %v1274 = vld [vmem:[%s1264 + $0x48] sm:$0xff]
  %v1275 = vld [vmem:[%s1264 + $0x50] sm:$0xff]
  %v1276 = vld [vmem:[%s1264 + $0x58] sm:$0xff]
  %v1277 = vld [vmem:[%s1264 + $0x60] sm:$0xff]
  %v1278 = vld [vmem:[%s1264 + $0x68] sm:$0xff]
  %v1279 = vld [vmem:[%s1264 + $0x70] sm:$0xff]
  %v1280 = vld [vmem:[%s1264 + $0x78] sm:$0xff]
  %v1281 = vld [vmem:[%s1264 + $0x80] sm:$0xff]
  %v1282 = vld [vmem:[%s1264 + $0x88] sm:$0xff]
  %v1283 = vld [vmem:[%s1264 + $0x90] sm:$0xff]
  %v1284 = vld [vmem:[%s1264 + $0x98] sm:$0xff]
  %v1285 = vld [vmem:[%s1264 + $0xa0] sm:$0xff]
  %v1286 = vld [vmem:[%s1264 + $0xa8] sm:$0xff]
  %v1287 = vld [vmem:[%s1264 + $0xb0] sm:$0xff]
  %v1288 = vld [vmem:[%s1264 + $0xb8] sm:$0xff]
  %v1289 = vld [vmem:[%s1264 + $0xc0] sm:$0xff]
  %v1290 = vld [vmem:[%s1264 + $0xc8] sm:$0xff]
  %v1291 = vld [vmem:[%s1264 + $0xd0] sm:$0xff]
  %v1292 = vld [vmem:[%s1264 + $0xd8] sm:$0xff]
  %v1293 = vld [vmem:[%s1264 + $0xe0] sm:$0xff]
  %v1294 = vld [vmem:[%s1264 + $0xe8] sm:$0xff]
  %v1295 = vld [vmem:[%s1264 + $0xf0] sm:$0xff]
  %v1296 = vld [vmem:[%s1264 + $0xf8] sm:$0xff]
  %v1297 = vld [vmem:[%s1264 + $0x100] sm:$0xff]
  %v1298 = vld [vmem:[%s1264 + $0x108] sm:$0xff]
  %v1299 = vld [vmem:[%s1264 + $0x110] sm:$0xff]
  %v1300 = vld [vmem:[%s1264 + $0x118] sm:$0xff]
  %v1302 = vsel %vm54, %v1265, 0
  %v1305 = vsel %vm54, %v1266, 0
  %v1308 = vsel %vm54, %v1267, 0
  %v1311 = vsel %vm54, %v1268, 0
  %v1314 = vsel %vm54, %v1269, 0
  %v1317 = vsel %vm54, %v1270, 0
  %v1320 = vsel %vm54, %v1271, 0
  %v1323 = vsel %vm54, %v1272, 0
  %v1326 = vsel %vm54, %v1273, 0
  %v1329 = vsel %vm54, %v1274, 0
  %v1332 = vsel %vm54, %v1275, 0
  %v1335 = vsel %vm54, %v1276, 0
  %v1338 = vsel %vm54, %v1277, 0
  %v1341 = vsel %vm54, %v1278, 0
  %v1344 = vsel %vm54, %v1279, 0
  %v1347 = vsel %vm54, %v1280, 0
  %v1350 = vsel %vm54, %v1281, 0
  %v1353 = vsel %vm54, %v1282, 0
  %v1356 = vsel %vm54, %v1283, 0
  %v1359 = vsel %vm54, %v1284, 0
  %v1362 = vsel %vm54, %v1285, 0
  %v1365 = vsel %vm54, %v1286, 0
  %v1368 = vsel %vm54, %v1287, 0
  %v1371 = vsel %vm54, %v1288, 0
  %v1374 = vsel %vm54, %v1289, 0
  %v1377 = vsel %vm54, %v1290, 0
  %v1380 = vsel %vm54, %v1291, 0
  %v1383 = vsel %vm54, %v1292, 0
  %v1386 = vsel %vm54, %v1293, 0
  %v1389 = vsel %vm54, %v1294, 0
  %v1392 = vsel %vm54, %v1295, 0
  %v1395 = vsel %vm54, %v1296, 0
  %v1398 = vsel %vm54, %v1297, 0
  %v1401 = vsel %vm54, %v1298, 0
  %v1404 = vsel %vm54, %v1299, 0
  %v1407 = vsel %vm54, %v1300, 0
  %1409 = vmatprep.subr.mxu0 0.0
  %1410 = vmatpush1.msra.mxu0 %v14
  %1411 = vmatprep.subr.mxu0 0.0
  %1412 = vmatpush1.msra.mxu0 %v15
  %1413 = vmatprep.subr.mxu0 0.0
  %1414 = vmatpush1.msra.mxu0 %v16
  %1415 = vmatprep.subr.mxu0 0.0
  %1416 = vmatpush1.msra.mxu0 %v165
  %1417 = vmatprep.subr.mxu0 0.0
  %1418 = vmatpush1.msra.mxu0 0.0
  %1419 = vmatprep.subr.mxu0 0.0
  %1420 = vmatpush1.msra.mxu0 0.0
  %1421 = vmatprep.subr.mxu0 0.0
  %1422 = vmatpush1.msra.mxu0 0.0
  %1423 = vmatprep.subr.mxu0 0.0
  %1424 = vmatpush1.msra.mxu0 0.0
  %1425 = vmatprep.subr.mxu0 0.0
  %1426 = vmatpush1.msra.mxu0 0.0
  %1427 = vmatprep.subr.mxu0 0.0
  %1428 = vmatpush1.msra.mxu0 0.0
  %1429 = vmatprep.subr.mxu0 0.0
  %1430 = vmatpush1.msra.mxu0 0.0
  %1431 = vmatprep.subr.mxu0 0.0
  %1432 = vmatpush1.msra.mxu0 0.0
  %1433 = vmatprep.subr.mxu0 0.0
  %1434 = vmatpush1.msra.mxu0 0.0
  %1435 = vmatprep.subr.mxu0 0.0
  %1436 = vmatpush1.msra.mxu0 0.0
  %1437 = vmatprep.subr.mxu0 0.0
  %1438 = vmatpush1.msra.mxu0 0.0
  %1439 = vmatprep.subr.mxu0 0.0
  %1440 = vmatpush1.msra.mxu0 0.0
  %1441 = vmatprep.subr.mxu0 0.0
  %1442 = vmatpush1.msra.mxu0 0.0
  %1443 = vmatprep.subr.mxu0 0.0
  %1444 = vmatpush1.msra.mxu0 0.0
  %1445 = vmatprep.subr.mxu0 0.0
  %1446 = vmatpush1.msra.mxu0 0.0
  %1447 = vmatprep.subr.mxu0 0.0
  %1448 = vmatpush1.msra.mxu0 0.0
  %1449 = vmatprep.subr.mxu0 0.0
  %1450 = vmatpush1.msra.mxu0 0.0
  %1451 = vmatprep.subr.mxu0 0.0
  %1452 = vmatpush1.msra.mxu0 0.0
  %1453 = vmatprep.subr.mxu0 0.0
  %1454 = vmatpush1.msra.mxu0 0.0
  %1455 = vmatprep.subr.mxu0 0.0
  %1456 = vmatpush1.msra.mxu0 0.0
  %1457 = vmatprep.subr.mxu0 0.0
  %1458 = vmatpush1.msra.mxu0 0.0
  %1459 = vmatprep.subr.mxu0 0.0
  %1460 = vmatpush1.msra.mxu0 0.0
  %1461 = vmatprep.subr.mxu0 0.0
  %1462 = vmatpush1.msra.mxu0 0.0
  %1463 = vmatprep.subr.mxu0 0.0
  %1464 = vmatpush1.msra.mxu0 0.0
  %1465 = vmatprep.subr.mxu0 0.0
  %1466 = vmatpush1.msra.mxu0 0.0
  %1467 = vmatprep.subr.mxu0 0.0
  %1468 = vmatpush1.msra.mxu0 0.0
  %1469 = vmatprep.subr.mxu0 0.0
  %1470 = vmatpush1.msra.mxu0 0.0
  %1471 = vmatprep.subr.mxu0 0.0
  %1472 = vmatpush1.msra.mxu0 0.0
  %1473 = vmatprep.mubr.f32.mxu0 0.0
  %1474 = vmatmul.mubr.f32.gmra.mrb[0].mxu0 %v1302
  %v1475 = vpop.f32.mrb[0].mxu0
  %v1476 = vadd.f32 0.0, %v1475
  %v1477 = vpop.f32.mrb[0].mxu0
  %1478 = vmatprep.mubr.f32.mxu0 0.0
  %1479 = vmatmul.mubr.f32.gmra.mrb[0].mxu0 %v1305
  %v1480 = vpop.f32.mrb[0].mxu0
  %v1481 = vadd.f32 0.0, %v1480
  %v1482 = vpop.f32.mrb[0].mxu0
  %1483 = vmatprep.mubr.f32.mxu0 0.0
  %1484 = vmatmul.mubr.f32.gmra.mrb[0].mxu0 %v1308
  %v1485 = vpop.f32.mrb[0].mxu0
  %v1486 = vadd.f32 0.0, %v1485
  %v1487 = vpop.f32.mrb[0].mxu0
  %1488 = vmatprep.mubr.f32.mxu0 0.0
  %1489 = vmatmul.mubr.f32.gmra.mrb[0].mxu0 %v1311
  %v1490 = vpop.f32.mrb[0].mxu0
  %v1491 = vadd.f32 0.0, %v1490
  %v1492 = vpop.f32.mrb[0].mxu0
  %1493 = vmatprep.mubr.f32.mxu0 0.0
  %1494 = vmatmul.mubr.f32.gmra.mrb[0].mxu0 %v1314
  %v1495 = vpop.f32.mrb[0].mxu0
  %v1496 = vadd.f32 0.0, %v1495
  %v1497 = vpop.f32.mrb[0].mxu0
  %1498 = vmatprep.mubr.f32.mxu0 0.0
  %1499 = vmatmul.mubr.f32.gmra.mrb[0].mxu0 %v1317
  %v1500 = vpop.f32.mrb[0].mxu0
  %v1501 = vadd.f32 0.0, %v1500
  %v1502 = vpop.f32.mrb[0].mxu0
  %1503 = vmatprep.mubr.f32.mxu0 0.0
  %1504 = vmatmul.mubr.f32.gmra.mrb[0].mxu0 %v1320
  %v1505 = vpop.f32.mrb[0].mxu0
  %v1506 = vadd.f32 0.0, %v1505
  %v1507 = vpop.f32.mrb[0].mxu0
  %1508 = vmatprep.mubr.f32.mxu0 0.0
  %1509 = vmatmul.mubr.f32.gmra.mrb[0].mxu0 %v1323
  %v1510 = vpop.f32.mrb[0].mxu0
  %v1511 = vadd.f32 0.0, %v1510
  %v1512 = vpop.f32.mrb[0].mxu0
  %1513 = vmatprep.mubr.f32.mxu0 0.0
  %1514 = vmatmul.mubr.f32.gmra.mrb[0].mxu0 %v1326
  %v1515 = vpop.f32.mrb[0].mxu0
  %v1516 = vadd.f32 0.0, %v1515
  %v1517 = vpop.f32.mrb[0].mxu0
  %1518 = vmatprep.mubr.f32.mxu0 0.0
  %1519 = vmatmul.mubr.f32.gmra.mrb[0].mxu0 %v1329
  %v1520 = vpop.f32.mrb[0].mxu0
  %v1521 = vadd.f32 0.0, %v1520
  %v1522 = vpop.f32.mrb[0].mxu0
  %1523 = vmatprep.mubr.f32.mxu0 0.0
  %1524 = vmatmul.mubr.f32.gmra.mrb[0].mxu0 %v1332
  %v1525 = vpop.f32.mrb[0].mxu0
  %v1526 = vadd.f32 0.0, %v1525
  %v1527 = vpop.f32.mrb[0].mxu0
  %1528 = vmatprep.mubr.f32.mxu0 0.0
  %1529 = vmatmul.mubr.f32.gmra.mrb[0].mxu0 %v1335
  %v1530 = vpop.f32.mrb[0].mxu0
  %v1531 = vadd.f32 0.0, %v1530
  %v1532 = vpop.f32.mrb[0].mxu0
  %1533 = vmatprep.mubr.f32.mxu0 0.0
  %1534 = vmatmul.mubr.f32.gmra.mrb[0].mxu0 %v1338
  %v1535 = vpop.f32.mrb[0].mxu0
  %v1536 = vadd.f32 0.0, %v1535
  %v1537 = vpop.f32.mrb[0].mxu0
  %1538 = vmatprep.mubr.f32.mxu0 0.0
  %1539 = vmatmul.mubr.f32.gmra.mrb[0].mxu0 %v1341
  %v1540 = vpop.f32.mrb[0].mxu0
  %v1541 = vadd.f32 0.0, %v1540
  %v1542 = vpop.f32.mrb[0].mxu0
  %1543 = vmatprep.mubr.f32.mxu0 0.0
  %1544 = vmatmul.mubr.f32.gmra.mrb[0].mxu0 %v1344
  %v1545 = vpop.f32.mrb[0].mxu0
  %v1546 = vadd.f32 0.0, %v1545
  %v1547 = vpop.f32.mrb[0].mxu0
  %1548 = vmatprep.mubr.f32.mxu0 0.0
  %1549 = vmatmul.mubr.f32.gmra.mrb[0].mxu0 %v1347
  %v1550 = vpop.f32.mrb[0].mxu0
  %v1551 = vadd.f32 0.0, %v1550
  %v1552 = vpop.f32.mrb[0].mxu0
  %1553 = vmatprep.mubr.f32.mxu0 0.0
  %1554 = vmatmul.mubr.f32.gmra.mrb[0].mxu0 %v1350
  %v1555 = vpop.f32.mrb[0].mxu0
  %v1556 = vadd.f32 0.0, %v1555
  %v1557 = vpop.f32.mrb[0].mxu0
  %1558 = vmatprep.mubr.f32.mxu0 0.0
  %1559 = vmatmul.mubr.f32.gmra.mrb[0].mxu0 %v1353
  %v1560 = vpop.f32.mrb[0].mxu0
  %v1561 = vadd.f32 0.0, %v1560
  %v1562 = vpop.f32.mrb[0].mxu0
  %1563 = vmatprep.mubr.f32.mxu0 0.0
  %1564 = vmatmul.mubr.f32.gmra.mrb[0].mxu0 %v1356
  %v1565 = vpop.f32.mrb[0].mxu0
  %v1566 = vadd.f32 0.0, %v1565
  %v1567 = vpop.f32.mrb[0].mxu0
  %1568 = vmatprep.mubr.f32.mxu0 0.0
  %1569 = vmatmul.mubr.f32.gmra.mrb[0].mxu0 %v1359
  %v1570 = vpop.f32.mrb[0].mxu0
  %v1571 = vadd.f32 0.0, %v1570
  %v1572 = vpop.f32.mrb[0].mxu0
  %1573 = vmatprep.mubr.f32.mxu0 0.0
  %1574 = vmatmul.mubr.f32.gmra.mrb[0].mxu0 %v1362
  %v1575 = vpop.f32.mrb[0].mxu0
  %v1576 = vadd.f32 0.0, %v1575
  %v1577 = vpop.f32.mrb[0].mxu0
  %1578 = vmatprep.mubr.f32.mxu0 0.0
  %1579 = vmatmul.mubr.f32.gmra.mrb[0].mxu0 %v1365
  %v1580 = vpop.f32.mrb[0].mxu0
  %v1581 = vadd.f32 0.0, %v1580
  %v1582 = vpop.f32.mrb[0].mxu0
  %1583 = vmatprep.mubr.f32.mxu0 0.0
  %1584 = vmatmul.mubr.f32.gmra.mrb[0].mxu0 %v1368
  %v1585 = vpop.f32.mrb[0].mxu0
  %v1586 = vadd.f32 0.0, %v1585
  %v1587 = vpop.f32.mrb[0].mxu0
  %1588 = vmatprep.mubr.f32.mxu0 0.0
  %1589 = vmatmul.mubr.f32.gmra.mrb[0].mxu0 %v1371
  %v1590 = vpop.f32.mrb[0].mxu0
  %v1591 = vadd.f32 0.0, %v1590
  %v1592 = vpop.f32.mrb[0].mxu0
  %1593 = vmatprep.mubr.f32.mxu0 0.0
  %1594 = vmatmul.mubr.f32.gmra.mrb[0].mxu0 %v1374
  %v1595 = vpop.f32.mrb[0].mxu0
  %v1596 = vadd.f32 0.0, %v1595
  %v1597 = vpop.f32.mrb[0].mxu0
  %1598 = vmatprep.mubr.f32.mxu0 0.0
  %1599 = vmatmul.mubr.f32.gmra.mrb[0].mxu0 %v1377
  %v1600 = vpop.f32.mrb[0].mxu0
  %v1601 = vadd.f32 0.0, %v1600
  %v1602 = vpop.f32.mrb[0].mxu0
  %1603 = vmatprep.mubr.f32.mxu0 0.0
  %1604 = vmatmul.mubr.f32.gmra.mrb[0].mxu0 %v1380
  %v1605 = vpop.f32.mrb[0].mxu0
  %v1606 = vadd.f32 0.0, %v1605
  %v1607 = vpop.f32.mrb[0].mxu0
  %1608 = vmatprep.mubr.f32.mxu0 0.0
  %1609 = vmatmul.mubr.f32.gmra.mrb[0].mxu0 %v1383
  %v1610 = vpop.f32.mrb[0].mxu0
  %v1611 = vadd.f32 0.0, %v1610
  %v1612 = vpop.f32.mrb[0].mxu0
  %1613 = vmatprep.mubr.f32.mxu0 0.0
  %1614 = vmatmul.mubr.f32.gmra.mrb[0].mxu0 %v1386
  %v1615 = vpop.f32.mrb[0].mxu0
  %v1616 = vadd.f32 0.0, %v1615
  %v1617 = vpop.f32.mrb[0].mxu0
  %1618 = vmatprep.mubr.f32.mxu0 0.0
  %1619 = vmatmul.mubr.f32.gmra.mrb[0].mxu0 %v1389
  %v1620 = vpop.f32.mrb[0].mxu0
  %v1621 = vadd.f32 0.0, %v1620
  %v1622 = vpop.f32.mrb[0].mxu0
  %1623 = vmatprep.mubr.f32.mxu0 0.0
  %1624 = vmatmul.mubr.f32.gmra.mrb[0].mxu0 %v1392
  %v1625 = vpop.f32.mrb[0].mxu0
  %v1626 = vadd.f32 0.0, %v1625
  %v1627 = vpop.f32.mrb[0].mxu0
  %1628 = vmatprep.mubr.f32.mxu0 0.0
  %1629 = vmatmul.mubr.f32.gmra.mrb[0].mxu0 %v1395
  %v1630 = vpop.f32.mrb[0].mxu0
  %v1631 = vadd.f32 0.0, %v1630
  %v1632 = vpop.f32.mrb[0].mxu0
  %1633 = vmatprep.mubr.f32.mxu0 0.0
  %1634 = vmatmul.mubr.f32.gmra.mrb[0].mxu0 %v1398
  %v1635 = vpop.f32.mrb[0].mxu0
  %v1636 = vadd.f32 0.0, %v1635
  %v1637 = vpop.f32.mrb[0].mxu0
  %1638 = vmatprep.mubr.f32.mxu0 0.0
  %1639 = vmatmul.mubr.f32.gmra.mrb[0].mxu0 %v1401
  %v1640 = vpop.f32.mrb[0].mxu0
  %v1641 = vadd.f32 0.0, %v1640
  %v1642 = vpop.f32.mrb[0].mxu0
  %1643 = vmatprep.mubr.f32.mxu0 0.0
  %1644 = vmatmul.mubr.f32.gmra.mrb[0].mxu0 %v1404
  %v1645 = vpop.f32.mrb[0].mxu0
  %v1646 = vadd.f32 0.0, %v1645
  %v1647 = vpop.f32.mrb[0].mxu0
  %1648 = vmatprep.mubr.f32.mxu0 0.0
  %1649 = vmatmul.mubr.f32.gmra.mrb[0].mxu0 %v1407
  %v1650 = vpop.f32.mrb[0].mxu0
  %v1651 = vadd.f32 0.0, %v1650
  %v1652 = vpop.f32.mrb[0].mxu0
  %1653 = vdwg.mxu0
  %v1654 = vmax.f32 %v1228, %v1476
  %v1655 = vmax.f32 %v1229, %v1481
  %v1656 = vmax.f32 %v1230, %v1486
  %v1657 = vmax.f32 %v1231, %v1491
  %v1658 = vmax.f32 %v1232, %v1496
  %v1659 = vmax.f32 %v1233, %v1501
  %v1660 = vmax.f32 %v1234, %v1506
  %v1661 = vmax.f32 %v1235, %v1511
  %v1662 = vmax.f32 %v1236, %v1516
  %v1663 = vmax.f32 %v1237, %v1521
  %v1664 = vmax.f32 %v1238, %v1526
  %v1665 = vmax.f32 %v1239, %v1531
  %v1666 = vmax.f32 %v1240, %v1536
  %v1667 = vmax.f32 %v1241, %v1541
  %v1668 = vmax.f32 %v1242, %v1546
  %v1669 = vmax.f32 %v1243, %v1551
  %v1670 = vmax.f32 %v1244, %v1556
  %v1671 = vmax.f32 %v1245, %v1561
  %v1672 = vmax.f32 %v1246, %v1566
  %v1673 = vmax.f32 %v1247, %v1571
  %v1674 = vmax.f32 %v1248, %v1576
  %v1675 = vmax.f32 %v1249, %v1581
  %v1676 = vmax.f32 %v1250, %v1586
  %v1677 = vmax.f32 %v1251, %v1591
  %v1678 = vmax.f32 %v1252, %v1596
  %v1679 = vmax.f32 %v1253, %v1601
  %v1680 = vmax.f32 %v1254, %v1606
  %v1681 = vmax.f32 %v1255, %v1611
  %v1682 = vmax.f32 %v1256, %v1616
  %v1683 = vmax.f32 %v1257, %v1621
  %v1684 = vmax.f32 %v1258, %v1626
  %v1685 = vmax.f32 %v1259, %v1631
  %v1686 = vmax.f32 %v1260, %v1636
  %v1687 = vmax.f32 %v1261, %v1641
  %v1688 = vmax.f32 %v1262, %v1646
  %v1689 = vmax.f32 %v1263, %v1651
  %v1690 = vld [vmem:[%s2] sm:$0x1]
  %v1692 = vlaneseq
  %v1693 = vshrl.u32 %v1692, 7
  %v1694 = vsub.s32 0, %v1693
  %v1695 = vrot.slane %v1690, %v1694
  %v1697 = vadd.f32 %v1654, %v1695
  %v1698 = vadd.f32 %v1655, %v1695
  %v1699 = vadd.f32 %v1656, %v1695
  %v1700 = vadd.f32 %v1657, %v1695
  %v1701 = vadd.f32 %v1658, %v1695
  %v1702 = vadd.f32 %v1659, %v1695
  %v1703 = vadd.f32 %v1660, %v1695
  %v1704 = vadd.f32 %v1661, %v1695
  %v1705 = vadd.f32 %v1662, %v1695
  %v1706 = vadd.f32 %v1663, %v1695
  %v1707 = vadd.f32 %v1664, %v1695
  %v1708 = vadd.f32 %v1665, %v1695
  %v1709 = vadd.f32 %v1666, %v1695
  %v1710 = vadd.f32 %v1667, %v1695
  %v1711 = vadd.f32 %v1668, %v1695
  %v1712 = vadd.f32 %v1669, %v1695
  %v1713 = vadd.f32 %v1670, %v1695
  %v1714 = vadd.f32 %v1671, %v1695
  %v1715 = vadd.f32 %v1672, %v1695
  %v1716 = vadd.f32 %v1673, %v1695
  %v1717 = vadd.f32 %v1674, %v1695
  %v1718 = vadd.f32 %v1675, %v1695
  %v1719 = vadd.f32 %v1676, %v1695
  %v1720 = vadd.f32 %v1677, %v1695
  %v1721 = vadd.f32 %v1678, %v1695
  %v1722 = vadd.f32 %v1679, %v1695
  %v1723 = vadd.f32 %v1680, %v1695
  %v1724 = vadd.f32 %v1681, %v1695
  %v1725 = vadd.f32 %v1682, %v1695
  %v1726 = vadd.f32 %v1683, %v1695
  %v1727 = vadd.f32 %v1684, %v1695
  %v1728 = vadd.f32 %v1685, %v1695
  %v1729 = vadd.f32 %v1686, %v1695
  %v1730 = vadd.f32 %v1687, %v1695
  %v1731 = vadd.f32 %v1688, %v1695
  %v1732 = vadd.f32 %v1689, %v1695
  %v1733 = vmax.f32 %v1697, 0.0
  %v1734 = vmax.f32 %v1698, 0.0
  %v1735 = vmax.f32 %v1699, 0.0
  %v1736 = vmax.f32 %v1700, 0.0
  %v1737 = vmax.f32 %v1701, 0.0
  %v1738 = vmax.f32 %v1702, 0.0
  %v1739 = vmax.f32 %v1703, 0.0
  %v1740 = vmax.f32 %v1704, 0.0
  %v1741 = vmax.f32 %v1705, 0.0
  %v1742 = vmax.f32 %v1706, 0.0
  %v1743 = vmax.f32 %v1707, 0.0
  %v1744 = vmax.f32 %v1708, 0.0
  %v1745 = vmax.f32 %v1709, 0.0
  %v1746 = vmax.f32 %v1710, 0.0
  %v1747 = vmax.f32 %v1711, 0.0
  %v1748 = vmax.f32 %v1712, 0.0
  %v1749 = vmax.f32 %v1713, 0.0
  %v1750 = vmax.f32 %v1714, 0.0
  %v1751 = vmax.f32 %v1715, 0.0
  %v1752 = vmax.f32 %v1716, 0.0
  %v1753 = vmax.f32 %v1717, 0.0
  %v1754 = vmax.f32 %v1718, 0.0
  %v1755 = vmax.f32 %v1719, 0.0
  %v1756 = vmax.f32 %v1720, 0.0
  %v1757 = vmax.f32 %v1721, 0.0
  %v1758 = vmax.f32 %v1722, 0.0
  %v1759 = vmax.f32 %v1723, 0.0
  %v1760 = vmax.f32 %v1724, 0.0
  %v1761 = vmax.f32 %v1725, 0.0
  %v1762 = vmax.f32 %v1726, 0.0
  %v1763 = vmax.f32 %v1727, 0.0
  %v1764 = vmax.f32 %v1728, 0.0
  %v1765 = vmax.f32 %v1729, 0.0
  %v1766 = vmax.f32 %v1730, 0.0
  %v1767 = vmax.f32 %v1731, 0.0
  %v1768 = vmax.f32 %v1732, 0.0
  %1769 = vst [vmem:[%s3] sm:$0xff] %v1733
  %1770 = vst [vmem:[%s3 + $0x8] sm:$0xff] %v1734
  %1771 = vst [vmem:[%s3 + $0x10] sm:$0xff] %v1735
  %1772 = vst [vmem:[%s3 + $0x18] sm:$0xff] %v1736
  %1773 = vst [vmem:[%s3 + $0x20] sm:$0xff] %v1737
  %1774 = vst [vmem:[%s3 + $0x28] sm:$0xff] %v1738
  %1775 = vst [vmem:[%s3 + $0x30] sm:$0xff] %v1739
  %1776 = vst [vmem:[%s3 + $0x38] sm:$0xff] %v1740
  %1777 = vst [vmem:[%s3 + $0x40] sm:$0xff] %v1741
  %1778 = vst [vmem:[%s3 + $0x48] sm:$0xff] %v1742
  %1779 = vst [vmem:[%s3 + $0x50] sm:$0xff] %v1743
  %1780 = vst [vmem:[%s3 + $0x58] sm:$0xff] %v1744
  %1781 = vst [vmem:[%s3 + $0x60] sm:$0xff] %v1745
  %1782 = vst [vmem:[%s3 + $0x68] sm:$0xff] %v1746
  %1783 = vst [vmem:[%s3 + $0x70] sm:$0xff] %v1747
  %1784 = vst [vmem:[%s3 + $0x78] sm:$0xff] %v1748
  %1785 = vst [vmem:[%s3 + $0x80] sm:$0xff] %v1749
  %1786 = vst [vmem:[%s3 + $0x88] sm:$0xff] %v1750
  %1787 = vst [vmem:[%s3 + $0x90] sm:$0xff] %v1751
  %1788 = vst [vmem:[%s3 + $0x98] sm:$0xff] %v1752
  %1789 = vst [vmem:[%s3 + $0xa0] sm:$0xff] %v1753
  %1790 = vst [vmem:[%s3 + $0xa8] sm:$0xff] %v1754
  %1791 = vst [vmem:[%s3 + $0xb0] sm:$0xff] %v1755
  %1792 = vst [vmem:[%s3 + $0xb8] sm:$0xff] %v1756
  %1793 = vst [vmem:[%s3 + $0xc0] sm:$0xff] %v1757
  %1794 = vst [vmem:[%s3 + $0xc8] sm:$0xff] %v1758
  %1795 = vst [vmem:[%s3 + $0xd0] sm:$0xff] %v1759
  %1796 = vst [vmem:[%s3 + $0xd8] sm:$0xff] %v1760
  %1797 = vst [vmem:[%s3 + $0xe0] sm:$0xff] %v1761
  %1798 = vst [vmem:[%s3 + $0xe8] sm:$0xff] %v1762
  %1799 = vst [vmem:[%s3 + $0xf0] sm:$0xff] %v1763
  %1800 = vst [vmem:[%s3 + $0xf8] sm:$0xff] %v1764
  %1801 = vst [vmem:[%s3 + $0x100] sm:$0xff] %v1765
  %1802 = vst [vmem:[%s3 + $0x108] sm:$0xff] %v1766
  %1803 = vst [vmem:[%s3 + $0x110] sm:$0xff] %v1767
  %1804 = vst [vmem:[%s3 + $0x118] sm:$0xff] %v1768
  // Predicated region
  $region14: #{lenet_forward.3} parent=0 // pred_check
    _
  $region15: #{lenet_forward.3} parent=0 // pred_check_branch
    %1806 = sbr.rel (0) target = $region17
  $region16: #{lenet_forward.3} parent=0 // pred_region
    _
  $region17: #{lenet_forward.3} parent=0 // pred_fallthru
    _
  // Predicated region
  $region18: #{lenet_forward.3} parent=0 // pred_check
    _
  $region19: #{lenet_forward.3} parent=0 // pred_check_branch
    %1808 = sbr.rel (0) target = $region21
  $region20: #{lenet_forward.3} parent=0 // pred_region
    _
  $region21: #{lenet_forward.3} parent=0 // pred_fallthru
    _

// kernel: lenet_forward.4
$region0: #{lenet_forward.4}
  #allocation0 [shape = 'u32[]', space=smem, size = 0x4, offset = 0x4, fixed_abs, tag = 'smem constant byte address 0x4 - core index']
  #allocation1 [shape = 'u32[144,128]{1,0:T(1,128)}', space=vmem, size = 0x12000, scoped, tag = 'internal scratch']
  %s0 = inlined_call_operand.vmem [shape: f32[4,32,150], index: 0, kind: input, shape index: {}]
  %s1 = inlined_call_operand.vmem [shape: f32[150,128], index: 1, kind: input, shape index: {}]
  %s2 = inlined_call_operand.vmem [shape: f32[1,128], index: 2, kind: input, shape index: {}]
  %s3 = inlined_call_operand.vmem [shape: f32[32,128], index: 3, kind: output, shape index: {}]
  %s4 = sld [smem:[#allocation0]]
  $region22: #{lenet_forward.4} parent=0
    _
  %s6 = ssub.s32 1, %s4
  %s7 = scalar_select 0, %s6, %s4
  // Predicated region
  $region2: #{lenet_forward.4} parent=0 // pred_check
    _
  $region3: #{lenet_forward.4} parent=0 // pred_check_branch
    %9 = sbr.rel (0) target = $region5
  $region4: #{lenet_forward.4} parent=0 // pred_region
    _
  $region5: #{lenet_forward.4} parent=0 // pred_fallthru
    _
  // Predicated region
  $region6: #{lenet_forward.4} parent=0 // pred_check
    _
  $region7: #{lenet_forward.4} parent=0 // pred_check_branch
    %11 = sbr.rel (0) target = $region9
  $region8: #{lenet_forward.4} parent=0 // pred_region
    _
  $region9: #{lenet_forward.4} parent=0 // pred_fallthru
    _
  // Predicated region
  $region10: #{lenet_forward.4} parent=0 // pred_check
    _
  $region11: #{lenet_forward.4} parent=0 // pred_check_branch
    %13 = sbr.rel (0) target = $region13
  $region12: #{lenet_forward.4} parent=0 // pred_region
    _
  $region13: #{lenet_forward.4} parent=0 // pred_fallthru
    _
  %v14 = vld [vmem:[%s1] sm:$0xff]
  %v15 = vld [vmem:[%s1 + $0x8] sm:$0xff]
  %v16 = vld [vmem:[%s1 + $0x10] sm:$0xff]
  %v17 = vld [vmem:[%s1 + $0x18] sm:$0xff]
  %v18 = vld [vmem:[%s1 + $0x20] sm:$0xff]
  %v19 = vld [vmem:[%s1 + $0x28] sm:$0xff]
  %v20 = vld [vmem:[%s1 + $0x30] sm:$0xff]
  %v21 = vld [vmem:[%s1 + $0x38] sm:$0xff]
  %v22 = vld [vmem:[%s1 + $0x40] sm:$0xff]
  %v23 = vld [vmem:[%s1 + $0x48] sm:$0xff]
  %v24 = vld [vmem:[%s1 + $0x50] sm:$0xff]
  %v25 = vld [vmem:[%s1 + $0x58] sm:$0xff]
  %v26 = vld [vmem:[%s1 + $0x60] sm:$0xff]
  %v27 = vld [vmem:[%s1 + $0x68] sm:$0xff]
  %v28 = vld [vmem:[%s1 + $0x70] sm:$0xff]
  %v29 = vld [vmem:[%s1 + $0x78] sm:$0xff]
  %v30 = vld [vmem:[%s1 + $0x80] sm:$0xff]
  %v31 = vld [vmem:[%s1 + $0x88] sm:$0xff]
  %v32 = vld [vmem:[%s1 + $0x90] sm:$0x3f]
  %v33 = vld [vmem:[%s0] sm:$0xff]
  %v34 = vld [vmem:[%s0 + $0x8] sm:$0xff]
  %v35 = vld [vmem:[%s0 + $0x10] sm:$0xff]
  %v36 = vld [vmem:[%s0 + $0x18] sm:$0xff]
  %v37 = vld [vmem:[%s0 + $0x20] sm:$0xff]
  %v38 = vld [vmem:[%s0 + $0x28] sm:$0xff]
  %v39 = vld [vmem:[%s0 + $0x30] sm:$0xff]
  %v40 = vld [vmem:[%s0 + $0x38] sm:$0xff]
  %vm41 = vcmask 179200
  %v43 = vsel %vm41, %v34, 0
  %v46 = vsel %vm41, %v36, 0
  %v49 = vsel %vm41, %v38, 0
  %v52 = vsel %vm41, %v40, 0
  %vm54 = vcmask 1045504
  %v56 = vsel %vm54, %v32, 0
  %58 = vmatprep.subr.mxu0 0.0
  %59 = vmatpush1.msra.mxu0 %v14
  %60 = vmatprep.subr.mxu0 0.0
  %61 = vmatpush1.msra.mxu0 %v15
  %62 = vmatprep.subr.mxu0 0.0
  %63 = vmatpush1.msra.mxu0 %v16
  %64 = vmatprep.subr.mxu0 0.0
  %65 = vmatpush1.msra.mxu0 %v17
  %66 = vmatprep.subr.mxu0 0.0
  %67 = vmatpush1.msra.mxu0 %v18
  %68 = vmatprep.subr.mxu0 0.0
  %69 = vmatpush1.msra.mxu0 %v19
  %70 = vmatprep.subr.mxu0 0.0
  %71 = vmatpush1.msra.mxu0 %v20
  %72 = vmatprep.subr.mxu0 0.0
  %73 = vmatpush1.msra.mxu0 %v21
  %74 = vmatprep.subr.mxu0 0.0
  %75 = vmatpush1.msra.mxu0 %v22
  %76 = vmatprep.subr.mxu0 0.0
  %77 = vmatpush1.msra.mxu0 %v23
  %78 = vmatprep.subr.mxu0 0.0
  %79 = vmatpush1.msra.mxu0 %v24
  %80 = vmatprep.subr.mxu0 0.0
  %81 = vmatpush1.msra.mxu0 %v25
  %82 = vmatprep.subr.mxu0 0.0
  %83 = vmatpush1.msra.mxu0 %v26
  %84 = vmatprep.subr.mxu0 0.0
  %85 = vmatpush1.msra.mxu0 %v27
  %86 = vmatprep.subr.mxu0 0.0
  %87 = vmatpush1.msra.mxu0 %v28
  %88 = vmatprep.subr.mxu0 0.0
  %89 = vmatpush1.msra.mxu0 %v29
  %90 = vmatprep.subr.mxu0 0.0
  %91 = vmatpush1.msra.mxu0 %v30
  %92 = vmatprep.subr.mxu0 0.0
  %93 = vmatpush1.msra.mxu0 %v31
  %94 = vmatprep.subr.mxu0 0.0
  %95 = vmatpush1.msra.mxu0 %v56
  %96 = vmatprep.subr.mxu0 0.0
  %97 = vmatpush1.msra.mxu0 0.0
  %98 = vmatprep.subr.mxu0 0.0
  %99 = vmatpush1.msra.mxu0 0.0
  %100 = vmatprep.subr.mxu0 0.0
  %101 = vmatpush1.msra.mxu0 0.0
  %102 = vmatprep.subr.mxu0 0.0
  %103 = vmatpush1.msra.mxu0 0.0
  %104 = vmatprep.subr.mxu0 0.0
  %105 = vmatpush1.msra.mxu0 0.0
  %106 = vmatprep.subr.mxu0 0.0
  %107 = vmatpush1.msra.mxu0 0.0
  %108 = vmatprep.subr.mxu0 0.0
  %109 = vmatpush1.msra.mxu0 0.0
  %110 = vmatprep.subr.mxu0 0.0
  %111 = vmatpush1.msra.mxu0 0.0
  %112 = vmatprep.subr.mxu0 0.0
  %113 = vmatpush1.msra.mxu0 0.0
  %114 = vmatprep.subr.mxu0 0.0
  %115 = vmatpush1.msra.mxu0 0.0
  %116 = vmatprep.subr.mxu0 0.0
  %117 = vmatpush1.msra.mxu0 0.0
  %118 = vmatprep.subr.mxu0 0.0
  %119 = vmatpush1.msra.mxu0 0.0
  %120 = vmatprep.subr.mxu0 0.0
  %121 = vmatpush1.msra.mxu0 0.0
  %122 = vmatprep.mubr.f32.mxu0 %v43
  %123 = vmatmul.mubr.f32.gmra.mrb[0].mxu0 %v33
  %v124 = vpop.f32.mrb[0].mxu0
  %v125 = vadd.f32 0.0, %v124
  %v126 = vpop.f32.mrb[0].mxu0
  %127 = vmatprep.mubr.f32.mxu0 %v46
  %128 = vmatmul.mubr.f32.gmra.mrb[0].mxu0 %v35
  %v129 = vpop.f32.mrb[0].mxu0
  %v130 = vadd.f32 0.0, %v129
  %v131 = vpop.f32.mrb[0].mxu0
  %132 = vmatprep.mubr.f32.mxu0 %v49
  %133 = vmatmul.mubr.f32.gmra.mrb[0].mxu0 %v37
  %v134 = vpop.f32.mrb[0].mxu0
  %v135 = vadd.f32 0.0, %v134
  %v136 = vpop.f32.mrb[0].mxu0
  %137 = vmatprep.mubr.f32.mxu0 %v52
  %138 = vmatmul.mubr.f32.gmra.mrb[0].mxu0 %v39
  %v139 = vpop.f32.mrb[0].mxu0
  %v140 = vadd.f32 0.0, %v139
  %v141 = vpop.f32.mrb[0].mxu0
  %142 = vdwg.mxu0
  %s143 = scalar_lea.vmem %s0, 64
  %v144 = vld [vmem:[%s143] sm:$0xff]
  %v145 = vld [vmem:[%s143 + $0x8] sm:$0xff]
  %v146 = vld [vmem:[%s143 + $0x10] sm:$0xff]
  %v147 = vld [vmem:[%s143 + $0x18] sm:$0xff]
  %v148 = vld [vmem:[%s143 + $0x20] sm:$0xff]
  %v149 = vld [vmem:[%s143 + $0x28] sm:$0xff]
  %v150 = vld [vmem:[%s143 + $0x30] sm:$0xff]
  %v151 = vld [vmem:[%s143 + $0x38] sm:$0xff]
  %v153 = vsel %vm41, %v145, 0
  %v156 = vsel %vm41, %v147, 0
  %v159 = vsel %vm41, %v149, 0
  %v162 = vsel %vm41, %v151, 0
  %164 = vmatprep.subr.mxu0 0.0
  %165 = vmatpush1.msra.mxu0 %v14
  %166 = vmatprep.subr.mxu0 0.0
  %167 = vmatpush1.msra.mxu0 %v15
  %168 = vmatprep.subr.mxu0 0.0
  %169 = vmatpush1.msra.mxu0 %v16
  %170 = vmatprep.subr.mxu0 0.0
  %171 = vmatpush1.msra.mxu0 %v17
  %172 = vmatprep.subr.mxu0 0.0
  %173 = vmatpush1.msra.mxu0 %v18
  %174 = vmatprep.subr.mxu0 0.0
  %175 = vmatpush1.msra.mxu0 %v19
  %176 = vmatprep.subr.mxu0 0.0
  %177 = vmatpush1.msra.mxu0 %v20
  %178 = vmatprep.subr.mxu0 0.0
  %179 = vmatpush1.msra.mxu0 %v21
  %180 = vmatprep.subr.mxu0 0.0
  %181 = vmatpush1.msra.mxu0 %v22
  %182 = vmatprep.subr.mxu0 0.0
  %183 = vmatpush1.msra.mxu0 %v23
  %184 = vmatprep.subr.mxu0 0.0
  %185 = vmatpush1.msra.mxu0 %v24
  %186 = vmatprep.subr.mxu0 0.0
  %187 = vmatpush1.msra.mxu0 %v25
  %188 = vmatprep.subr.mxu0 0.0
  %189 = vmatpush1.msra.mxu0 %v26
  %190 = vmatprep.subr.mxu0 0.0
  %191 = vmatpush1.msra.mxu0 %v27
  %192 = vmatprep.subr.mxu0 0.0
  %193 = vmatpush1.msra.mxu0 %v28
  %194 = vmatprep.subr.mxu0 0.0
  %195 = vmatpush1.msra.mxu0 %v29
  %196 = vmatprep.subr.mxu0 0.0
  %197 = vmatpush1.msra.mxu0 %v30
  %198 = vmatprep.subr.mxu0 0.0
  %199 = vmatpush1.msra.mxu0 %v31
  %200 = vmatprep.subr.mxu0 0.0
  %201 = vmatpush1.msra.mxu0 %v56
  %202 = vmatprep.subr.mxu0 0.0
  %203 = vmatpush1.msra.mxu0 0.0
  %204 = vmatprep.subr.mxu0 0.0
  %205 = vmatpush1.msra.mxu0 0.0
  %206 = vmatprep.subr.mxu0 0.0
  %207 = vmatpush1.msra.mxu0 0.0
  %208 = vmatprep.subr.mxu0 0.0
  %209 = vmatpush1.msra.mxu0 0.0
  %210 = vmatprep.subr.mxu0 0.0
  %211 = vmatpush1.msra.mxu0 0.0
  %212 = vmatprep.subr.mxu0 0.0
  %213 = vmatpush1.msra.mxu0 0.0
  %214 = vmatprep.subr.mxu0 0.0
  %215 = vmatpush1.msra.mxu0 0.0
  %216 = vmatprep.subr.mxu0 0.0
  %217 = vmatpush1.msra.mxu0 0.0
  %218 = vmatprep.subr.mxu0 0.0
  %219 = vmatpush1.msra.mxu0 0.0
  %220 = vmatprep.subr.mxu0 0.0
  %221 = vmatpush1.msra.mxu0 0.0
  %222 = vmatprep.subr.mxu0 0.0
  %223 = vmatpush1.msra.mxu0 0.0
  %224 = vmatprep.subr.mxu0 0.0
  %225 = vmatpush1.msra.mxu0 0.0
  %226 = vmatprep.subr.mxu0 0.0
  %227 = vmatpush1.msra.mxu0 0.0
  %228 = vmatprep.mubr.f32.mxu0 %v153
  %229 = vmatmul.mubr.f32.gmra.mrb[0].mxu0 %v144
  %v230 = vpop.f32.mrb[0].mxu0
  %v231 = vadd.f32 0.0, %v230
  %v232 = vpop.f32.mrb[0].mxu0
  %233 = vmatprep.mubr.f32.mxu0 %v156
  %234 = vmatmul.mubr.f32.gmra.mrb[0].mxu0 %v146
  %v235 = vpop.f32.mrb[0].mxu0
  %v236 = vadd.f32 0.0, %v235
  %v237 = vpop.f32.mrb[0].mxu0
  %238 = vmatprep.mubr.f32.mxu0 %v159
  %239 = vmatmul.mubr.f32.gmra.mrb[0].mxu0 %v148
  %v240 = vpop.f32.mrb[0].mxu0
  %v241 = vadd.f32 0.0, %v240
  %v242 = vpop.f32.mrb[0].mxu0
  %243 = vmatprep.mubr.f32.mxu0 %v162
  %244 = vmatmul.mubr.f32.gmra.mrb[0].mxu0 %v150
  %v245 = vpop.f32.mrb[0].mxu0
  %v246 = vadd.f32 0.0, %v245
  %v247 = vpop.f32.mrb[0].mxu0
  %248 = vdwg.mxu0
  %v249 = vmax.f32 %v125, %v231
  %v250 = vmax.f32 %v130, %v236
  %v251 = vmax.f32 %v135, %v241
  %v252 = vmax.f32 %v140, %v246
  %s253 = scalar_lea.vmem %s0, 128
  %v254 = vld [vmem:[%s253] sm:$0xff]
  %v255 = vld [vmem:[%s253 + $0x8] sm:$0xff]
  %v256 = vld [vmem:[%s253 + $0x10] sm:$0xff]
  %v257 = vld [vmem:[%s253 + $0x18] sm:$0xff]
  %v258 = vld [vmem:[%s253 + $0x20] sm:$0xff]
  %v259 = vld [vmem:[%s253 + $0x28] sm:$0xff]
  %v260 = vld [vmem:[%s253 + $0x30] sm:$0xff]
  %v261 = vld [vmem:[%s253 + $0x38] sm:$0xff]
  %v263 = vsel %vm41, %v255, 0
  %v266 = vsel %vm41, %v257, 0
  %v269 = vsel %vm41, %v259, 0
  %v272 = vsel %vm41, %v261, 0
  %274 = vmatprep.subr.mxu0 0.0
  %275 = vmatpush1.msra.mxu0 %v14
  %276 = vmatprep.subr.mxu0 0.0
  %277 = vmatpush1.msra.mxu0 %v15
  %278 = vmatprep.subr.mxu0 0.0
  %279 = vmatpush1.msra.mxu0 %v16
  %280 = vmatprep.subr.mxu0 0.0
  %281 = vmatpush1.msra.mxu0 %v17
  %282 = vmatprep.subr.mxu0 0.0
  %283 = vmatpush1.msra.mxu0 %v18
  %284 = vmatprep.subr.mxu0 0.0
  %285 = vmatpush1.msra.mxu0 %v19
  %286 = vmatprep.subr.mxu0 0.0
  %287 = vmatpush1.msra.mxu0 %v20
  %288 = vmatprep.subr.mxu0 0.0
  %289 = vmatpush1.msra.mxu0 %v21
  %290 = vmatprep.subr.mxu0 0.0
  %291 = vmatpush1.msra.mxu0 %v22
  %292 = vmatprep.subr.mxu0 0.0
  %293 = vmatpush1.msra.mxu0 %v23
  %294 = vmatprep.subr.mxu0 0.0
  %295 = vmatpush1.msra.mxu0 %v24
  %296 = vmatprep.subr.mxu0 0.0
  %297 = vmatpush1.msra.mxu0 %v25
  %298 = vmatprep.subr.mxu0 0.0
  %299 = vmatpush1.msra.mxu0 %v26
  %300 = vmatprep.subr.mxu0 0.0
  %301 = vmatpush1.msra.mxu0 %v27
  %302 = vmatprep.subr.mxu0 0.0
  %303 = vmatpush1.msra.mxu0 %v28
  %304 = vmatprep.subr.mxu0 0.0
  %305 = vmatpush1.msra.mxu0 %v29
  %306 = vmatprep.subr.mxu0 0.0
  %307 = vmatpush1.msra.mxu0 %v30
  %308 = vmatprep.subr.mxu0 0.0
  %309 = vmatpush1.msra.mxu0 %v31
  %310 = vmatprep.subr.mxu0 0.0
  %311 = vmatpush1.msra.mxu0 %v56
  %312 = vmatprep.subr.mxu0 0.0
  %313 = vmatpush1.msra.mxu0 0.0
  %314 = vmatprep.subr.mxu0 0.0
  %315 = vmatpush1.msra.mxu0 0.0
  %316 = vmatprep.subr.mxu0 0.0
  %317 = vmatpush1.msra.mxu0 0.0
  %318 = vmatprep.subr.mxu0 0.0
  %319 = vmatpush1.msra.mxu0 0.0
  %320 = vmatprep.subr.mxu0 0.0
  %321 = vmatpush1.msra.mxu0 0.0
  %322 = vmatprep.subr.mxu0 0.0
  %323 = vmatpush1.msra.mxu0 0.0
  %324 = vmatprep.subr.mxu0 0.0
  %325 = vmatpush1.msra.mxu0 0.0
  %326 = vmatprep.subr.mxu0 0.0
  %327 = vmatpush1.msra.mxu0 0.0
  %328 = vmatprep.subr.mxu0 0.0
  %329 = vmatpush1.msra.mxu0 0.0
  %330 = vmatprep.subr.mxu0 0.0
  %331 = vmatpush1.msra.mxu0 0.0
  %332 = vmatprep.subr.mxu0 0.0
  %333 = vmatpush1.msra.mxu0 0.0
  %334 = vmatprep.subr.mxu0 0.0
  %335 = vmatpush1.msra.mxu0 0.0
  %336 = vmatprep.subr.mxu0 0.0
  %337 = vmatpush1.msra.mxu0 0.0
  %338 = vmatprep.mubr.f32.mxu0 %v263
  %339 = vmatmul.mubr.f32.gmra.mrb[0].mxu0 %v254
  %v340 = vpop.f32.mrb[0].mxu0
  %v341 = vadd.f32 0.0, %v340
  %v342 = vpop.f32.mrb[0].mxu0
  %343 = vmatprep.mubr.f32.mxu0 %v266
  %344 = vmatmul.mubr.f32.gmra.mrb[0].mxu0 %v256
  %v345 = vpop.f32.mrb[0].mxu0
  %v346 = vadd.f32 0.0, %v345
  %v347 = vpop.f32.mrb[0].mxu0
  %348 = vmatprep.mubr.f32.mxu0 %v269
  %349 = vmatmul.mubr.f32.gmra.mrb[0].mxu0 %v258
  %v350 = vpop.f32.mrb[0].mxu0
  %v351 = vadd.f32 0.0, %v350
  %v352 = vpop.f32.mrb[0].mxu0
  %353 = vmatprep.mubr.f32.mxu0 %v272
  %354 = vmatmul.mubr.f32.gmra.mrb[0].mxu0 %v260
  %v355 = vpop.f32.mrb[0].mxu0
  %v356 = vadd.f32 0.0, %v355
  %v357 = vpop.f32.mrb[0].mxu0
  %358 = vdwg.mxu0
  %v359 = vmax.f32 %v249, %v341
  %v360 = vmax.f32 %v250, %v346
  %v361 = vmax.f32 %v251, %v351
  %v362 = vmax.f32 %v252, %v356
  %s363 = scalar_lea.vmem %s0, 192
  %v364 = vld [vmem:[%s363] sm:$0xff]
  %v365 = vld [vmem:[%s363 + $0x8] sm:$0xff]
  %v366 = vld [vmem:[%s363 + $0x10] sm:$0xff]
  %v367 = vld [vmem:[%s363 + $0x18] sm:$0xff]
  %v368 = vld [vmem:[%s363 + $0x20] sm:$0xff]
  %v369 = vld [vmem:[%s363 + $0x28] sm:$0xff]
  %v370 = vld [vmem:[%s363 + $0x30] sm:$0xff]
  %v371 = vld [vmem:[%s363 + $0x38] sm:$0xff]
  %v373 = vsel %vm41, %v365, 0
  %v376 = vsel %vm41, %v367, 0
  %v379 = vsel %vm41, %v369, 0
  %v382 = vsel %vm41, %v371, 0
  %384 = vmatprep.subr.mxu0 0.0
  %385 = vmatpush1.msra.mxu0 %v14
  %386 = vmatprep.subr.mxu0 0.0
  %387 = vmatpush1.msra.mxu0 %v15
  %388 = vmatprep.subr.mxu0 0.0
  %389 = vmatpush1.msra.mxu0 %v16
  %390 = vmatprep.subr.mxu0 0.0
  %391 = vmatpush1.msra.mxu0 %v17
  %392 = vmatprep.subr.mxu0 0.0
  %393 = vmatpush1.msra.mxu0 %v18
  %394 = vmatprep.subr.mxu0 0.0
  %395 = vmatpush1.msra.mxu0 %v19
  %396 = vmatprep.subr.mxu0 0.0
  %397 = vmatpush1.msra.mxu0 %v20
  %398 = vmatprep.subr.mxu0 0.0
  %399 = vmatpush1.msra.mxu0 %v21
  %400 = vmatprep.subr.mxu0 0.0
  %401 = vmatpush1.msra.mxu0 %v22
  %402 = vmatprep.subr.mxu0 0.0
  %403 = vmatpush1.msra.mxu0 %v23
  %404 = vmatprep.subr.mxu0 0.0
  %405 = vmatpush1.msra.mxu0 %v24
  %406 = vmatprep.subr.mxu0 0.0
  %407 = vmatpush1.msra.mxu0 %v25
  %408 = vmatprep.subr.mxu0 0.0
  %409 = vmatpush1.msra.mxu0 %v26
  %410 = vmatprep.subr.mxu0 0.0
  %411 = vmatpush1.msra.mxu0 %v27
  %412 = vmatprep.subr.mxu0 0.0
  %413 = vmatpush1.msra.mxu0 %v28
  %414 = vmatprep.subr.mxu0 0.0
  %415 = vmatpush1.msra.mxu0 %v29
  %416 = vmatprep.subr.mxu0 0.0
  %417 = vmatpush1.msra.mxu0 %v30
  %418 = vmatprep.subr.mxu0 0.0
  %419 = vmatpush1.msra.mxu0 %v31
  %420 = vmatprep.subr.mxu0 0.0
  %421 = vmatpush1.msra.mxu0 %v56
  %422 = vmatprep.subr.mxu0 0.0
  %423 = vmatpush1.msra.mxu0 0.0
  %424 = vmatprep.subr.mxu0 0.0
  %425 = vmatpush1.msra.mxu0 0.0
  %426 = vmatprep.subr.mxu0 0.0
  %427 = vmatpush1.msra.mxu0 0.0
  %428 = vmatprep.subr.mxu0 0.0
  %429 = vmatpush1.msra.mxu0 0.0
  %430 = vmatprep.subr.mxu0 0.0
  %431 = vmatpush1.msra.mxu0 0.0
  %432 = vmatprep.subr.mxu0 0.0
  %433 = vmatpush1.msra.mxu0 0.0
  %434 = vmatprep.subr.mxu0 0.0
  %435 = vmatpush1.msra.mxu0 0.0
  %436 = vmatprep.subr.mxu0 0.0
  %437 = vmatpush1.msra.mxu0 0.0
  %438 = vmatprep.subr.mxu0 0.0
  %439 = vmatpush1.msra.mxu0 0.0
  %440 = vmatprep.subr.mxu0 0.0
  %441 = vmatpush1.msra.mxu0 0.0
  %442 = vmatprep.subr.mxu0 0.0
  %443 = vmatpush1.msra.mxu0 0.0
  %444 = vmatprep.subr.mxu0 0.0
  %445 = vmatpush1.msra.mxu0 0.0
  %446 = vmatprep.subr.mxu0 0.0
  %447 = vmatpush1.msra.mxu0 0.0
  %448 = vmatprep.mubr.f32.mxu0 %v373
  %449 = vmatmul.mubr.f32.gmra.mrb[0].mxu0 %v364
  %v450 = vpop.f32.mrb[0].mxu0
  %v451 = vadd.f32 0.0, %v450
  %v452 = vpop.f32.mrb[0].mxu0
  %453 = vmatprep.mubr.f32.mxu0 %v376
  %454 = vmatmul.mubr.f32.gmra.mrb[0].mxu0 %v366
  %v455 = vpop.f32.mrb[0].mxu0
  %v456 = vadd.f32 0.0, %v455
  %v457 = vpop.f32.mrb[0].mxu0
  %458 = vmatprep.mubr.f32.mxu0 %v379
  %459 = vmatmul.mubr.f32.gmra.mrb[0].mxu0 %v368
  %v460 = vpop.f32.mrb[0].mxu0
  %v461 = vadd.f32 0.0, %v460
  %v462 = vpop.f32.mrb[0].mxu0
  %463 = vmatprep.mubr.f32.mxu0 %v382
  %464 = vmatmul.mubr.f32.gmra.mrb[0].mxu0 %v370
  %v465 = vpop.f32.mrb[0].mxu0
  %v466 = vadd.f32 0.0, %v465
  %v467 = vpop.f32.mrb[0].mxu0
  %468 = vdwg.mxu0
  %v469 = vmax.f32 %v359, %v451
  %v470 = vmax.f32 %v360, %v456
  %v471 = vmax.f32 %v361, %v461
  %v472 = vmax.f32 %v362, %v466
  %v473 = vld [vmem:[%s2] sm:$0x1]
  %v475 = vlaneseq
  %v476 = vshrl.u32 %v475, 7
  %v477 = vsub.s32 0, %v476
  %v478 = vrot.slane %v473, %v477
  %v480 = vadd.f32 %v469, %v478
  %v481 = vadd.f32 %v470, %v478
  %v482 = vadd.f32 %v471, %v478
  %v483 = vadd.f32 %v472, %v478
  %v484 = vmax.f32 %v480, 0.0
  %v485 = vmax.f32 %v481, 0.0
  %v486 = vmax.f32 %v482, 0.0
  %v487 = vmax.f32 %v483, 0.0
  %488 = vst [vmem:[%s3] sm:$0xff] %v484
  %489 = vst [vmem:[%s3 + $0x8] sm:$0xff] %v485
  %490 = vst [vmem:[%s3 + $0x10] sm:$0xff] %v486
  %491 = vst [vmem:[%s3 + $0x18] sm:$0xff] %v487
  // Predicated region
  $region14: #{lenet_forward.4} parent=0 // pred_check
    _
  $region15: #{lenet_forward.4} parent=0 // pred_check_branch
    %493 = sbr.rel (0) target = $region17
  $region16: #{lenet_forward.4} parent=0 // pred_region
    _
  $region17: #{lenet_forward.4} parent=0 // pred_fallthru
    _
  // Predicated region
  $region18: #{lenet_forward.4} parent=0 // pred_check
    _
  $region19: #{lenet_forward.4} parent=0 // pred_check_branch
    %495 = sbr.rel (0) target = $region21
  $region20: #{lenet_forward.4} parent=0 // pred_region
    _
  $region21: #{lenet_forward.4} parent=0 // pred_fallthru
    _

// kernel: lenet_forward.5
$region0: #{lenet_forward.5}
  #allocation0 [shape = 'u32[]', space=smem, size = 0x4, offset = 0x4, fixed_abs, tag = 'smem constant byte address 0x4 - core index']
  #allocation1 [shape = 'u32[144,128]{1,0:T(1,128)}', space=vmem, size = 0x12000, scoped, tag = 'internal scratch']
  %s0 = inlined_call_operand.vmem [shape: f32[8,2048], index: 0, kind: input, shape index: {}]
  %s1 = inlined_call_operand.vmem [shape: f32[2048,128], index: 1, kind: input, shape index: {}]
  %s2 = inlined_call_operand.vmem [shape: f32[1,128], index: 2, kind: input, shape index: {}]
  %s3 = inlined_call_operand.vmem [shape: f32[128,128], index: 3, kind: input, shape index: {}]
  %s4 = inlined_call_operand.vmem [shape: f32[1,128], index: 4, kind: input, shape index: {}]
  %s5 = inlined_call_operand.vmem [shape: f32[128,128], index: 5, kind: input, shape index: {}]
  %s6 = inlined_call_operand.vmem [shape: f32[1,128], index: 6, kind: input, shape index: {}]
  %s7 = inlined_call_operand.vmem [shape: f32[8,128], index: 7, kind: output, shape index: {}]
  %s8 = sld [smem:[#allocation0]]
  $region38: #{lenet_forward.5} parent=0
    _
  %s10 = ssub.s32 1, %s8
  %s11 = scalar_select 0, %s10, %s8
  // Predicated region
  $region2: #{lenet_forward.5} parent=0 // pred_check
    _
  $region3: #{lenet_forward.5} parent=0 // pred_check_branch
    %13 = sbr.rel (0) target = $region5
  $region4: #{lenet_forward.5} parent=0 // pred_region
    _
  $region5: #{lenet_forward.5} parent=0 // pred_fallthru
    _
  // Predicated region
  $region6: #{lenet_forward.5} parent=0 // pred_check
    _
  $region7: #{lenet_forward.5} parent=0 // pred_check_branch
    %15 = sbr.rel (0) target = $region9
  $region8: #{lenet_forward.5} parent=0 // pred_region
    _
  $region9: #{lenet_forward.5} parent=0 // pred_fallthru
    _
  // Predicated region
  $region10: #{lenet_forward.5} parent=0 // pred_check
    _
  $region11: #{lenet_forward.5} parent=0 // pred_check_branch
    %17 = sbr.rel (0) target = $region13
  $region12: #{lenet_forward.5} parent=0 // pred_region
    _
  $region13: #{lenet_forward.5} parent=0 // pred_fallthru
    _
  // Predicated region
  $region14: #{lenet_forward.5} parent=0 // pred_check
    _
  $region15: #{lenet_forward.5} parent=0 // pred_check_branch
    %19 = sbr.rel (0) target = $region17
  $region16: #{lenet_forward.5} parent=0 // pred_region
    _
  $region17: #{lenet_forward.5} parent=0 // pred_fallthru
    _
  // Predicated region
  $region18: #{lenet_forward.5} parent=0 // pred_check
    _
  $region19: #{lenet_forward.5} parent=0 // pred_check_branch
    %21 = sbr.rel (0) target = $region21
  $region20: #{lenet_forward.5} parent=0 // pred_region
    _
  $region21: #{lenet_forward.5} parent=0 // pred_fallthru
    _
  // Predicated region
  $region22: #{lenet_forward.5} parent=0 // pred_check
    _
  $region23: #{lenet_forward.5} parent=0 // pred_check_branch
    %23 = sbr.rel (0) target = $region25
  $region24: #{lenet_forward.5} parent=0 // pred_region
    _
  $region25: #{lenet_forward.5} parent=0 // pred_fallthru
    _
  // Predicated region
  $region26: #{lenet_forward.5} parent=0 // pred_check
    _
  $region27: #{lenet_forward.5} parent=0 // pred_check_branch
    %25 = sbr.rel (0) target = $region29
  $region28: #{lenet_forward.5} parent=0 // pred_region
    _
  $region29: #{lenet_forward.5} parent=0 // pred_fallthru
    _
  %v26 = vld [vmem:[%s0] sm:$0xff]
  %v27 = vld [vmem:[%s0 + $0x8] sm:$0xff]
  %v28 = vld [vmem:[%s0 + $0x10] sm:$0xff]
  %v29 = vld [vmem:[%s0 + $0x18] sm:$0xff]
  %v30 = vld [vmem:[%s0 + $0x20] sm:$0xff]
  %v31 = vld [vmem:[%s0 + $0x28] sm:$0xff]
  %v32 = vld [vmem:[%s0 + $0x30] sm:$0xff]
  %v33 = vld [vmem:[%s0 + $0x38] sm:$0xff]
  %v34 = vld [vmem:[%s0 + $0x40] sm:$0xff]
  %v35 = vld [vmem:[%s0 + $0x48] sm:$0xff]
  %v36 = vld [vmem:[%s0 + $0x50] sm:$0xff]
  %v37 = vld [vmem:[%s0 + $0x58] sm:$0xff]
  %v38 = vld [vmem:[%s0 + $0x60] sm:$0xff]
  %v39 = vld [vmem:[%s0 + $0x68] sm:$0xff]
  %v40 = vld [vmem:[%s0 + $0x70] sm:$0xff]
  %v41 = vld [vmem:[%s0 + $0x78] sm:$0xff]
  %v42 = vld [vmem:[%s1] sm:$0xff]
  %v43 = vld [vmem:[%s1 + $0x8] sm:$0xff]
  %v44 = vld [vmem:[%s1 + $0x10] sm:$0xff]
  %v45 = vld [vmem:[%s1 + $0x18] sm:$0xff]
  %v46 = vld [vmem:[%s1 + $0x20] sm:$0xff]
  %v47 = vld [vmem:[%s1 + $0x28] sm:$0xff]
  %v48 = vld [vmem:[%s1 + $0x30] sm:$0xff]
  %v49 = vld [vmem:[%s1 + $0x38] sm:$0xff]
  %v50 = vld [vmem:[%s1 + $0x40] sm:$0xff]
  %v51 = vld [vmem:[%s1 + $0x48] sm:$0xff]
  %v52 = vld [vmem:[%s1 + $0x50] sm:$0xff]
  %v53 = vld [vmem:[%s1 + $0x58] sm:$0xff]
  %v54 = vld [vmem:[%s1 + $0x60] sm:$0xff]
  %v55 = vld [vmem:[%s1 + $0x68] sm:$0xff]
  %v56 = vld [vmem:[%s1 + $0x70] sm:$0xff]
  %v57 = vld [vmem:[%s1 + $0x78] sm:$0xff]
  %v58 = vld [vmem:[%s1 + $0x80] sm:$0xff]
  %v59 = vld [vmem:[%s1 + $0x88] sm:$0xff]
  %v60 = vld [vmem:[%s1 + $0x90] sm:$0xff]
  %v61 = vld [vmem:[%s1 + $0x98] sm:$0xff]
  %v62 = vld [vmem:[%s1 + $0xa0] sm:$0xff]
  %v63 = vld [vmem:[%s1 + $0xa8] sm:$0xff]
  %v64 = vld [vmem:[%s1 + $0xb0] sm:$0xff]
  %v65 = vld [vmem:[%s1 + $0xb8] sm:$0xff]
  %v66 = vld [vmem:[%s1 + $0xc0] sm:$0xff]
  %v67 = vld [vmem:[%s1 + $0xc8] sm:$0xff]
  %v68 = vld [vmem:[%s1 + $0xd0] sm:$0xff]
  %v69 = vld [vmem:[%s1 + $0xd8] sm:$0xff]
  %v70 = vld [vmem:[%s1 + $0xe0] sm:$0xff]
  %v71 = vld [vmem:[%s1 + $0xe8] sm:$0xff]
  %v72 = vld [vmem:[%s1 + $0xf0] sm:$0xff]
  %v73 = vld [vmem:[%s1 + $0xf8] sm:$0xff]
  %v74 = vld [vmem:[%s1 + $0x100] sm:$0xff]
  %v75 = vld [vmem:[%s1 + $0x108] sm:$0xff]
  %v76 = vld [vmem:[%s1 + $0x110] sm:$0xff]
  %v77 = vld [vmem:[%s1 + $0x118] sm:$0xff]
  %v78 = vld [vmem:[%s1 + $0x120] sm:$0xff]
  %v79 = vld [vmem:[%s1 + $0x128] sm:$0xff]
  %v80 = vld [vmem:[%s1 + $0x130] sm:$0xff]
  %v81 = vld [vmem:[%s1 + $0x138] sm:$0xff]
  %v82 = vld [vmem:[%s1 + $0x140] sm:$0xff]
  %v83 = vld [vmem:[%s1 + $0x148] sm:$0xff]
  %v84 = vld [vmem:[%s1 + $0x150] sm:$0xff]
  %v85 = vld [vmem:[%s1 + $0x158] sm:$0xff]
  %v86 = vld [vmem:[%s1 + $0x160] sm:$0xff]
  %v87 = vld [vmem:[%s1 + $0x168] sm:$0xff]
  %v88 = vld [vmem:[%s1 + $0x170] sm:$0xff]
  %v89 = vld [vmem:[%s1 + $0x178] sm:$0xff]
  %v90 = vld [vmem:[%s1 + $0x180] sm:$0xff]
  %v91 = vld [vmem:[%s1 + $0x188] sm:$0xff]
  %v92 = vld [vmem:[%s1 + $0x190] sm:$0xff]
  %v93 = vld [vmem:[%s1 + $0x198] sm:$0xff]
  %v94 = vld [vmem:[%s1 + $0x1a0] sm:$0xff]
  %v95 = vld [vmem:[%s1 + $0x1a8] sm:$0xff]
  %v96 = vld [vmem:[%s1 + $0x1b0] sm:$0xff]
  %v97 = vld [vmem:[%s1 + $0x1b8] sm:$0xff]
  %v98 = vld [vmem:[%s1 + $0x1c0] sm:$0xff]
  %v99 = vld [vmem:[%s1 + $0x1c8] sm:$0xff]
  %v100 = vld [vmem:[%s1 + $0x1d0] sm:$0xff]
  %v101 = vld [vmem:[%s1 + $0x1d8] sm:$0xff]
  %v102 = vld [vmem:[%s1 + $0x1e0] sm:$0xff]
  %v103 = vld [vmem:[%s1 + $0x1e8] sm:$0xff]
  %v104 = vld [vmem:[%s1 + $0x1f0] sm:$0xff]
  %v105 = vld [vmem:[%s1 + $0x1f8] sm:$0xff]
  %v106 = vld [vmem:[%s1 + $0x200] sm:$0xff]
  %v107 = vld [vmem:[%s1 + $0x208] sm:$0xff]
  %v108 = vld [vmem:[%s1 + $0x210] sm:$0xff]
  %v109 = vld [vmem:[%s1 + $0x218] sm:$0xff]
  %v110 = vld [vmem:[%s1 + $0x220] sm:$0xff]
  %v111 = vld [vmem:[%s1 + $0x228] sm:$0xff]
  %v112 = vld [vmem:[%s1 + $0x230] sm:$0xff]
  %v113 = vld [vmem:[%s1 + $0x238] sm:$0xff]
  %v114 = vld [vmem:[%s1 + $0x240] sm:$0xff]
  %v115 = vld [vmem:[%s1 + $0x248] sm:$0xff]
  %v116 = vld [vmem:[%s1 + $0x250] sm:$0xff]
  %v117 = vld [vmem:[%s1 + $0x258] sm:$0xff]
  %v118 = vld [vmem:[%s1 + $0x260] sm:$0xff]
  %v119 = vld [vmem:[%s1 + $0x268] sm:$0xff]
  %v120 = vld [vmem:[%s1 + $0x270] sm:$0xff]
  %v121 = vld [vmem:[%s1 + $0x278] sm:$0xff]
  %v122 = vld [vmem:[%s1 + $0x280] sm:$0xff]
  %v123 = vld [vmem:[%s1 + $0x288] sm:$0xff]
  %v124 = vld [vmem:[%s1 + $0x290] sm:$0xff]
  %v125 = vld [vmem:[%s1 + $0x298] sm:$0xff]
  %v126 = vld [vmem:[%s1 + $0x2a0] sm:$0xff]
  %v127 = vld [vmem:[%s1 + $0x2a8] sm:$0xff]
  %v128 = vld [vmem:[%s1 + $0x2b0] sm:$0xff]
  %v129 = vld [vmem:[%s1 + $0x2b8] sm:$0xff]
  %v130 = vld [vmem:[%s1 + $0x2c0] sm:$0xff]
  %v131 = vld [vmem:[%s1 + $0x2c8] sm:$0xff]
  %v132 = vld [vmem:[%s1 + $0x2d0] sm:$0xff]
  %v133 = vld [vmem:[%s1 + $0x2d8] sm:$0xff]
  %v134 = vld [vmem:[%s1 + $0x2e0] sm:$0xff]
  %v135 = vld [vmem:[%s1 + $0x2e8] sm:$0xff]
  %v136 = vld [vmem:[%s1 + $0x2f0] sm:$0xff]
  %v137 = vld [vmem:[%s1 + $0x2f8] sm:$0xff]
  %v138 = vld [vmem:[%s1 + $0x300] sm:$0xff]
  %v139 = vld [vmem:[%s1 + $0x308] sm:$0xff]
  %v140 = vld [vmem:[%s1 + $0x310] sm:$0xff]
  %v141 = vld [vmem:[%s1 + $0x318] sm:$0xff]
  %v142 = vld [vmem:[%s1 + $0x320] sm:$0xff]
  %v143 = vld [vmem:[%s1 + $0x328] sm:$0xff]
  %v144 = vld [vmem:[%s1 + $0x330] sm:$0xff]
  %v145 = vld [vmem:[%s1 + $0x338] sm:$0xff]
  %v146 = vld [vmem:[%s1 + $0x340] sm:$0xff]
  %v147 = vld [vmem:[%s1 + $0x348] sm:$0xff]
  %v148 = vld [vmem:[%s1 + $0x350] sm:$0xff]
  %v149 = vld [vmem:[%s1 + $0x358] sm:$0xff]
  %v150 = vld [vmem:[%s1 + $0x360] sm:$0xff]
  %v151 = vld [vmem:[%s1 + $0x368] sm:$0xff]
  %v152 = vld [vmem:[%s1 + $0x370] sm:$0xff]
  %v153 = vld [vmem:[%s1 + $0x378] sm:$0xff]
  %v154 = vld [vmem:[%s1 + $0x380] sm:$0xff]
  %v155 = vld [vmem:[%s1 + $0x388] sm:$0xff]
  %v156 = vld [vmem:[%s1 + $0x390] sm:$0xff]
  %v157 = vld [vmem:[%s1 + $0x398] sm:$0xff]
  %v158 = vld [vmem:[%s1 + $0x3a0] sm:$0xff]
  %v159 = vld [vmem:[%s1 + $0x3a8] sm:$0xff]
  %v160 = vld [vmem:[%s1 + $0x3b0] sm:$0xff]
  %v161 = vld [vmem:[%s1 + $0x3b8] sm:$0xff]
  %v162 = vld [vmem:[%s1 + $0x3c0] sm:$0xff]
  %v163 = vld [vmem:[%s1 + $0x3c8] sm:$0xff]
  %v164 = vld [vmem:[%s1 + $0x3d0] sm:$0xff]
  %v165 = vld [vmem:[%s1 + $0x3d8] sm:$0xff]
  %v166 = vld [vmem:[%s1 + $0x3e0] sm:$0xff]
  %v167 = vld [vmem:[%s1 + $0x3e8] sm:$0xff]
  %v168 = vld [vmem:[%s1 + $0x3f0] sm:$0xff]
  %v169 = vld [vmem:[%s1 + $0x3f8] sm:$0xff]
  %v170 = vld [vmem:[%s1 + $0x400] sm:$0xff]
  %v171 = vld [vmem:[%s1 + $0x408] sm:$0xff]
  %v172 = vld [vmem:[%s1 + $0x410] sm:$0xff]
  %v173 = vld [vmem:[%s1 + $0x418] sm:$0xff]
  %v174 = vld [vmem:[%s1 + $0x420] sm:$0xff]
  %v175 = vld [vmem:[%s1 + $0x428] sm:$0xff]
  %v176 = vld [vmem:[%s1 + $0x430] sm:$0xff]
  %v177 = vld [vmem:[%s1 + $0x438] sm:$0xff]
  %v178 = vld [vmem:[%s1 + $0x440] sm:$0xff]
  %v179 = vld [vmem:[%s1 + $0x448] sm:$0xff]
  %v180 = vld [vmem:[%s1 + $0x450] sm:$0xff]
  %v181 = vld [vmem:[%s1 + $0x458] sm:$0xff]
  %v182 = vld [vmem:[%s1 + $0x460] sm:$0xff]
  %v183 = vld [vmem:[%s1 + $0x468] sm:$0xff]
  %v184 = vld [vmem:[%s1 + $0x470] sm:$0xff]
  %v185 = vld [vmem:[%s1 + $0x478] sm:$0xff]
  %v186 = vld [vmem:[%s1 + $0x480] sm:$0xff]
  %v187 = vld [vmem:[%s1 + $0x488] sm:$0xff]
  %v188 = vld [vmem:[%s1 + $0x490] sm:$0xff]
  %v189 = vld [vmem:[%s1 + $0x498] sm:$0xff]
  %v190 = vld [vmem:[%s1 + $0x4a0] sm:$0xff]
  %v191 = vld [vmem:[%s1 + $0x4a8] sm:$0xff]
  %v192 = vld [vmem:[%s1 + $0x4b0] sm:$0xff]
  %v193 = vld [vmem:[%s1 + $0x4b8] sm:$0xff]
  %v194 = vld [vmem:[%s1 + $0x4c0] sm:$0xff]
  %v195 = vld [vmem:[%s1 + $0x4c8] sm:$0xff]
  %v196 = vld [vmem:[%s1 + $0x4d0] sm:$0xff]
  %v197 = vld [vmem:[%s1 + $0x4d8] sm:$0xff]
  %v198 = vld [vmem:[%s1 + $0x4e0] sm:$0xff]
  %v199 = vld [vmem:[%s1 + $0x4e8] sm:$0xff]
  %v200 = vld [vmem:[%s1 + $0x4f0] sm:$0xff]
  %v201 = vld [vmem:[%s1 + $0x4f8] sm:$0xff]
  %v202 = vld [vmem:[%s1 + $0x500] sm:$0xff]
  %v203 = vld [vmem:[%s1 + $0x508] sm:$0xff]
  %v204 = vld [vmem:[%s1 + $0x510] sm:$0xff]
  %v205 = vld [vmem:[%s1 + $0x518] sm:$0xff]
  %v206 = vld [vmem:[%s1 + $0x520] sm:$0xff]
  %v207 = vld [vmem:[%s1 + $0x528] sm:$0xff]
  %v208 = vld [vmem:[%s1 + $0x530] sm:$0xff]
  %v209 = vld [vmem:[%s1 + $0x538] sm:$0xff]
  %v210 = vld [vmem:[%s1 + $0x540] sm:$0xff]
  %v211 = vld [vmem:[%s1 + $0x548] sm:$0xff]
  %v212 = vld [vmem:[%s1 + $0x550] sm:$0xff]
  %v213 = vld [vmem:[%s1 + $0x558] sm:$0xff]
  %v214 = vld [vmem:[%s1 + $0x560] sm:$0xff]
  %v215 = vld [vmem:[%s1 + $0x568] sm:$0xff]
  %v216 = vld [vmem:[%s1 + $0x570] sm:$0xff]
  %v217 = vld [vmem:[%s1 + $0x578] sm:$0xff]
  %v218 = vld [vmem:[%s1 + $0x580] sm:$0xff]
  %v219 = vld [vmem:[%s1 + $0x588] sm:$0xff]
  %v220 = vld [vmem:[%s1 + $0x590] sm:$0xff]
  %v221 = vld [vmem:[%s1 + $0x598] sm:$0xff]
  %v222 = vld [vmem:[%s1 + $0x5a0] sm:$0xff]
  %v223 = vld [vmem:[%s1 + $0x5a8] sm:$0xff]
  %v224 = vld [vmem:[%s1 + $0x5b0] sm:$0xff]
  %v225 = vld [vmem:[%s1 + $0x5b8] sm:$0xff]
  %v226 = vld [vmem:[%s1 + $0x5c0] sm:$0xff]
  %v227 = vld [vmem:[%s1 + $0x5c8] sm:$0xff]
  %v228 = vld [vmem:[%s1 + $0x5d0] sm:$0xff]
  %v229 = vld [vmem:[%s1 + $0x5d8] sm:$0xff]
  %v230 = vld [vmem:[%s1 + $0x5e0] sm:$0xff]
  %v231 = vld [vmem:[%s1 + $0x5e8] sm:$0xff]
  %v232 = vld [vmem:[%s1 + $0x5f0] sm:$0xff]
  %v233 = vld [vmem:[%s1 + $0x5f8] sm:$0xff]
  %v234 = vld [vmem:[%s1 + $0x600] sm:$0xff]
  %v235 = vld [vmem:[%s1 + $0x608] sm:$0xff]
  %v236 = vld [vmem:[%s1 + $0x610] sm:$0xff]
  %v237 = vld [vmem:[%s1 + $0x618] sm:$0xff]
  %v238 = vld [vmem:[%s1 + $0x620] sm:$0xff]
  %v239 = vld [vmem:[%s1 + $0x628] sm:$0xff]
  %v240 = vld [vmem:[%s1 + $0x630] sm:$0xff]
  %v241 = vld [vmem:[%s1 + $0x638] sm:$0xff]
  %v242 = vld [vmem:[%s1 + $0x640] sm:$0xff]
  %v243 = vld [vmem:[%s1 + $0x648] sm:$0xff]
  %v244 = vld [vmem:[%s1 + $0x650] sm:$0xff]
  %v245 = vld [vmem:[%s1 + $0x658] sm:$0xff]
  %v246 = vld [vmem:[%s1 + $0x660] sm:$0xff]
  %v247 = vld [vmem:[%s1 + $0x668] sm:$0xff]
  %v248 = vld [vmem:[%s1 + $0x670] sm:$0xff]
  %v249 = vld [vmem:[%s1 + $0x678] sm:$0xff]
  %v250 = vld [vmem:[%s1 + $0x680] sm:$0xff]
  %v251 = vld [vmem:[%s1 + $0x688] sm:$0xff]
  %v252 = vld [vmem:[%s1 + $0x690] sm:$0xff]
  %v253 = vld [vmem:[%s1 + $0x698] sm:$0xff]
  %v254 = vld [vmem:[%s1 + $0x6a0] sm:$0xff]
  %v255 = vld [vmem:[%s1 + $0x6a8] sm:$0xff]
  %v256 = vld [vmem:[%s1 + $0x6b0] sm:$0xff]
  %v257 = vld [vmem:[%s1 + $0x6b8] sm:$0xff]
  %v258 = vld [vmem:[%s1 + $0x6c0] sm:$0xff]
  %v259 = vld [vmem:[%s1 + $0x6c8] sm:$0xff]
  %v260 = vld [vmem:[%s1 + $0x6d0] sm:$0xff]
  %v261 = vld [vmem:[%s1 + $0x6d8] sm:$0xff]
  %v262 = vld [vmem:[%s1 + $0x6e0] sm:$0xff]
  %v263 = vld [vmem:[%s1 + $0x6e8] sm:$0xff]
  %v264 = vld [vmem:[%s1 + $0x6f0] sm:$0xff]
  %v265 = vld [vmem:[%s1 + $0x6f8] sm:$0xff]
  %v266 = vld [vmem:[%s1 + $0x700] sm:$0xff]
  %v267 = vld [vmem:[%s1 + $0x708] sm:$0xff]
  %v268 = vld [vmem:[%s1 + $0x710] sm:$0xff]
  %v269 = vld [vmem:[%s1 + $0x718] sm:$0xff]
  %v270 = vld [vmem:[%s1 + $0x720] sm:$0xff]
  %v271 = vld [vmem:[%s1 + $0x728] sm:$0xff]
  %v272 = vld [vmem:[%s1 + $0x730] sm:$0xff]
  %v273 = vld [vmem:[%s1 + $0x738] sm:$0xff]
  %v274 = vld [vmem:[%s1 + $0x740] sm:$0xff]
  %v275 = vld [vmem:[%s1 + $0x748] sm:$0xff]
  %v276 = vld [vmem:[%s1 + $0x750] sm:$0xff]
  %v277 = vld [vmem:[%s1 + $0x758] sm:$0xff]
  %v278 = vld [vmem:[%s1 + $0x760] sm:$0xff]
  %v279 = vld [vmem:[%s1 + $0x768] sm:$0xff]
  %v280 = vld [vmem:[%s1 + $0x770] sm:$0xff]
  %v281 = vld [vmem:[%s1 + $0x778] sm:$0xff]
  %v282 = vld [vmem:[%s1 + $0x780] sm:$0xff]
  %v283 = vld [vmem:[%s1 + $0x788] sm:$0xff]
  %v284 = vld [vmem:[%s1 + $0x790] sm:$0xff]
  %v285 = vld [vmem:[%s1 + $0x798] sm:$0xff]
  %v286 = vld [vmem:[%s1 + $0x7a0] sm:$0xff]
  %v287 = vld [vmem:[%s1 + $0x7a8] sm:$0xff]
  %v288 = vld [vmem:[%s1 + $0x7b0] sm:$0xff]
  %v289 = vld [vmem:[%s1 + $0x7b8] sm:$0xff]
  %v290 = vld [vmem:[%s1 + $0x7c0] sm:$0xff]
  %v291 = vld [vmem:[%s1 + $0x7c8] sm:$0xff]
  %v292 = vld [vmem:[%s1 + $0x7d0] sm:$0xff]
  %v293 = vld [vmem:[%s1 + $0x7d8] sm:$0xff]
  %v294 = vld [vmem:[%s1 + $0x7e0] sm:$0xff]
  %v295 = vld [vmem:[%s1 + $0x7e8] sm:$0xff]
  %v296 = vld [vmem:[%s1 + $0x7f0] sm:$0xff]
  %v297 = vld [vmem:[%s1 + $0x7f8] sm:$0xff]
  %v298 = vld [vmem:[%s2] sm:$0x1]
  %v300 = vlaneseq
  %v301 = vshrl.u32 %v300, 7
  %v302 = vsub.s32 0, %v301
  %v303 = vrot.slane %v298, %v302
  %305 = vmatprep.subr.mxu0 0.0
  %306 = vmatpush1.msra.mxu0 %v42
  %307 = vmatprep.subr.mxu0 0.0
  %308 = vmatpush1.msra.mxu0 %v43
  %309 = vmatprep.subr.mxu0 0.0
  %310 = vmatpush1.msra.mxu0 %v44
  %311 = vmatprep.subr.mxu0 0.0
  %312 = vmatpush1.msra.mxu0 %v45
  %313 = vmatprep.subr.mxu0 0.0
  %314 = vmatpush1.msra.mxu0 %v46
  %315 = vmatprep.subr.mxu0 0.0
  %316 = vmatpush1.msra.mxu0 %v47
  %317 = vmatprep.subr.mxu0 0.0
  %318 = vmatpush1.msra.mxu0 %v48
  %319 = vmatprep.subr.mxu0 0.0
  %320 = vmatpush1.msra.mxu0 %v49
  %321 = vmatprep.subr.mxu0 0.0
  %322 = vmatpush1.msra.mxu0 %v50
  %323 = vmatprep.subr.mxu0 0.0
  %324 = vmatpush1.msra.mxu0 %v51
  %325 = vmatprep.subr.mxu0 0.0
  %326 = vmatpush1.msra.mxu0 %v52
  %327 = vmatprep.subr.mxu0 0.0
  %328 = vmatpush1.msra.mxu0 %v53
  %329 = vmatprep.subr.mxu0 0.0
  %330 = vmatpush1.msra.mxu0 %v54
  %331 = vmatprep.subr.mxu0 0.0
  %332 = vmatpush1.msra.mxu0 %v55
  %333 = vmatprep.subr.mxu0 0.0
  %334 = vmatpush1.msra.mxu0 %v56
  %335 = vmatprep.subr.mxu0 0.0
  %336 = vmatpush1.msra.mxu0 %v57
  %337 = vmatprep.subr.mxu0 0.0
  %338 = vmatpush1.msra.mxu0 %v58
  %339 = vmatprep.subr.mxu0 0.0
  %340 = vmatpush1.msra.mxu0 %v59
  %341 = vmatprep.subr.mxu0 0.0
  %342 = vmatpush1.msra.mxu0 %v60
  %343 = vmatprep.subr.mxu0 0.0
  %344 = vmatpush1.msra.mxu0 %v61
  %345 = vmatprep.subr.mxu0 0.0
  %346 = vmatpush1.msra.mxu0 %v62
  %347 = vmatprep.subr.mxu0 0.0
  %348 = vmatpush1.msra.mxu0 %v63
  %349 = vmatprep.subr.mxu0 0.0
  %350 = vmatpush1.msra.mxu0 %v64
  %351 = vmatprep.subr.mxu0 0.0
  %352 = vmatpush1.msra.mxu0 %v65
  %353 = vmatprep.subr.mxu0 0.0
  %354 = vmatpush1.msra.mxu0 %v66
  %355 = vmatprep.subr.mxu0 0.0
  %356 = vmatpush1.msra.mxu0 %v67
  %357 = vmatprep.subr.mxu0 0.0
  %358 = vmatpush1.msra.mxu0 %v68
  %359 = vmatprep.subr.mxu0 0.0
  %360 = vmatpush1.msra.mxu0 %v69
  %361 = vmatprep.subr.mxu0 0.0
  %362 = vmatpush1.msra.mxu0 %v70
  %363 = vmatprep.subr.mxu0 0.0
  %364 = vmatpush1.msra.mxu0 %v71
  %365 = vmatprep.subr.mxu0 0.0
  %366 = vmatpush1.msra.mxu0 %v72
  %367 = vmatprep.subr.mxu0 0.0
  %368 = vmatpush1.msra.mxu0 %v73
  %369 = vmatprep.mubr.f32.mxu0 %v27
  %370 = vmatmul.mubr.f32.gmra.mrb[0].mxu0 %v26
  %v371 = vpop.f32.mrb[0].mxu0
  %v372 = vadd.f32 %v303, %v371
  %v373 = vpop.f32.mrb[0].mxu0
  %374 = vdwg.mxu0
  %375 = vmatprep.subr.mxu0 0.0
  %376 = vmatpush1.msra.mxu0 %v74
  %377 = vmatprep.subr.mxu0 0.0
  %378 = vmatpush1.msra.mxu0 %v75
  %379 = vmatprep.subr.mxu0 0.0
  %380 = vmatpush1.msra.mxu0 %v76
  %381 = vmatprep.subr.mxu0 0.0
  %382 = vmatpush1.msra.mxu0 %v77
  %383 = vmatprep.subr.mxu0 0.0
  %384 = vmatpush1.msra.mxu0 %v78
  %385 = vmatprep.subr.mxu0 0.0
  %386 = vmatpush1.msra.mxu0 %v79
  %387 = vmatprep.subr.mxu0 0.0
  %388 = vmatpush1.msra.mxu0 %v80
  %389 = vmatprep.subr.mxu0 0.0
  %390 = vmatpush1.msra.mxu0 %v81
  %391 = vmatprep.subr.mxu0 0.0
  %392 = vmatpush1.msra.mxu0 %v82
  %393 = vmatprep.subr.mxu0 0.0
  %394 = vmatpush1.msra.mxu0 %v83
  %395 = vmatprep.subr.mxu0 0.0
  %396 = vmatpush1.msra.mxu0 %v84
  %397 = vmatprep.subr.mxu0 0.0
  %398 = vmatpush1.msra.mxu0 %v85
  %399 = vmatprep.subr.mxu0 0.0
  %400 = vmatpush1.msra.mxu0 %v86
  %401 = vmatprep.subr.mxu0 0.0
  %402 = vmatpush1.msra.mxu0 %v87
  %403 = vmatprep.subr.mxu0 0.0
  %404 = vmatpush1.msra.mxu0 %v88
  %405 = vmatprep.subr.mxu0 0.0
  %406 = vmatpush1.msra.mxu0 %v89
  %407 = vmatprep.subr.mxu0 0.0
  %408 = vmatpush1.msra.mxu0 %v90
  %409 = vmatprep.subr.mxu0 0.0
  %410 = vmatpush1.msra.mxu0 %v91
  %411 = vmatprep.subr.mxu0 0.0
  %412 = vmatpush1.msra.mxu0 %v92
  %413 = vmatprep.subr.mxu0 0.0
  %414 = vmatpush1.msra.mxu0 %v93
  %415 = vmatprep.subr.mxu0 0.0
  %416 = vmatpush1.msra.mxu0 %v94
  %417 = vmatprep.subr.mxu0 0.0
  %418 = vmatpush1.msra.mxu0 %v95
  %419 = vmatprep.subr.mxu0 0.0
  %420 = vmatpush1.msra.mxu0 %v96
  %421 = vmatprep.subr.mxu0 0.0
  %422 = vmatpush1.msra.mxu0 %v97
  %423 = vmatprep.subr.mxu0 0.0
  %424 = vmatpush1.msra.mxu0 %v98
  %425 = vmatprep.subr.mxu0 0.0
  %426 = vmatpush1.msra.mxu0 %v99
  %427 = vmatprep.subr.mxu0 0.0
  %428 = vmatpush1.msra.mxu0 %v100
  %429 = vmatprep.subr.mxu0 0.0
  %430 = vmatpush1.msra.mxu0 %v101
  %431 = vmatprep.subr.mxu0 0.0
  %432 = vmatpush1.msra.mxu0 %v102
  %433 = vmatprep.subr.mxu0 0.0
  %434 = vmatpush1.msra.mxu0 %v103
  %435 = vmatprep.subr.mxu0 0.0
  %436 = vmatpush1.msra.mxu0 %v104
  %437 = vmatprep.subr.mxu0 0.0
  %438 = vmatpush1.msra.mxu0 %v105
  %439 = vmatprep.mubr.f32.mxu0 %v29
  %440 = vmatmul.mubr.f32.gmra.mrb[0].mxu0 %v28
  %v441 = vpop.f32.mrb[0].mxu0
  %v442 = vadd.f32 %v372, %v441
  %v443 = vpop.f32.mrb[0].mxu0
  %444 = vdwg.mxu0
  %445 = vmatprep.subr.mxu0 0.0
  %446 = vmatpush1.msra.mxu0 %v106
  %447 = vmatprep.subr.mxu0 0.0
  %448 = vmatpush1.msra.mxu0 %v107
  %449 = vmatprep.subr.mxu0 0.0
  %450 = vmatpush1.msra.mxu0 %v108
  %451 = vmatprep.subr.mxu0 0.0
  %452 = vmatpush1.msra.mxu0 %v109
  %453 = vmatprep.subr.mxu0 0.0
  %454 = vmatpush1.msra.mxu0 %v110
  %455 = vmatprep.subr.mxu0 0.0
  %456 = vmatpush1.msra.mxu0 %v111
  %457 = vmatprep.subr.mxu0 0.0
  %458 = vmatpush1.msra.mxu0 %v112
  %459 = vmatprep.subr.mxu0 0.0
  %460 = vmatpush1.msra.mxu0 %v113
  %461 = vmatprep.subr.mxu0 0.0
  %462 = vmatpush1.msra.mxu0 %v114
  %463 = vmatprep.subr.mxu0 0.0
  %464 = vmatpush1.msra.mxu0 %v115
  %465 = vmatprep.subr.mxu0 0.0
  %466 = vmatpush1.msra.mxu0 %v116
  %467 = vmatprep.subr.mxu0 0.0
  %468 = vmatpush1.msra.mxu0 %v117
  %469 = vmatprep.subr.mxu0 0.0
  %470 = vmatpush1.msra.mxu0 %v118
  %471 = vmatprep.subr.mxu0 0.0
  %472 = vmatpush1.msra.mxu0 %v119
  %473 = vmatprep.subr.mxu0 0.0
  %474 = vmatpush1.msra.mxu0 %v120
  %475 = vmatprep.subr.mxu0 0.0
  %476 = vmatpush1.msra.mxu0 %v121
  %477 = vmatprep.subr.mxu0 0.0
  %478 = vmatpush1.msra.mxu0 %v122
  %479 = vmatprep.subr.mxu0 0.0
  %480 = vmatpush1.msra.mxu0 %v123
  %481 = vmatprep.subr.mxu0 0.0
  %482 = vmatpush1.msra.mxu0 %v124
  %483 = vmatprep.subr.mxu0 0.0
  %484 = vmatpush1.msra.mxu0 %v125
  %485 = vmatprep.subr.mxu0 0.0
  %486 = vmatpush1.msra.mxu0 %v126
  %487 = vmatprep.subr.mxu0 0.0
  %488 = vmatpush1.msra.mxu0 %v127
  %489 = vmatprep.subr.mxu0 0.0
  %490 = vmatpush1.msra.mxu0 %v128
  %491 = vmatprep.subr.mxu0 0.0
  %492 = vmatpush1.msra.mxu0 %v129
  %493 = vmatprep.subr.mxu0 0.0
  %494 = vmatpush1.msra.mxu0 %v130
  %495 = vmatprep.subr.mxu0 0.0
  %496 = vmatpush1.msra.mxu0 %v131
  %497 = vmatprep.subr.mxu0 0.0
  %498 = vmatpush1.msra.mxu0 %v132
  %499 = vmatprep.subr.mxu0 0.0
  %500 = vmatpush1.msra.mxu0 %v133
  %501 = vmatprep.subr.mxu0 0.0
  %502 = vmatpush1.msra.mxu0 %v134
  %503 = vmatprep.subr.mxu0 0.0
  %504 = vmatpush1.msra.mxu0 %v135
  %505 = vmatprep.subr.mxu0 0.0
  %506 = vmatpush1.msra.mxu0 %v136
  %507 = vmatprep.subr.mxu0 0.0
  %508 = vmatpush1.msra.mxu0 %v137
  %509 = vmatprep.mubr.f32.mxu0 %v31
  %510 = vmatmul.mubr.f32.gmra.mrb[0].mxu0 %v30
  %v511 = vpop.f32.mrb[0].mxu0
  %v512 = vadd.f32 %v442, %v511
  %v513 = vpop.f32.mrb[0].mxu0
  %514 = vdwg.mxu0
  %515 = vmatprep.subr.mxu0 0.0
  %516 = vmatpush1.msra.mxu0 %v138
  %517 = vmatprep.subr.mxu0 0.0
  %518 = vmatpush1.msra.mxu0 %v139
  %519 = vmatprep.subr.mxu0 0.0
  %520 = vmatpush1.msra.mxu0 %v140
  %521 = vmatprep.subr.mxu0 0.0
  %522 = vmatpush1.msra.mxu0 %v141
  %523 = vmatprep.subr.mxu0 0.0
  %524 = vmatpush1.msra.mxu0 %v142
  %525 = vmatprep.subr.mxu0 0.0
  %526 = vmatpush1.msra.mxu0 %v143
  %527 = vmatprep.subr.mxu0 0.0
  %528 = vmatpush1.msra.mxu0 %v144
  %529 = vmatprep.subr.mxu0 0.0
  %530 = vmatpush1.msra.mxu0 %v145
  %531 = vmatprep.subr.mxu0 0.0
  %532 = vmatpush1.msra.mxu0 %v146
  %533 = vmatprep.subr.mxu0 0.0
  %534 = vmatpush1.msra.mxu0 %v147
  %535 = vmatprep.subr.mxu0 0.0
  %536 = vmatpush1.msra.mxu0 %v148
  %537 = vmatprep.subr.mxu0 0.0
  %538 = vmatpush1.msra.mxu0 %v149
  %539 = vmatprep.subr.mxu0 0.0
  %540 = vmatpush1.msra.mxu0 %v150
  %541 = vmatprep.subr.mxu0 0.0
  %542 = vmatpush1.msra.mxu0 %v151
  %543 = vmatprep.subr.mxu0 0.0
  %544 = vmatpush1.msra.mxu0 %v152
  %545 = vmatprep.subr.mxu0 0.0
  %546 = vmatpush1.msra.mxu0 %v153
  %547 = vmatprep.subr.mxu0 0.0
  %548 = vmatpush1.msra.mxu0 %v154
  %549 = vmatprep.subr.mxu0 0.0
  %550 = vmatpush1.msra.mxu0 %v155
  %551 = vmatprep.subr.mxu0 0.0
  %552 = vmatpush1.msra.mxu0 %v156
  %553 = vmatprep.subr.mxu0 0.0
  %554 = vmatpush1.msra.mxu0 %v157
  %555 = vmatprep.subr.mxu0 0.0
  %556 = vmatpush1.msra.mxu0 %v158
  %557 = vmatprep.subr.mxu0 0.0
  %558 = vmatpush1.msra.mxu0 %v159
  %559 = vmatprep.subr.mxu0 0.0
  %560 = vmatpush1.msra.mxu0 %v160
  %561 = vmatprep.subr.mxu0 0.0
  %562 = vmatpush1.msra.mxu0 %v161
  %563 = vmatprep.subr.mxu0 0.0
  %564 = vmatpush1.msra.mxu0 %v162
  %565 = vmatprep.subr.mxu0 0.0
  %566 = vmatpush1.msra.mxu0 %v163
  %567 = vmatprep.subr.mxu0 0.0
  %568 = vmatpush1.msra.mxu0 %v164
  %569 = vmatprep.subr.mxu0 0.0
  %570 = vmatpush1.msra.mxu0 %v165
  %571 = vmatprep.subr.mxu0 0.0
  %572 = vmatpush1.msra.mxu0 %v166
  %573 = vmatprep.subr.mxu0 0.0
  %574 = vmatpush1.msra.mxu0 %v167
  %575 = vmatprep.subr.mxu0 0.0
  %576 = vmatpush1.msra.mxu0 %v168
  %577 = vmatprep.subr.mxu0 0.0
  %578 = vmatpush1.msra.mxu0 %v169
  %579 = vmatprep.mubr.f32.mxu0 %v33
  %580 = vmatmul.mubr.f32.gmra.mrb[0].mxu0 %v32
  %v581 = vpop.f32.mrb[0].mxu0
  %v582 = vadd.f32 %v512, %v581
  %v583 = vpop.f32.mrb[0].mxu0
  %584 = vdwg.mxu0
  %585 = vmatprep.subr.mxu0 0.0
  %586 = vmatpush1.msra.mxu0 %v170
  %587 = vmatprep.subr.mxu0 0.0
  %588 = vmatpush1.msra.mxu0 %v171
  %589 = vmatprep.subr.mxu0 0.0
  %590 = vmatpush1.msra.mxu0 %v172
  %591 = vmatprep.subr.mxu0 0.0
  %592 = vmatpush1.msra.mxu0 %v173
  %593 = vmatprep.subr.mxu0 0.0
  %594 = vmatpush1.msra.mxu0 %v174
  %595 = vmatprep.subr.mxu0 0.0
  %596 = vmatpush1.msra.mxu0 %v175
  %597 = vmatprep.subr.mxu0 0.0
  %598 = vmatpush1.msra.mxu0 %v176
  %599 = vmatprep.subr.mxu0 0.0
  %600 = vmatpush1.msra.mxu0 %v177
  %601 = vmatprep.subr.mxu0 0.0
  %602 = vmatpush1.msra.mxu0 %v178
  %603 = vmatprep.subr.mxu0 0.0
  %604 = vmatpush1.msra.mxu0 %v179
  %605 = vmatprep.subr.mxu0 0.0
  %606 = vmatpush1.msra.mxu0 %v180
  %607 = vmatprep.subr.mxu0 0.0
  %608 = vmatpush1.msra.mxu0 %v181
  %609 = vmatprep.subr.mxu0 0.0
  %610 = vmatpush1.msra.mxu0 %v182
  %611 = vmatprep.subr.mxu0 0.0
  %612 = vmatpush1.msra.mxu0 %v183
  %613 = vmatprep.subr.mxu0 0.0
  %614 = vmatpush1.msra.mxu0 %v184
  %615 = vmatprep.subr.mxu0 0.0
  %616 = vmatpush1.msra.mxu0 %v185
  %617 = vmatprep.subr.mxu0 0.0
  %618 = vmatpush1.msra.mxu0 %v186
  %619 = vmatprep.subr.mxu0 0.0
  %620 = vmatpush1.msra.mxu0 %v187
  %621 = vmatprep.subr.mxu0 0.0
  %622 = vmatpush1.msra.mxu0 %v188
  %623 = vmatprep.subr.mxu0 0.0
  %624 = vmatpush1.msra.mxu0 %v189
  %625 = vmatprep.subr.mxu0 0.0
  %626 = vmatpush1.msra.mxu0 %v190
  %627 = vmatprep.subr.mxu0 0.0
  %628 = vmatpush1.msra.mxu0 %v191
  %629 = vmatprep.subr.mxu0 0.0
  %630 = vmatpush1.msra.mxu0 %v192
  %631 = vmatprep.subr.mxu0 0.0
  %632 = vmatpush1.msra.mxu0 %v193
  %633 = vmatprep.subr.mxu0 0.0
  %634 = vmatpush1.msra.mxu0 %v194
  %635 = vmatprep.subr.mxu0 0.0
  %636 = vmatpush1.msra.mxu0 %v195
  %637 = vmatprep.subr.mxu0 0.0
  %638 = vmatpush1.msra.mxu0 %v196
  %639 = vmatprep.subr.mxu0 0.0
  %640 = vmatpush1.msra.mxu0 %v197
  %641 = vmatprep.subr.mxu0 0.0
  %642 = vmatpush1.msra.mxu0 %v198
  %643 = vmatprep.subr.mxu0 0.0
  %644 = vmatpush1.msra.mxu0 %v199
  %645 = vmatprep.subr.mxu0 0.0
  %646 = vmatpush1.msra.mxu0 %v200
  %647 = vmatprep.subr.mxu0 0.0
  %648 = vmatpush1.msra.mxu0 %v201
  %649 = vmatprep.mubr.f32.mxu0 %v35
  %650 = vmatmul.mubr.f32.gmra.mrb[0].mxu0 %v34
  %v651 = vpop.f32.mrb[0].mxu0
  %v652 = vadd.f32 %v582, %v651
  %v653 = vpop.f32.mrb[0].mxu0
  %654 = vdwg.mxu0
  %655 = vmatprep.subr.mxu0 0.0
  %656 = vmatpush1.msra.mxu0 %v202
  %657 = vmatprep.subr.mxu0 0.0
  %658 = vmatpush1.msra.mxu0 %v203
  %659 = vmatprep.subr.mxu0 0.0
  %660 = vmatpush1.msra.mxu0 %v204
  %661 = vmatprep.subr.mxu0 0.0
  %662 = vmatpush1.msra.mxu0 %v205
  %663 = vmatprep.subr.mxu0 0.0
  %664 = vmatpush1.msra.mxu0 %v206
  %665 = vmatprep.subr.mxu0 0.0
  %666 = vmatpush1.msra.mxu0 %v207
  %667 = vmatprep.subr.mxu0 0.0
  %668 = vmatpush1.msra.mxu0 %v208
  %669 = vmatprep.subr.mxu0 0.0
  %670 = vmatpush1.msra.mxu0 %v209
  %671 = vmatprep.subr.mxu0 0.0
  %672 = vmatpush1.msra.mxu0 %v210
  %673 = vmatprep.subr.mxu0 0.0
  %674 = vmatpush1.msra.mxu0 %v211
  %675 = vmatprep.subr.mxu0 0.0
  %676 = vmatpush1.msra.mxu0 %v212
  %677 = vmatprep.subr.mxu0 0.0
  %678 = vmatpush1.msra.mxu0 %v213
  %679 = vmatprep.subr.mxu0 0.0
  %680 = vmatpush1.msra.mxu0 %v214
  %681 = vmatprep.subr.mxu0 0.0
  %682 = vmatpush1.msra.mxu0 %v215
  %683 = vmatprep.subr.mxu0 0.0
  %684 = vmatpush1.msra.mxu0 %v216
  %685 = vmatprep.subr.mxu0 0.0
  %686 = vmatpush1.msra.mxu0 %v217
  %687 = vmatprep.subr.mxu0 0.0
  %688 = vmatpush1.msra.mxu0 %v218
  %689 = vmatprep.subr.mxu0 0.0
  %690 = vmatpush1.msra.mxu0 %v219
  %691 = vmatprep.subr.mxu0 0.0
  %692 = vmatpush1.msra.mxu0 %v220
  %693 = vmatprep.subr.mxu0 0.0
  %694 = vmatpush1.msra.mxu0 %v221
  %695 = vmatprep.subr.mxu0 0.0
  %696 = vmatpush1.msra.mxu0 %v222
  %697 = vmatprep.subr.mxu0 0.0
  %698 = vmatpush1.msra.mxu0 %v223
  %699 = vmatprep.subr.mxu0 0.0
  %700 = vmatpush1.msra.mxu0 %v224
  %701 = vmatprep.subr.mxu0 0.0
  %702 = vmatpush1.msra.mxu0 %v225
  %703 = vmatprep.subr.mxu0 0.0
  %704 = vmatpush1.msra.mxu0 %v226
  %705 = vmatprep.subr.mxu0 0.0
  %706 = vmatpush1.msra.mxu0 %v227
  %707 = vmatprep.subr.mxu0 0.0
  %708 = vmatpush1.msra.mxu0 %v228
  %709 = vmatprep.subr.mxu0 0.0
  %710 = vmatpush1.msra.mxu0 %v229
  %711 = vmatprep.subr.mxu0 0.0
  %712 = vmatpush1.msra.mxu0 %v230
  %713 = vmatprep.subr.mxu0 0.0
  %714 = vmatpush1.msra.mxu0 %v231
  %715 = vmatprep.subr.mxu0 0.0
  %716 = vmatpush1.msra.mxu0 %v232
  %717 = vmatprep.subr.mxu0 0.0
  %718 = vmatpush1.msra.mxu0 %v233
  %719 = vmatprep.mubr.f32.mxu0 %v37
  %720 = vmatmul.mubr.f32.gmra.mrb[0].mxu0 %v36
  %v721 = vpop.f32.mrb[0].mxu0
  %v722 = vadd.f32 %v652, %v721
  %v723 = vpop.f32.mrb[0].mxu0
  %724 = vdwg.mxu0
  %725 = vmatprep.subr.mxu0 0.0
  %726 = vmatpush1.msra.mxu0 %v234
  %727 = vmatprep.subr.mxu0 0.0
  %728 = vmatpush1.msra.mxu0 %v235
  %729 = vmatprep.subr.mxu0 0.0
  %730 = vmatpush1.msra.mxu0 %v236
  %731 = vmatprep.subr.mxu0 0.0
  %732 = vmatpush1.msra.mxu0 %v237
  %733 = vmatprep.subr.mxu0 0.0
  %734 = vmatpush1.msra.mxu0 %v238
  %735 = vmatprep.subr.mxu0 0.0
  %736 = vmatpush1.msra.mxu0 %v239
  %737 = vmatprep.subr.mxu0 0.0
  %738 = vmatpush1.msra.mxu0 %v240
  %739 = vmatprep.subr.mxu0 0.0
  %740 = vmatpush1.msra.mxu0 %v241
  %741 = vmatprep.subr.mxu0 0.0
  %742 = vmatpush1.msra.mxu0 %v242
  %743 = vmatprep.subr.mxu0 0.0
  %744 = vmatpush1.msra.mxu0 %v243
  %745 = vmatprep.subr.mxu0 0.0
  %746 = vmatpush1.msra.mxu0 %v244
  %747 = vmatprep.subr.mxu0 0.0
  %748 = vmatpush1.msra.mxu0 %v245
  %749 = vmatprep.subr.mxu0 0.0
  %750 = vmatpush1.msra.mxu0 %v246
  %751 = vmatprep.subr.mxu0 0.0
  %752 = vmatpush1.msra.mxu0 %v247
  %753 = vmatprep.subr.mxu0 0.0
  %754 = vmatpush1.msra.mxu0 %v248
  %755 = vmatprep.subr.mxu0 0.0
  %756 = vmatpush1.msra.mxu0 %v249
  %757 = vmatprep.subr.mxu0 0.0
  %758 = vmatpush1.msra.mxu0 %v250
  %759 = vmatprep.subr.mxu0 0.0
  %760 = vmatpush1.msra.mxu0 %v251
  %761 = vmatprep.subr.mxu0 0.0
  %762 = vmatpush1.msra.mxu0 %v252
  %763 = vmatprep.subr.mxu0 0.0
  %764 = vmatpush1.msra.mxu0 %v253
  %765 = vmatprep.subr.mxu0 0.0
  %766 = vmatpush1.msra.mxu0 %v254
  %767 = vmatprep.subr.mxu0 0.0
  %768 = vmatpush1.msra.mxu0 %v255
  %769 = vmatprep.subr.mxu0 0.0
  %770 = vmatpush1.msra.mxu0 %v256
  %771 = vmatprep.subr.mxu0 0.0
  %772 = vmatpush1.msra.mxu0 %v257
  %773 = vmatprep.subr.mxu0 0.0
  %774 = vmatpush1.msra.mxu0 %v258
  %775 = vmatprep.subr.mxu0 0.0
  %776 = vmatpush1.msra.mxu0 %v259
  %777 = vmatprep.subr.mxu0 0.0
  %778 = vmatpush1.msra.mxu0 %v260
  %779 = vmatprep.subr.mxu0 0.0
  %780 = vmatpush1.msra.mxu0 %v261
  %781 = vmatprep.subr.mxu0 0.0
  %782 = vmatpush1.msra.mxu0 %v262
  %783 = vmatprep.subr.mxu0 0.0
  %784 = vmatpush1.msra.mxu0 %v263
  %785 = vmatprep.subr.mxu0 0.0
  %786 = vmatpush1.msra.mxu0 %v264
  %787 = vmatprep.subr.mxu0 0.0
  %788 = vmatpush1.msra.mxu0 %v265
  %789 = vmatprep.mubr.f32.mxu0 %v39
  %790 = vmatmul.mubr.f32.gmra.mrb[0].mxu0 %v38
  %v791 = vpop.f32.mrb[0].mxu0
  %v792 = vadd.f32 %v722, %v791
  %v793 = vpop.f32.mrb[0].mxu0
  %794 = vdwg.mxu0
  %795 = vmatprep.subr.mxu0 0.0
  %796 = vmatpush1.msra.mxu0 %v266
  %797 = vmatprep.subr.mxu0 0.0
  %798 = vmatpush1.msra.mxu0 %v267
  %799 = vmatprep.subr.mxu0 0.0
  %800 = vmatpush1.msra.mxu0 %v268
  %801 = vmatprep.subr.mxu0 0.0
  %802 = vmatpush1.msra.mxu0 %v269
  %803 = vmatprep.subr.mxu0 0.0
  %804 = vmatpush1.msra.mxu0 %v270
  %805 = vmatprep.subr.mxu0 0.0
  %806 = vmatpush1.msra.mxu0 %v271
  %807 = vmatprep.subr.mxu0 0.0
  %808 = vmatpush1.msra.mxu0 %v272
  %809 = vmatprep.subr.mxu0 0.0
  %810 = vmatpush1.msra.mxu0 %v273
  %811 = vmatprep.subr.mxu0 0.0
  %812 = vmatpush1.msra.mxu0 %v274
  %813 = vmatprep.subr.mxu0 0.0
  %814 = vmatpush1.msra.mxu0 %v275
  %815 = vmatprep.subr.mxu0 0.0
  %816 = vmatpush1.msra.mxu0 %v276
  %817 = vmatprep.subr.mxu0 0.0
  %818 = vmatpush1.msra.mxu0 %v277
  %819 = vmatprep.subr.mxu0 0.0
  %820 = vmatpush1.msra.mxu0 %v278
  %821 = vmatprep.subr.mxu0 0.0
  %822 = vmatpush1.msra.mxu0 %v279
  %823 = vmatprep.subr.mxu0 0.0
  %824 = vmatpush1.msra.mxu0 %v280
  %825 = vmatprep.subr.mxu0 0.0
  %826 = vmatpush1.msra.mxu0 %v281
  %827 = vmatprep.subr.mxu0 0.0
  %828 = vmatpush1.msra.mxu0 %v282
  %829 = vmatprep.subr.mxu0 0.0
  %830 = vmatpush1.msra.mxu0 %v283
  %831 = vmatprep.subr.mxu0 0.0
  %832 = vmatpush1.msra.mxu0 %v284
  %833 = vmatprep.subr.mxu0 0.0
  %834 = vmatpush1.msra.mxu0 %v285
  %835 = vmatprep.subr.mxu0 0.0
  %836 = vmatpush1.msra.mxu0 %v286
  %837 = vmatprep.subr.mxu0 0.0
  %838 = vmatpush1.msra.mxu0 %v287
  %839 = vmatprep.subr.mxu0 0.0
  %840 = vmatpush1.msra.mxu0 %v288
  %841 = vmatprep.subr.mxu0 0.0
  %842 = vmatpush1.msra.mxu0 %v289
  %843 = vmatprep.subr.mxu0 0.0
  %844 = vmatpush1.msra.mxu0 %v290
  %845 = vmatprep.subr.mxu0 0.0
  %846 = vmatpush1.msra.mxu0 %v291
  %847 = vmatprep.subr.mxu0 0.0
  %848 = vmatpush1.msra.mxu0 %v292
  %849 = vmatprep.subr.mxu0 0.0
  %850 = vmatpush1.msra.mxu0 %v293
  %851 = vmatprep.subr.mxu0 0.0
  %852 = vmatpush1.msra.mxu0 %v294
  %853 = vmatprep.subr.mxu0 0.0
  %854 = vmatpush1.msra.mxu0 %v295
  %855 = vmatprep.subr.mxu0 0.0
  %856 = vmatpush1.msra.mxu0 %v296
  %857 = vmatprep.subr.mxu0 0.0
  %858 = vmatpush1.msra.mxu0 %v297
  %859 = vmatprep.mubr.f32.mxu0 %v41
  %860 = vmatmul.mubr.f32.gmra.mrb[0].mxu0 %v40
  %v861 = vpop.f32.mrb[0].mxu0
  %v862 = vadd.f32 %v792, %v861
  %v863 = vpop.f32.mrb[0].mxu0
  %864 = vdwg.mxu0
  %v865 = vmax.f32 %v862, 0.0
  %v866 = vld [vmem:[%s3] sm:$0xff]
  %v867 = vld [vmem:[%s3 + $0x8] sm:$0xff]
  %v868 = vld [vmem:[%s3 + $0x10] sm:$0xff]
  %v869 = vld [vmem:[%s3 + $0x18] sm:$0xff]
  %v870 = vld [vmem:[%s3 + $0x20] sm:$0xff]
  %v871 = vld [vmem:[%s3 + $0x28] sm:$0xff]
  %v872 = vld [vmem:[%s3 + $0x30] sm:$0xff]
  %v873 = vld [vmem:[%s3 + $0x38] sm:$0xff]
  %v874 = vld [vmem:[%s3 + $0x40] sm:$0xff]
  %v875 = vld [vmem:[%s3 + $0x48] sm:$0xff]
  %v876 = vld [vmem:[%s3 + $0x50] sm:$0xff]
  %v877 = vld [vmem:[%s3 + $0x58] sm:$0xff]
  %v878 = vld [vmem:[%s3 + $0x60] sm:$0xff]
  %v879 = vld [vmem:[%s3 + $0x68] sm:$0xff]
  %v880 = vld [vmem:[%s3 + $0x70] sm:$0xff]
  %v881 = vld [vmem:[%s3 + $0x78] sm:$0xff]
  %v882 = vld [vmem:[%s4] sm:$0x1]
  %v884 = vlaneseq
  %v885 = vshrl.u32 %v884, 7
  %v886 = vsub.s32 0, %v885
  %v887 = vrot.slane %v882, %v886
  %889 = vmatprep.subr.mxu0 0.0
  %890 = vmatpush1.msra.mxu0 %v866
  %891 = vmatprep.subr.mxu0 0.0
  %892 = vmatpush1.msra.mxu0 %v867
  %893 = vmatprep.subr.mxu0 0.0
  %894 = vmatpush1.msra.mxu0 %v868
  %895 = vmatprep.subr.mxu0 0.0
  %896 = vmatpush1.msra.mxu0 %v869
  %897 = vmatprep.subr.mxu0 0.0
  %898 = vmatpush1.msra.mxu0 %v870
  %899 = vmatprep.subr.mxu0 0.0
  %900 = vmatpush1.msra.mxu0 %v871
  %901 = vmatprep.subr.mxu0 0.0
  %902 = vmatpush1.msra.mxu0 %v872
  %903 = vmatprep.subr.mxu0 0.0
  %904 = vmatpush1.msra.mxu0 %v873
  %905 = vmatprep.subr.mxu0 0.0
  %906 = vmatpush1.msra.mxu0 %v874
  %907 = vmatprep.subr.mxu0 0.0
  %908 = vmatpush1.msra.mxu0 %v875
  %909 = vmatprep.subr.mxu0 0.0
  %910 = vmatpush1.msra.mxu0 %v876
  %911 = vmatprep.subr.mxu0 0.0
  %912 = vmatpush1.msra.mxu0 %v877
  %913 = vmatprep.subr.mxu0 0.0
  %914 = vmatpush1.msra.mxu0 %v878
  %915 = vmatprep.subr.mxu0 0.0
  %916 = vmatpush1.msra.mxu0 %v879
  %917 = vmatprep.subr.mxu0 0.0
  %918 = vmatpush1.msra.mxu0 %v880
  %919 = vmatprep.subr.mxu0 0.0
  %920 = vmatpush1.msra.mxu0 %v881
  %921 = vmatprep.subr.mxu0 0.0
  %922 = vmatpush1.msra.mxu0 0.0
  %923 = vmatprep.subr.mxu0 0.0
  %924 = vmatpush1.msra.mxu0 0.0
  %925 = vmatprep.subr.mxu0 0.0
  %926 = vmatpush1.msra.mxu0 0.0
  %927 = vmatprep.subr.mxu0 0.0
  %928 = vmatpush1.msra.mxu0 0.0
  %929 = vmatprep.subr.mxu0 0.0
  %930 = vmatpush1.msra.mxu0 0.0
  %931 = vmatprep.subr.mxu0 0.0
  %932 = vmatpush1.msra.mxu0 0.0
  %933 = vmatprep.subr.mxu0 0.0
  %934 = vmatpush1.msra.mxu0 0.0
  %935 = vmatprep.subr.mxu0 0.0
  %936 = vmatpush1.msra.mxu0 0.0
  %937 = vmatprep.subr.mxu0 0.0
  %938 = vmatpush1.msra.mxu0 0.0
  %939 = vmatprep.subr.mxu0 0.0
  %940 = vmatpush1.msra.mxu0 0.0
  %941 = vmatprep.subr.mxu0 0.0
  %942 = vmatpush1.msra.mxu0 0.0
  %943 = vmatprep.subr.mxu0 0.0
  %944 = vmatpush1.msra.mxu0 0.0
  %945 = vmatprep.subr.mxu0 0.0
  %946 = vmatpush1.msra.mxu0 0.0
  %947 = vmatprep.subr.mxu0 0.0
  %948 = vmatpush1.msra.mxu0 0.0
  %949 = vmatprep.subr.mxu0 0.0
  %950 = vmatpush1.msra.mxu0 0.0
  %951 = vmatprep.subr.mxu0 0.0
  %952 = vmatpush1.msra.mxu0 0.0
  %953 = vmatprep.mubr.f32.mxu0 0.0
  %954 = vmatmul.mubr.f32.gmra.mrb[0].mxu0 %v865
  %v955 = vpop.f32.mrb[0].mxu0
  %v956 = vadd.f32 %v887, %v955
  %v957 = vpop.f32.mrb[0].mxu0
  %958 = vdwg.mxu0
  %v959 = vmax.f32 %v956, 0.0
  %v960 = vld [vmem:[%s5] sm:$0xff]
  %v961 = vld [vmem:[%s5 + $0x8] sm:$0xff]
  %v962 = vld [vmem:[%s5 + $0x10] sm:$0xff]
  %v963 = vld [vmem:[%s5 + $0x18] sm:$0xff]
  %v964 = vld [vmem:[%s5 + $0x20] sm:$0xff]
  %v965 = vld [vmem:[%s5 + $0x28] sm:$0xff]
  %v966 = vld [vmem:[%s5 + $0x30] sm:$0xff]
  %v967 = vld [vmem:[%s5 + $0x38] sm:$0xff]
  %v968 = vld [vmem:[%s5 + $0x40] sm:$0xff]
  %v969 = vld [vmem:[%s5 + $0x48] sm:$0xff]
  %v970 = vld [vmem:[%s5 + $0x50] sm:$0xff]
  %v971 = vld [vmem:[%s5 + $0x58] sm:$0xff]
  %v972 = vld [vmem:[%s5 + $0x60] sm:$0xff]
  %v973 = vld [vmem:[%s5 + $0x68] sm:$0xff]
  %v974 = vld [vmem:[%s5 + $0x70] sm:$0xff]
  %v975 = vld [vmem:[%s5 + $0x78] sm:$0xff]
  %v976 = vld [vmem:[%s6] sm:$0x1]
  %v978 = vlaneseq
  %v979 = vshrl.u32 %v978, 7
  %v980 = vsub.s32 0, %v979
  %v981 = vrot.slane %v976, %v980
  %983 = vmatprep.subr.mxu0 0.0
  %984 = vmatpush1.msra.mxu0 %v960
  %985 = vmatprep.subr.mxu0 0.0
  %986 = vmatpush1.msra.mxu0 %v961
  %987 = vmatprep.subr.mxu0 0.0
  %988 = vmatpush1.msra.mxu0 %v962
  %989 = vmatprep.subr.mxu0 0.0
  %990 = vmatpush1.msra.mxu0 %v963
  %991 = vmatprep.subr.mxu0 0.0
  %992 = vmatpush1.msra.mxu0 %v964
  %993 = vmatprep.subr.mxu0 0.0
  %994 = vmatpush1.msra.mxu0 %v965
  %995 = vmatprep.subr.mxu0 0.0
  %996 = vmatpush1.msra.mxu0 %v966
  %997 = vmatprep.subr.mxu0 0.0
  %998 = vmatpush1.msra.mxu0 %v967
  %999 = vmatprep.subr.mxu0 0.0
  %1000 = vmatpush1.msra.mxu0 %v968
  %1001 = vmatprep.subr.mxu0 0.0
  %1002 = vmatpush1.msra.mxu0 %v969
  %1003 = vmatprep.subr.mxu0 0.0
  %1004 = vmatpush1.msra.mxu0 %v970
  %1005 = vmatprep.subr.mxu0 0.0
  %1006 = vmatpush1.msra.mxu0 %v971
  %1007 = vmatprep.subr.mxu0 0.0
  %1008 = vmatpush1.msra.mxu0 %v972
  %1009 = vmatprep.subr.mxu0 0.0
  %1010 = vmatpush1.msra.mxu0 %v973
  %1011 = vmatprep.subr.mxu0 0.0
  %1012 = vmatpush1.msra.mxu0 %v974
  %1013 = vmatprep.subr.mxu0 0.0
  %1014 = vmatpush1.msra.mxu0 %v975
  %1015 = vmatprep.subr.mxu0 0.0
  %1016 = vmatpush1.msra.mxu0 0.0
  %1017 = vmatprep.subr.mxu0 0.0
  %1018 = vmatpush1.msra.mxu0 0.0
  %1019 = vmatprep.subr.mxu0 0.0
  %1020 = vmatpush1.msra.mxu0 0.0
  %1021 = vmatprep.subr.mxu0 0.0
  %1022 = vmatpush1.msra.mxu0 0.0
  %1023 = vmatprep.subr.mxu0 0.0
  %1024 = vmatpush1.msra.mxu0 0.0
  %1025 = vmatprep.subr.mxu0 0.0
  %1026 = vmatpush1.msra.mxu0 0.0
  %1027 = vmatprep.subr.mxu0 0.0
  %1028 = vmatpush1.msra.mxu0 0.0
  %1029 = vmatprep.subr.mxu0 0.0
  %1030 = vmatpush1.msra.mxu0 0.0
  %1031 = vmatprep.subr.mxu0 0.0
  %1032 = vmatpush1.msra.mxu0 0.0
  %1033 = vmatprep.subr.mxu0 0.0
  %1034 = vmatpush1.msra.mxu0 0.0
  %1035 = vmatprep.subr.mxu0 0.0
  %1036 = vmatpush1.msra.mxu0 0.0
  %1037 = vmatprep.subr.mxu0 0.0
  %1038 = vmatpush1.msra.mxu0 0.0
  %1039 = vmatprep.subr.mxu0 0.0
  %1040 = vmatpush1.msra.mxu0 0.0
  %1041 = vmatprep.subr.mxu0 0.0
  %1042 = vmatpush1.msra.mxu0 0.0
  %1043 = vmatprep.subr.mxu0 0.0
  %1044 = vmatpush1.msra.mxu0 0.0
  %1045 = vmatprep.subr.mxu0 0.0
  %1046 = vmatpush1.msra.mxu0 0.0
  %1047 = vmatprep.mubr.f32.mxu0 0.0
  %1048 = vmatmul.mubr.f32.gmra.mrb[0].mxu0 %v959
  %v1049 = vpop.f32.mrb[0].mxu0
  %v1050 = vadd.f32 %v981, %v1049
  %v1051 = vpop.f32.mrb[0].mxu0
  %1052 = vdwg.mxu0
  %1053 = vst [vmem:[%s7] sm:$0xff] %v1050
  // Predicated region
  $region30: #{lenet_forward.5} parent=0 // pred_check
    _
  $region31: #{lenet_forward.5} parent=0 // pred_check_branch
    %1055 = sbr.rel (0) target = $region33
  $region32: #{lenet_forward.5} parent=0 // pred_region
    _
  $region33: #{lenet_forward.5} parent=0 // pred_fallthru
    _
  // Predicated region
  $region34: #{lenet_forward.5} parent=0 // pred_check
    _
  $region35: #{lenet_forward.5} parent=0 // pred_check_branch
    %1057 = sbr.rel (0) target = $region37
  $region36: #{lenet_forward.5} parent=0 // pred_region
    _
  $region37: #{lenet_forward.5} parent=0 // pred_fallthru
    _

</llo_original>
